<compile_context>
chip_gen: v6e
topology: v6e:2x2x1
jax: 0.10.0
libtpu: 0.0.40
codegen_flags: <defaults>
</compile_context>

<pallas_src>
import math

import jax
import jax.numpy as jnp
from jax.experimental import pallas as pl
from jax.experimental.pallas import tpu as pltpu

# ------------------- synthetic CLIP text-transformer configuration -------------------
N_CLS = 6          # number of prompts (classes)
NB = 3             # batch block per grid step (2 grid steps -> 2 TCs on v7x)
T = 8              # context length
DT = 32            # transformer width
HT = 2             # attention heads
HD = DT // HT      # head dim
LT = 2             # transformer layers
EMB = 32           # CLIP shared embedding dim (text_projection output)
NEG_INF = -1e30    # additive causal-mask value (finite, underflows to 0 in exp)


# ================================ fused Pallas kernel ================================
def _text_encoder_kernel(prompts_ref, pos_ref, sel_ref,
                         wq_ref, bq_ref, wk_ref, bk_ref, wv_ref, bv_ref,
                         wo_ref, bo_ref, fcw_ref, fcb_ref, mw_ref, mb_ref,
                         tproj_ref, tbias_ref, out_ref):
    nb, t, d = NB, T, DT
    f32, bf16 = jnp.float32, jnp.bfloat16

    # x = prompts + positional_embedding        (NB, T, D) -> rows (NB*T, D)
    x2 = (prompts_ref[...] + pos_ref[...][None, :, :]).reshape(nb * t, d)

    # causal additive mask built in-kernel (no HBM DMA of a zeros/-inf tensor)
    row = jax.lax.broadcasted_iota(jnp.int32, (t, t), 0)
    col = jax.lax.broadcasted_iota(jnp.int32, (t, t), 1)
    causal = jnp.where(col > row, jnp.float32(NEG_INF), jnp.float32(0.0))

    def norm(z):                                    # LN without affine (folded into W)
        mu = jnp.mean(z, axis=-1, keepdims=True)
        var = jnp.mean(jnp.square(z - mu), axis=-1, keepdims=True)
        return (z - mu) * jax.lax.rsqrt(var + 1e-5)

    def to_heads(z):                                # (NB*T, D) -> (NB*HT, T, HD)
        return z.reshape(nb, t, HT, HD).transpose(0, 2, 1, 3).reshape(nb * HT, t, HD)

    scale = 1.0 / math.sqrt(HD)

    for l in range(LT):                             # static, unrolled layer loop
        # ------------- attention: x = x + out_proj(MHA(ln_1(x))) -------------
        hb = norm(x2).astype(bf16)                                  # ln1 affine folded
        q = jnp.dot(hb, wq_ref[l], preferred_element_type=f32) + bq_ref[l]
        k = jnp.dot(hb, wk_ref[l], preferred_element_type=f32) + bk_ref[l]
        v = jnp.dot(hb, wv_ref[l], preferred_element_type=f32) + bv_ref[l]

        qh, kh, vh = to_heads(q), to_heads(k), to_heads(v)          # one relayout each
        s = jnp.einsum('bqd,bkd->bqk', qh.astype(bf16), kh.astype(bf16),
                       preferred_element_type=f32) * scale
        s = s + causal[None, :, :]
        s = s - jnp.max(s, axis=-1, keepdims=True)
        e = jnp.exp(s)
        p = e * pl.reciprocal(jnp.sum(e, axis=-1, keepdims=True), approx=True)
        o = jnp.einsum('bqk,bkd->bqd', p.astype(bf16), vh.astype(bf16),
                       preferred_element_type=f32)
        o2 = o.reshape(nb, HT, t, HD).transpose(0, 2, 1, 3).reshape(nb * t, d)

        attn = jnp.dot(o2.astype(bf16), wo_ref[l],
                       preferred_element_type=f32) + bo_ref[l]
        x2 = x2 + attn

        # ------------- MLP: x = x + proj(QuickGELU(fc(ln_2(x)))) -------------
        h2 = norm(x2).astype(bf16)                                  # ln2 affine folded
        a = jnp.dot(h2, fcw_ref[l], preferred_element_type=f32) + fcb_ref[l]
        a = a * jax.nn.sigmoid(1.702 * a)                           # QuickGELU (f32)
        x2 = x2 + jnp.dot(a.astype(bf16), mw_ref[l],
                          preferred_element_type=f32) + mb_ref[l]

    # EOT selection BEFORE ln_final (LN is row-wise => identical result), then
    # ln_final (affine folded into text_projection) and the projection itself.
    x3 = x2.reshape(nb, t, d)
    x_sel = jnp.sum(sel_ref[...] * x3, axis=1)                      # (NB, D)
    xs = norm(x_sel).astype(bf16)
    res = jnp.dot(xs, tproj_ref[...], preferred_element_type=f32) + tbias_ref[...]
    out_ref[...] = res.reshape(nb, 1, EMB).astype(out_ref.dtype)


# ================================ param preparation ================================
def prepare_kernel_params(p):
    """Fold LN affines into adjacent matmuls, split qkv, cast weights to bf16."""
    bf16 = jnp.bfloat16
    wq, wk, wv = jnp.split(p["in_w"], 3, axis=-1)          # (L, D, D) each
    bq, bk, bv = jnp.split(p["in_b"], 3, axis=-1)          # (L, 1, D) each

    def fold(g, b, w, bias):
        # ln(z)*g + b followed by @W + bias  ==  ln(z) @ (g*W) + (b@W + bias)
        w_f = jnp.swapaxes(g, -1, -2) * w                   # (L, D, 1) * (L, D, K)
        b_f = jnp.einsum('lod,ldk->lok', b, w) + bias
        return w_f, b_f

    wq_f, bq_f = fold(p["ln1_g"], p["ln1_b"], wq, bq)
    wk_f, bk_f = fold(p["ln1_g"], p["ln1_b"], wk, bk)
    wv_f, bv_f = fold(p["ln1_g"], p["ln1_b"], wv, bv)
    fcw_f, fcb_f = fold(p["ln2_g"], p["ln2_b"], p["fc_w"], p["fc_b"])

    tproj_f = p["lnf_g"].reshape(DT, 1) * p["text_proj"]    # (D, EMB)
    tbias = p["lnf_b"] @ p["text_proj"]                     # (1, EMB)

    return dict(
        pos=p["pos_emb"],
        wq=wq_f.astype(bf16), bq=bq_f, wk=wk_f.astype(bf16), bk=bk_f,
        wv=wv_f.astype(bf16), bv=bv_f,
        wo=p["out_w"].astype(bf16), bo=p["out_b"],
        fcw=fcw_f.astype(bf16), fcb=fcb_f,
        mw=p["mlp_w"].astype(bf16), mb=p["mlp_b"],
        tproj=tproj_f.astype(bf16), tbias=tbias,
    )


# ================================ wrapper ================================
def text_encoder_forward(prompts, tokenized_prompts, kp):
    """prompts: (N_CLS, T, DT), tokenized_prompts: (N_CLS, T) int32 -> (N_CLS, EMB)."""
    # Integer argmax (EOT position) is a trivial plain-JAX op; the selection itself
    # is a masked reduction inside the kernel (one-hot over the time axis).
    eot = jnp.argmax(tokenized_prompts, axis=-1)                         # (N,)
    sel = jax.nn.one_hot(eot, T, dtype=jnp.float32)[..., None]           # (N, T, 1)

    def full_spec(shape):
        nd = len(shape)
        return pl.BlockSpec(tuple(shape), lambda i, _nd=nd: (0,) * _nd)

    def batch_spec(shape):
        nd = len(shape)
        return pl.BlockSpec((NB,) + tuple(shape[1:]),
                            lambda i, _nd=nd: (i,) + (0,) * (_nd - 1))

    weights = (kp["wq"], kp["bq"], kp["wk"], kp["bk"], kp["wv"], kp["bv"],
               kp["wo"], kp["bo"], kp["fcw"], kp["fcb"], kp["mw"], kp["mb"],
               kp["tproj"], kp["tbias"])

    in_specs = ([batch_spec(prompts.shape), full_spec(kp["pos"].shape),
                 batch_spec(sel.shape)]
                + [full_spec(w.shape) for w in weights])

    out = pl.pallas_call(
        _text_encoder_kernel,
        grid=(N_CLS // NB,),
        in_specs=in_specs,
        out_specs=pl.BlockSpec((NB, 1, EMB), lambda i: (i, 0, 0)),
        out_shape=jax.ShapeDtypeStruct((N_CLS, 1, EMB), jnp.float32),
        compiler_params=pltpu.CompilerParams(
            dimension_semantics=("parallel",),      # v7x: one batch block per TC
            vmem_limit_bytes=32 * 1024 * 1024),
    )(prompts.astype(jnp.float32), kp["pos"], sel, *weights)
    return out.reshape(N_CLS, EMB)


# ================================ pure-JAX reference ================================
def text_encoder_ref(prompts, tokenized_prompts, p):
    x = prompts + p["pos_emb"][None]
    causal = jnp.where(jnp.triu(jnp.ones((T, T), bool), k=1), -jnp.inf, 0.0)

    def ln(z, g, b):
        mu = jnp.mean(z, axis=-1, keepdims=True)
        var = jnp.mean(jnp.square(z - mu), axis=-1, keepdims=True)
        return (z - mu) * jax.lax.rsqrt(var + 1e-5) * g + b

    for l in range(LT):
        h = ln(x, p["ln1_g"][l, 0], p["ln1_b"][l, 0])
        qkv = h @ p["in_w"][l] + p["in_b"][l, 0]
        q, k, v = jnp.split(qkv, 3, axis=-1)

        def heads(tns):
            return tns.reshape(N_CLS, T, HT, HD).transpose(0, 2, 1, 3)

        qh, kh, vh = heads(q), heads(k), heads(v)
        s = jnp.einsum('bhqd,bhkd->bhqk', qh, kh) / math.sqrt(HD) + causal
        pa = jax.nn.softmax(s, axis=-1)
        o = jnp.einsum('bhqk,bhkd->bhqd', pa, vh).transpose(0, 2, 1, 3).reshape(N_CLS, T, DT)
        x = x + o @ p["out_w"][l] + p["out_b"][l, 0]

        h2 = ln(x, p["ln2_g"][l, 0], p["ln2_b"][l, 0])
        h2 = h2 @ p["fc_w"][l] + p["fc_b"][l, 0]
        h2 = h2 * jax.nn.sigmoid(1.702 * h2)
        x = x + h2 @ p["mlp_w"][l] + p["mlp_b"][l, 0]

    x = ln(x, p["lnf_g"][0], p["lnf_b"][0])
    eot = jnp.argmax(tokenized_prompts, axis=-1)
    x_eot = x[jnp.arange(N_CLS), eot]
    return x_eot @ p["text_proj"]


# ================================ deterministic params ================================
def init_params(key):
    keys = iter(jax.random.split(key, 64))

    def nrm(shape, std=0.02):
        return (std * jax.random.normal(next(keys), shape)).astype(jnp.float32)

    return dict(
        pos_emb=nrm((T, DT)),
        ln1_g=jnp.ones((LT, 1, DT), jnp.float32), ln1_b=nrm((LT, 1, DT)),
        in_w=nrm((LT, DT, 3 * DT)),               in_b=nrm((LT, 1, 3 * DT)),
        out_w=nrm((LT, DT, DT)),                  out_b=nrm((LT, 1, DT)),
        ln2_g=jnp.ones((LT, 1, DT), jnp.float32), ln2_b=nrm((LT, 1, DT)),
        fc_w=nrm((LT, DT, 4 * DT)),               fc_b=nrm((LT, 1, 4 * DT)),
        mlp_w=nrm((LT, 4 * DT, DT)),              mlp_b=nrm((LT, 1, DT)),
        lnf_g=jnp.ones((1, DT), jnp.float32),     lnf_b=nrm((1, DT)),
        text_proj=nrm((DT, EMB)),
    )


# ================================ main ================================
if __name__ == "__main__":
    key = jax.random.PRNGKey(0)
    k_param, k_prompt = jax.random.split(key)
    params = init_params(k_param)
    kparams = prepare_kernel_params(params)

    prompts = 0.02 * jax.random.normal(k_prompt, (N_CLS, T, DT), dtype=jnp.float32)
    eot_pos = jnp.array([7, 6, 7, 5, 7, 6], dtype=jnp.int32)
    tokenized = jnp.full((N_CLS, T), 5, dtype=jnp.int32)
    tokenized = tokenized.at[jnp.arange(N_CLS), eot_pos].set(999)

    fwd = jax.jit(text_encoder_forward)
    out = fwd(prompts, tokenized, kparams)
    jax.block_until_ready(out)

    ref = text_encoder_ref(prompts, tokenized, params)

    assert out.shape == (N_CLS, EMB)
    assert bool(jnp.all(jnp.isfinite(out)))
    assert bool(jnp.allclose(out, ref, rtol=3e-2, atol=3e-2)), float(
        jnp.max(jnp.abs(out - ref)))

    print("KERNEL_OK")
</pallas_src>

<mosaic_0001>
module attributes {stable_mosaic.version = 11 : i64} {
  func.func @_text_encoder_kernel(%arg0: i32, %arg1: memref<3x8x32xf32, #tpu.memory_space<vmem>>, %arg2: memref<8x32xf32, #tpu.memory_space<vmem>>, %arg3: memref<3x8x1xf32, #tpu.memory_space<vmem>>, %arg4: memref<2x32x32xbf16, #tpu.memory_space<vmem>>, %arg5: memref<2x1x32xf32, #tpu.memory_space<vmem>>, %arg6: memref<2x32x32xbf16, #tpu.memory_space<vmem>>, %arg7: memref<2x1x32xf32, #tpu.memory_space<vmem>>, %arg8: memref<2x32x32xbf16, #tpu.memory_space<vmem>>, %arg9: memref<2x1x32xf32, #tpu.memory_space<vmem>>, %arg10: memref<2x32x32xbf16, #tpu.memory_space<vmem>>, %arg11: memref<2x1x32xf32, #tpu.memory_space<vmem>>, %arg12: memref<2x32x128xbf16, #tpu.memory_space<vmem>>, %arg13: memref<2x1x128xf32, #tpu.memory_space<vmem>>, %arg14: memref<2x128x32xbf16, #tpu.memory_space<vmem>>, %arg15: memref<2x1x32xf32, #tpu.memory_space<vmem>>, %arg16: memref<32x32xbf16, #tpu.memory_space<vmem>>, %arg17: memref<1x32xf32, #tpu.memory_space<vmem>>, %arg18: memref<3x1x32xf32, #tpu.memory_space<vmem>>) attributes {dimension_semantics = [#tpu.dimension_semantics<parallel>], iteration_bounds = array<i64: 2>, scalar_prefetch = 0 : i64, scratch_operands = 0 : i64, tpu.core_type = #tpu.core_type<tc>, window_params = [{transform_indices = @transform_0, window_bounds = array<i64: 3, 8, 32>}, {pipeline_mode = #tpu.pipeline_mode<synchronous>, transform_indices = @transform_1, window_bounds = array<i64: 8, 32>}, {transform_indices = @transform_2, window_bounds = array<i64: 3, 8, 1>}, {pipeline_mode = #tpu.pipeline_mode<synchronous>, transform_indices = @transform_3, window_bounds = array<i64: 2, 32, 32>}, {pipeline_mode = #tpu.pipeline_mode<synchronous>, transform_indices = @transform_4, window_bounds = array<i64: 2, 1, 32>}, {pipeline_mode = #tpu.pipeline_mode<synchronous>, transform_indices = @transform_5, window_bounds = array<i64: 2, 32, 32>}, {pipeline_mode = #tpu.pipeline_mode<synchronous>, transform_indices = @transform_6, window_bounds = array<i64: 2, 1, 32>}, {pipeline_mode = #tpu.pipeline_mode<synchronous>, transform_indices = @transform_7, window_bounds = array<i64: 2, 32, 32>}, {pipeline_mode = #tpu.pipeline_mode<synchronous>, transform_indices = @transform_8, window_bounds = array<i64: 2, 1, 32>}, {pipeline_mode = #tpu.pipeline_mode<synchronous>, transform_indices = @transform_9, window_bounds = array<i64: 2, 32, 32>}, {pipeline_mode = #tpu.pipeline_mode<synchronous>, transform_indices = @transform_10, window_bounds = array<i64: 2, 1, 32>}, {pipeline_mode = #tpu.pipeline_mode<synchronous>, transform_indices = @transform_11, window_bounds = array<i64: 2, 32, 128>}, {pipeline_mode = #tpu.pipeline_mode<synchronous>, transform_indices = @transform_12, window_bounds = array<i64: 2, 1, 128>}, {pipeline_mode = #tpu.pipeline_mode<synchronous>, transform_indices = @transform_13, window_bounds = array<i64: 2, 128, 32>}, {pipeline_mode = #tpu.pipeline_mode<synchronous>, transform_indices = @transform_14, window_bounds = array<i64: 2, 1, 32>}, {pipeline_mode = #tpu.pipeline_mode<synchronous>, transform_indices = @transform_15, window_bounds = array<i64: 32, 32>}, {pipeline_mode = #tpu.pipeline_mode<synchronous>, transform_indices = @transform_16, window_bounds = array<i64: 1, 32>}, {transform_indices = @transform_17, window_bounds = array<i64: 3, 1, 32>}]} {
    %c0 = arith.constant 0 : index
    %c0_0 = arith.constant 0 : index
    %c0_1 = arith.constant 0 : index
    %0 = vector.load %arg1[%c0, %c0_0, %c0_1] : memref<3x8x32xf32, #tpu.memory_space<vmem>>, vector<3x8x32xf32>
    %c0_2 = arith.constant 0 : index
    %c0_3 = arith.constant 0 : index
    %1 = vector.load %arg2[%c0_2, %c0_3] : memref<8x32xf32, #tpu.memory_space<vmem>>, vector<8x32xf32>
    %2 = vector.shape_cast %1 : vector<8x32xf32> to vector<1x8x32xf32>
    %3 = vector.broadcast %2 : vector<1x8x32xf32> to vector<3x8x32xf32>
    %4 = arith.addf %0, %3 : vector<3x8x32xf32>
    %5 = vector.shape_cast %4 : vector<3x8x32xf32> to vector<24x32xf32>
    %6 = tpu.iota {dimensions = array<i32: 0>} : vector<8x8xi32>
    %7 = tpu.iota {dimensions = array<i32: 1>} : vector<8x8xi32>
    %8 = arith.cmpi sgt, %7, %6 : vector<8x8xi32>
    %cst = arith.constant -1.000000e+30 : f32
    %cst_4 = arith.constant 0.000000e+00 : f32
    %9 = vector.broadcast %cst : f32 to vector<8x8xf32>
    %10 = vector.broadcast %cst_4 : f32 to vector<8x8xf32>
    %11 = arith.select %8, %9, %10 : vector<8x8xi1>, vector<8x8xf32>
    %cst_5 = arith.constant dense<0.000000e+00> : vector<24xf32>
    %12 = vector.multi_reduction <add>, %5, %cst_5 [1] : vector<24x32xf32> to vector<24xf32>
    %13 = vector.shape_cast %12 : vector<24xf32> to vector<24x1xf32>
    %cst_6 = arith.constant 3.200000e+01 : f32
    %14 = vector.broadcast %cst_6 : f32 to vector<24x1xf32>
    %15 = arith.divf %13, %14 : vector<24x1xf32>
    %16 = vector.broadcast %15 : vector<24x1xf32> to vector<24x32xf32>
    %17 = arith.subf %5, %16 : vector<24x32xf32>
    %18 = arith.mulf %17, %17 : vector<24x32xf32>
    %cst_7 = arith.constant dense<0.000000e+00> : vector<24xf32>
    %19 = vector.multi_reduction <add>, %18, %cst_7 [1] : vector<24x32xf32> to vector<24xf32>
    %20 = vector.shape_cast %19 : vector<24xf32> to vector<24x1xf32>
    %cst_8 = arith.constant 3.200000e+01 : f32
    %21 = vector.broadcast %cst_8 : f32 to vector<24x1xf32>
    %22 = arith.divf %20, %21 : vector<24x1xf32>
    %23 = vector.broadcast %15 : vector<24x1xf32> to vector<24x32xf32>
    %24 = arith.subf %5, %23 : vector<24x32xf32>
    %cst_9 = arith.constant 9.99999974E-6 : f32
    %25 = vector.broadcast %cst_9 : f32 to vector<24x1xf32>
    %26 = arith.addf %22, %25 : vector<24x1xf32>
    %27 = math.rsqrt %26 : vector<24x1xf32>
    %28 = vector.broadcast %27 : vector<24x1xf32> to vector<24x32xf32>
    %29 = arith.mulf %24, %28 : vector<24x32xf32>
    %30 = arith.truncf %29 : vector<24x32xf32> to vector<24x32xbf16>
    %c0_10 = arith.constant 0 : index
    %c0_11 = arith.constant 0 : index
    %c0_12 = arith.constant 0 : index
    %31 = vector.load %arg4[%c0_10, %c0_11, %c0_12] : memref<2x32x32xbf16, #tpu.memory_space<vmem>>, vector<1x32x32xbf16>
    %32 = vector.shape_cast %31 : vector<1x32x32xbf16> to vector<32x32xbf16>
    %cst_13 = arith.constant dense<0.000000e+00> : vector<24x32xf32>
    %33 = tpu.matmul %30, %32, %cst_13 {dimension_numbers = #tpu.dot_dimension_numbers<[1], [0], [0], [1], [0, 0, 1, 1], [], []>} : vector<24x32xbf16>, vector<32x32xbf16>, vector<24x32xf32> -> vector<24x32xf32>
    %c0_14 = arith.constant 0 : index
    %c0_15 = arith.constant 0 : index
    %c0_16 = arith.constant 0 : index
    %34 = vector.load %arg5[%c0_14, %c0_15, %c0_16] : memref<2x1x32xf32, #tpu.memory_space<vmem>>, vector<1x1x32xf32>
    %35 = vector.shape_cast %34 : vector<1x1x32xf32> to vector<1x32xf32>
    %36 = vector.broadcast %35 : vector<1x32xf32> to vector<24x32xf32>
    %37 = arith.addf %33, %36 : vector<24x32xf32>
    %c0_17 = arith.constant 0 : index
    %c0_18 = arith.constant 0 : index
    %c0_19 = arith.constant 0 : index
    %38 = vector.load %arg6[%c0_17, %c0_18, %c0_19] : memref<2x32x32xbf16, #tpu.memory_space<vmem>>, vector<1x32x32xbf16>
    %39 = vector.shape_cast %38 : vector<1x32x32xbf16> to vector<32x32xbf16>
    %cst_20 = arith.constant dense<0.000000e+00> : vector<24x32xf32>
    %40 = tpu.matmul %30, %39, %cst_20 {dimension_numbers = #tpu.dot_dimension_numbers<[1], [0], [0], [1], [0, 0, 1, 1], [], []>} : vector<24x32xbf16>, vector<32x32xbf16>, vector<24x32xf32> -> vector<24x32xf32>
    %c0_21 = arith.constant 0 : index
    %c0_22 = arith.constant 0 : index
    %c0_23 = arith.constant 0 : index
    %41 = vector.load %arg7[%c0_21, %c0_22, %c0_23] : memref<2x1x32xf32, #tpu.memory_space<vmem>>, vector<1x1x32xf32>
    %42 = vector.shape_cast %41 : vector<1x1x32xf32> to vector<1x32xf32>
    %43 = vector.broadcast %42 : vector<1x32xf32> to vector<24x32xf32>
    %44 = arith.addf %40, %43 : vector<24x32xf32>
    %c0_24 = arith.constant 0 : index
    %c0_25 = arith.constant 0 : index
    %c0_26 = arith.constant 0 : index
    %45 = vector.load %arg8[%c0_24, %c0_25, %c0_26] : memref<2x32x32xbf16, #tpu.memory_space<vmem>>, vector<1x32x32xbf16>
    %46 = vector.shape_cast %45 : vector<1x32x32xbf16> to vector<32x32xbf16>
    %cst_27 = arith.constant dense<0.000000e+00> : vector<24x32xf32>
    %47 = tpu.matmul %30, %46, %cst_27 {dimension_numbers = #tpu.dot_dimension_numbers<[1], [0], [0], [1], [0, 0, 1, 1], [], []>} : vector<24x32xbf16>, vector<32x32xbf16>, vector<24x32xf32> -> vector<24x32xf32>
    %c0_28 = arith.constant 0 : index
    %c0_29 = arith.constant 0 : index
    %c0_30 = arith.constant 0 : index
    %48 = vector.load %arg9[%c0_28, %c0_29, %c0_30] : memref<2x1x32xf32, #tpu.memory_space<vmem>>, vector<1x1x32xf32>
    %49 = vector.shape_cast %48 : vector<1x1x32xf32> to vector<1x32xf32>
    %50 = vector.broadcast %49 : vector<1x32xf32> to vector<24x32xf32>
    %51 = arith.addf %47, %50 : vector<24x32xf32>
    %52 = vector.shape_cast %37 : vector<24x32xf32> to vector<3x8x2x16xf32>
    %53 = tpu.transpose %52, [0, 2, 1, 3] : vector<3x8x2x16xf32> -> vector<3x2x8x16xf32>
    %54 = vector.shape_cast %53 : vector<3x2x8x16xf32> to vector<6x8x16xf32>
    %55 = vector.shape_cast %44 : vector<24x32xf32> to vector<3x8x2x16xf32>
    %56 = tpu.transpose %55, [0, 2, 1, 3] : vector<3x8x2x16xf32> -> vector<3x2x8x16xf32>
    %57 = vector.shape_cast %56 : vector<3x2x8x16xf32> to vector<6x8x16xf32>
    %58 = vector.shape_cast %51 : vector<24x32xf32> to vector<3x8x2x16xf32>
    %59 = tpu.transpose %58, [0, 2, 1, 3] : vector<3x8x2x16xf32> -> vector<3x2x8x16xf32>
    %60 = vector.shape_cast %59 : vector<3x2x8x16xf32> to vector<6x8x16xf32>
    %61 = arith.truncf %54 : vector<6x8x16xf32> to vector<6x8x16xbf16>
    %62 = arith.truncf %57 : vector<6x8x16xf32> to vector<6x8x16xbf16>
    "tpu.trace_start"() <{level = 10 : i32, message = "bqd,bkd->bqk"}> : () -> ()
    %cst_31 = arith.constant dense<0.000000e+00> : vector<6x8x8xf32>
    %63 = tpu.matmul %61, %62, %cst_31 {dimension_numbers = #tpu.dot_dimension_numbers<[2], [2], [1], [1], [0, 0, 0, 1, 1, 1], [0], [0]>} : vector<6x8x16xbf16>, vector<6x8x16xbf16>, vector<6x8x8xf32> -> vector<6x8x8xf32>
    "tpu.trace_stop"() : () -> ()
    %cst_32 = arith.constant 2.500000e-01 : f32
    %64 = vector.broadcast %cst_32 : f32 to vector<6x8x8xf32>
    %65 = arith.mulf %63, %64 : vector<6x8x8xf32>
    %66 = vector.shape_cast %11 : vector<8x8xf32> to vector<1x8x8xf32>
    %67 = vector.broadcast %66 : vector<1x8x8xf32> to vector<6x8x8xf32>
    %68 = arith.addf %65, %67 : vector<6x8x8xf32>
    %cst_33 = arith.constant dense<0xFF800000> : vector<6x8xf32>
    %69 = vector.multi_reduction <maximumf>, %68, %cst_33 [2] : vector<6x8x8xf32> to vector<6x8xf32>
    %70 = vector.shape_cast %69 : vector<6x8xf32> to vector<6x8x1xf32>
    %71 = vector.broadcast %70 : vector<6x8x1xf32> to vector<6x8x8xf32>
    %72 = arith.subf %68, %71 : vector<6x8x8xf32>
    %73 = math.exp %72 : vector<6x8x8xf32>
    %cst_34 = arith.constant dense<0.000000e+00> : vector<6x8xf32>
    %74 = vector.multi_reduction <add>, %73, %cst_34 [2] : vector<6x8x8xf32> to vector<6x8xf32>
    %75 = vector.shape_cast %74 : vector<6x8xf32> to vector<6x8x1xf32>
    %76 = tpu.reciprocal %75 {approx = true} : vector<6x8x1xf32> -> vector<6x8x1xf32>
    %77 = vector.broadcast %76 : vector<6x8x1xf32> to vector<6x8x8xf32>
    %78 = arith.mulf %73, %77 : vector<6x8x8xf32>
    %79 = arith.truncf %78 : vector<6x8x8xf32> to vector<6x8x8xbf16>
    %80 = arith.truncf %60 : vector<6x8x16xf32> to vector<6x8x16xbf16>
    "tpu.trace_start"() <{level = 10 : i32, message = "bqk,bkd->bqd"}> : () -> ()
    %cst_35 = arith.constant dense<0.000000e+00> : vector<6x8x16xf32>
    %81 = tpu.matmul %79, %80, %cst_35 {dimension_numbers = #tpu.dot_dimension_numbers<[2], [1], [1], [2], [0, 0, 0, 1, 1, 2], [0], [0]>} : vector<6x8x8xbf16>, vector<6x8x16xbf16>, vector<6x8x16xf32> -> vector<6x8x16xf32>
    "tpu.trace_stop"() : () -> ()
    %82 = vector.shape_cast %81 : vector<6x8x16xf32> to vector<3x2x8x16xf32>
    %83 = tpu.transpose %82, [0, 2, 1, 3] : vector<3x2x8x16xf32> -> vector<3x8x2x16xf32>
    %84 = vector.shape_cast %83 : vector<3x8x2x16xf32> to vector<24x32xf32>
    %85 = arith.truncf %84 : vector<24x32xf32> to vector<24x32xbf16>
    %c0_36 = arith.constant 0 : index
    %c0_37 = arith.constant 0 : index
    %c0_38 = arith.constant 0 : index
    %86 = vector.load %arg10[%c0_36, %c0_37, %c0_38] : memref<2x32x32xbf16, #tpu.memory_space<vmem>>, vector<1x32x32xbf16>
    %87 = vector.shape_cast %86 : vector<1x32x32xbf16> to vector<32x32xbf16>
    %cst_39 = arith.constant dense<0.000000e+00> : vector<24x32xf32>
    %88 = tpu.matmul %85, %87, %cst_39 {dimension_numbers = #tpu.dot_dimension_numbers<[1], [0], [0], [1], [0, 0, 1, 1], [], []>} : vector<24x32xbf16>, vector<32x32xbf16>, vector<24x32xf32> -> vector<24x32xf32>
    %c0_40 = arith.constant 0 : index
    %c0_41 = arith.constant 0 : index
    %c0_42 = arith.constant 0 : index
    %89 = vector.load %arg11[%c0_40, %c0_41, %c0_42] : memref<2x1x32xf32, #tpu.memory_space<vmem>>, vector<1x1x32xf32>
    %90 = vector.shape_cast %89 : vector<1x1x32xf32> to vector<1x32xf32>
    %91 = vector.broadcast %90 : vector<1x32xf32> to vector<24x32xf32>
    %92 = arith.addf %88, %91 : vector<24x32xf32>
    %93 = arith.addf %5, %92 : vector<24x32xf32>
    %cst_43 = arith.constant dense<0.000000e+00> : vector<24xf32>
    %94 = vector.multi_reduction <add>, %93, %cst_43 [1] : vector<24x32xf32> to vector<24xf32>
    %95 = vector.shape_cast %94 : vector<24xf32> to vector<24x1xf32>
    %cst_44 = arith.constant 3.200000e+01 : f32
    %96 = vector.broadcast %cst_44 : f32 to vector<24x1xf32>
    %97 = arith.divf %95, %96 : vector<24x1xf32>
    %98 = vector.broadcast %97 : vector<24x1xf32> to vector<24x32xf32>
    %99 = arith.subf %93, %98 : vector<24x32xf32>
    %100 = arith.mulf %99, %99 : vector<24x32xf32>
    %cst_45 = arith.constant dense<0.000000e+00> : vector<24xf32>
    %101 = vector.multi_reduction <add>, %100, %cst_45 [1] : vector<24x32xf32> to vector<24xf32>
    %102 = vector.shape_cast %101 : vector<24xf32> to vector<24x1xf32>
    %cst_46 = arith.constant 3.200000e+01 : f32
    %103 = vector.broadcast %cst_46 : f32 to vector<24x1xf32>
    %104 = arith.divf %102, %103 : vector<24x1xf32>
    %105 = vector.broadcast %97 : vector<24x1xf32> to vector<24x32xf32>
    %106 = arith.subf %93, %105 : vector<24x32xf32>
    %cst_47 = arith.constant 9.99999974E-6 : f32
    %107 = vector.broadcast %cst_47 : f32 to vector<24x1xf32>
    %108 = arith.addf %104, %107 : vector<24x1xf32>
    %109 = math.rsqrt %108 : vector<24x1xf32>
    %110 = vector.broadcast %109 : vector<24x1xf32> to vector<24x32xf32>
    %111 = arith.mulf %106, %110 : vector<24x32xf32>
    %112 = arith.truncf %111 : vector<24x32xf32> to vector<24x32xbf16>
    %c0_48 = arith.constant 0 : index
    %c0_49 = arith.constant 0 : index
    %c0_50 = arith.constant 0 : index
    %113 = vector.load %arg12[%c0_48, %c0_49, %c0_50] : memref<2x32x128xbf16, #tpu.memory_space<vmem>>, vector<1x32x128xbf16>
    %114 = vector.shape_cast %113 : vector<1x32x128xbf16> to vector<32x128xbf16>
    %cst_51 = arith.constant dense<0.000000e+00> : vector<24x128xf32>
    %115 = tpu.matmul %112, %114, %cst_51 {dimension_numbers = #tpu.dot_dimension_numbers<[1], [0], [0], [1], [0, 0, 1, 1], [], []>} : vector<24x32xbf16>, vector<32x128xbf16>, vector<24x128xf32> -> vector<24x128xf32>
    %c0_52 = arith.constant 0 : index
    %c0_53 = arith.constant 0 : index
    %c0_54 = arith.constant 0 : index
    %116 = vector.load %arg13[%c0_52, %c0_53, %c0_54] : memref<2x1x128xf32, #tpu.memory_space<vmem>>, vector<1x1x128xf32>
    %117 = vector.shape_cast %116 : vector<1x1x128xf32> to vector<1x128xf32>
    %118 = vector.broadcast %117 : vector<1x128xf32> to vector<24x128xf32>
    %119 = arith.addf %115, %118 : vector<24x128xf32>
    %cst_55 = arith.constant 1.702000e+00 : f32
    %120 = vector.broadcast %cst_55 : f32 to vector<24x128xf32>
    %121 = arith.mulf %120, %119 : vector<24x128xf32>
    %122 = arith.negf %121 : vector<24x128xf32>
    %123 = math.exp %122 : vector<24x128xf32>
    %cst_56 = arith.constant 1.000000e+00 : f32
    %124 = vector.broadcast %cst_56 : f32 to vector<24x128xf32>
    %125 = arith.addf %124, %123 : vector<24x128xf32>
    %126 = arith.divf %124, %125 : vector<24x128xf32>
    %127 = arith.mulf %119, %126 : vector<24x128xf32>
    %128 = arith.truncf %127 : vector<24x128xf32> to vector<24x128xbf16>
    %c0_57 = arith.constant 0 : index
    %c0_58 = arith.constant 0 : index
    %c0_59 = arith.constant 0 : index
    %129 = vector.load %arg14[%c0_57, %c0_58, %c0_59] : memref<2x128x32xbf16, #tpu.memory_space<vmem>>, vector<1x128x32xbf16>
    %130 = vector.shape_cast %129 : vector<1x128x32xbf16> to vector<128x32xbf16>
    %cst_60 = arith.constant dense<0.000000e+00> : vector<24x32xf32>
    %131 = tpu.matmul %128, %130, %cst_60 {dimension_numbers = #tpu.dot_dimension_numbers<[1], [0], [0], [1], [0, 0, 1, 1], [], []>} : vector<24x128xbf16>, vector<128x32xbf16>, vector<24x32xf32> -> vector<24x32xf32>
    %132 = arith.addf %93, %131 : vector<24x32xf32>
    %c0_61 = arith.constant 0 : index
    %c0_62 = arith.constant 0 : index
    %c0_63 = arith.constant 0 : index
    %133 = vector.load %arg15[%c0_61, %c0_62, %c0_63] : memref<2x1x32xf32, #tpu.memory_space<vmem>>, vector<1x1x32xf32>
    %134 = vector.shape_cast %133 : vector<1x1x32xf32> to vector<1x32xf32>
    %135 = vector.broadcast %134 : vector<1x32xf32> to vector<24x32xf32>
    %136 = arith.addf %132, %135 : vector<24x32xf32>
    %cst_64 = arith.constant dense<0.000000e+00> : vector<24xf32>
    %137 = vector.multi_reduction <add>, %136, %cst_64 [1] : vector<24x32xf32> to vector<24xf32>
    %138 = vector.shape_cast %137 : vector<24xf32> to vector<24x1xf32>
    %cst_65 = arith.constant 3.200000e+01 : f32
    %139 = vector.broadcast %cst_65 : f32 to vector<24x1xf32>
    %140 = arith.divf %138, %139 : vector<24x1xf32>
    %141 = vector.broadcast %140 : vector<24x1xf32> to vector<24x32xf32>
    %142 = arith.subf %136, %141 : vector<24x32xf32>
    %143 = arith.mulf %142, %142 : vector<24x32xf32>
    %cst_66 = arith.constant dense<0.000000e+00> : vector<24xf32>
    %144 = vector.multi_reduction <add>, %143, %cst_66 [1] : vector<24x32xf32> to vector<24xf32>
    %145 = vector.shape_cast %144 : vector<24xf32> to vector<24x1xf32>
    %cst_67 = arith.constant 3.200000e+01 : f32
    %146 = vector.broadcast %cst_67 : f32 to vector<24x1xf32>
    %147 = arith.divf %145, %146 : vector<24x1xf32>
    %148 = vector.broadcast %140 : vector<24x1xf32> to vector<24x32xf32>
    %149 = arith.subf %136, %148 : vector<24x32xf32>
    %cst_68 = arith.constant 9.99999974E-6 : f32
    %150 = vector.broadcast %cst_68 : f32 to vector<24x1xf32>
    %151 = arith.addf %147, %150 : vector<24x1xf32>
    %152 = math.rsqrt %151 : vector<24x1xf32>
    %153 = vector.broadcast %152 : vector<24x1xf32> to vector<24x32xf32>
    %154 = arith.mulf %149, %153 : vector<24x32xf32>
    %155 = arith.truncf %154 : vector<24x32xf32> to vector<24x32xbf16>
    %c1 = arith.constant 1 : index
    %c0_69 = arith.constant 0 : index
    %c0_70 = arith.constant 0 : index
    %156 = vector.load %arg4[%c1, %c0_69, %c0_70] : memref<2x32x32xbf16, #tpu.memory_space<vmem>>, vector<1x32x32xbf16>
    %157 = vector.shape_cast %156 : vector<1x32x32xbf16> to vector<32x32xbf16>
    %cst_71 = arith.constant dense<0.000000e+00> : vector<24x32xf32>
    %158 = tpu.matmul %155, %157, %cst_71 {dimension_numbers = #tpu.dot_dimension_numbers<[1], [0], [0], [1], [0, 0, 1, 1], [], []>} : vector<24x32xbf16>, vector<32x32xbf16>, vector<24x32xf32> -> vector<24x32xf32>
    %c1_72 = arith.constant 1 : index
    %c0_73 = arith.constant 0 : index
    %c0_74 = arith.constant 0 : index
    %159 = vector.load %arg5[%c1_72, %c0_73, %c0_74] : memref<2x1x32xf32, #tpu.memory_space<vmem>>, vector<1x1x32xf32>
    %160 = vector.shape_cast %159 : vector<1x1x32xf32> to vector<1x32xf32>
    %161 = vector.broadcast %160 : vector<1x32xf32> to vector<24x32xf32>
    %162 = arith.addf %158, %161 : vector<24x32xf32>
    %c1_75 = arith.constant 1 : index
    %c0_76 = arith.constant 0 : index
    %c0_77 = arith.constant 0 : index
    %163 = vector.load %arg6[%c1_75, %c0_76, %c0_77] : memref<2x32x32xbf16, #tpu.memory_space<vmem>>, vector<1x32x32xbf16>
    %164 = vector.shape_cast %163 : vector<1x32x32xbf16> to vector<32x32xbf16>
    %cst_78 = arith.constant dense<0.000000e+00> : vector<24x32xf32>
    %165 = tpu.matmul %155, %164, %cst_78 {dimension_numbers = #tpu.dot_dimension_numbers<[1], [0], [0], [1], [0, 0, 1, 1], [], []>} : vector<24x32xbf16>, vector<32x32xbf16>, vector<24x32xf32> -> vector<24x32xf32>
    %c1_79 = arith.constant 1 : index
    %c0_80 = arith.constant 0 : index
    %c0_81 = arith.constant 0 : index
    %166 = vector.load %arg7[%c1_79, %c0_80, %c0_81] : memref<2x1x32xf32, #tpu.memory_space<vmem>>, vector<1x1x32xf32>
    %167 = vector.shape_cast %166 : vector<1x1x32xf32> to vector<1x32xf32>
    %168 = vector.broadcast %167 : vector<1x32xf32> to vector<24x32xf32>
    %169 = arith.addf %165, %168 : vector<24x32xf32>
    %c1_82 = arith.constant 1 : index
    %c0_83 = arith.constant 0 : index
    %c0_84 = arith.constant 0 : index
    %170 = vector.load %arg8[%c1_82, %c0_83, %c0_84] : memref<2x32x32xbf16, #tpu.memory_space<vmem>>, vector<1x32x32xbf16>
    %171 = vector.shape_cast %170 : vector<1x32x32xbf16> to vector<32x32xbf16>
    %cst_85 = arith.constant dense<0.000000e+00> : vector<24x32xf32>
    %172 = tpu.matmul %155, %171, %cst_85 {dimension_numbers = #tpu.dot_dimension_numbers<[1], [0], [0], [1], [0, 0, 1, 1], [], []>} : vector<24x32xbf16>, vector<32x32xbf16>, vector<24x32xf32> -> vector<24x32xf32>
    %c1_86 = arith.constant 1 : index
    %c0_87 = arith.constant 0 : index
    %c0_88 = arith.constant 0 : index
    %173 = vector.load %arg9[%c1_86, %c0_87, %c0_88] : memref<2x1x32xf32, #tpu.memory_space<vmem>>, vector<1x1x32xf32>
    %174 = vector.shape_cast %173 : vector<1x1x32xf32> to vector<1x32xf32>
    %175 = vector.broadcast %174 : vector<1x32xf32> to vector<24x32xf32>
    %176 = arith.addf %172, %175 : vector<24x32xf32>
    %177 = vector.shape_cast %162 : vector<24x32xf32> to vector<3x8x2x16xf32>
    %178 = tpu.transpose %177, [0, 2, 1, 3] : vector<3x8x2x16xf32> -> vector<3x2x8x16xf32>
    %179 = vector.shape_cast %178 : vector<3x2x8x16xf32> to vector<6x8x16xf32>
    %180 = vector.shape_cast %169 : vector<24x32xf32> to vector<3x8x2x16xf32>
    %181 = tpu.transpose %180, [0, 2, 1, 3] : vector<3x8x2x16xf32> -> vector<3x2x8x16xf32>
    %182 = vector.shape_cast %181 : vector<3x2x8x16xf32> to vector<6x8x16xf32>
    %183 = vector.shape_cast %176 : vector<24x32xf32> to vector<3x8x2x16xf32>
    %184 = tpu.transpose %183, [0, 2, 1, 3] : vector<3x8x2x16xf32> -> vector<3x2x8x16xf32>
    %185 = vector.shape_cast %184 : vector<3x2x8x16xf32> to vector<6x8x16xf32>
    %186 = arith.truncf %179 : vector<6x8x16xf32> to vector<6x8x16xbf16>
    %187 = arith.truncf %182 : vector<6x8x16xf32> to vector<6x8x16xbf16>
    "tpu.trace_start"() <{level = 10 : i32, message = "bqd,bkd->bqk"}> : () -> ()
    %cst_89 = arith.constant dense<0.000000e+00> : vector<6x8x8xf32>
    %188 = tpu.matmul %186, %187, %cst_89 {dimension_numbers = #tpu.dot_dimension_numbers<[2], [2], [1], [1], [0, 0, 0, 1, 1, 1], [0], [0]>} : vector<6x8x16xbf16>, vector<6x8x16xbf16>, vector<6x8x8xf32> -> vector<6x8x8xf32>
    "tpu.trace_stop"() : () -> ()
    %cst_90 = arith.constant 2.500000e-01 : f32
    %189 = vector.broadcast %cst_90 : f32 to vector<6x8x8xf32>
    %190 = arith.mulf %188, %189 : vector<6x8x8xf32>
    %191 = vector.shape_cast %11 : vector<8x8xf32> to vector<1x8x8xf32>
    %192 = vector.broadcast %191 : vector<1x8x8xf32> to vector<6x8x8xf32>
    %193 = arith.addf %190, %192 : vector<6x8x8xf32>
    %cst_91 = arith.constant dense<0xFF800000> : vector<6x8xf32>
    %194 = vector.multi_reduction <maximumf>, %193, %cst_91 [2] : vector<6x8x8xf32> to vector<6x8xf32>
    %195 = vector.shape_cast %194 : vector<6x8xf32> to vector<6x8x1xf32>
    %196 = vector.broadcast %195 : vector<6x8x1xf32> to vector<6x8x8xf32>
    %197 = arith.subf %193, %196 : vector<6x8x8xf32>
    %198 = math.exp %197 : vector<6x8x8xf32>
    %cst_92 = arith.constant dense<0.000000e+00> : vector<6x8xf32>
    %199 = vector.multi_reduction <add>, %198, %cst_92 [2] : vector<6x8x8xf32> to vector<6x8xf32>
    %200 = vector.shape_cast %199 : vector<6x8xf32> to vector<6x8x1xf32>
    %201 = tpu.reciprocal %200 {approx = true} : vector<6x8x1xf32> -> vector<6x8x1xf32>
    %202 = vector.broadcast %201 : vector<6x8x1xf32> to vector<6x8x8xf32>
    %203 = arith.mulf %198, %202 : vector<6x8x8xf32>
    %204 = arith.truncf %203 : vector<6x8x8xf32> to vector<6x8x8xbf16>
    %205 = arith.truncf %185 : vector<6x8x16xf32> to vector<6x8x16xbf16>
    "tpu.trace_start"() <{level = 10 : i32, message = "bqk,bkd->bqd"}> : () -> ()
    %cst_93 = arith.constant dense<0.000000e+00> : vector<6x8x16xf32>
    %206 = tpu.matmul %204, %205, %cst_93 {dimension_numbers = #tpu.dot_dimension_numbers<[2], [1], [1], [2], [0, 0, 0, 1, 1, 2], [0], [0]>} : vector<6x8x8xbf16>, vector<6x8x16xbf16>, vector<6x8x16xf32> -> vector<6x8x16xf32>
    "tpu.trace_stop"() : () -> ()
    %207 = vector.shape_cast %206 : vector<6x8x16xf32> to vector<3x2x8x16xf32>
    %208 = tpu.transpose %207, [0, 2, 1, 3] : vector<3x2x8x16xf32> -> vector<3x8x2x16xf32>
    %209 = vector.shape_cast %208 : vector<3x8x2x16xf32> to vector<24x32xf32>
    %210 = arith.truncf %209 : vector<24x32xf32> to vector<24x32xbf16>
    %c1_94 = arith.constant 1 : index
    %c0_95 = arith.constant 0 : index
    %c0_96 = arith.constant 0 : index
    %211 = vector.load %arg10[%c1_94, %c0_95, %c0_96] : memref<2x32x32xbf16, #tpu.memory_space<vmem>>, vector<1x32x32xbf16>
    %212 = vector.shape_cast %211 : vector<1x32x32xbf16> to vector<32x32xbf16>
    %cst_97 = arith.constant dense<0.000000e+00> : vector<24x32xf32>
    %213 = tpu.matmul %210, %212, %cst_97 {dimension_numbers = #tpu.dot_dimension_numbers<[1], [0], [0], [1], [0, 0, 1, 1], [], []>} : vector<24x32xbf16>, vector<32x32xbf16>, vector<24x32xf32> -> vector<24x32xf32>
    %c1_98 = arith.constant 1 : index
    %c0_99 = arith.constant 0 : index
    %c0_100 = arith.constant 0 : index
    %214 = vector.load %arg11[%c1_98, %c0_99, %c0_100] : memref<2x1x32xf32, #tpu.memory_space<vmem>>, vector<1x1x32xf32>
    %215 = vector.shape_cast %214 : vector<1x1x32xf32> to vector<1x32xf32>
    %216 = vector.broadcast %215 : vector<1x32xf32> to vector<24x32xf32>
    %217 = arith.addf %213, %216 : vector<24x32xf32>
    %218 = arith.addf %136, %217 : vector<24x32xf32>
    %cst_101 = arith.constant dense<0.000000e+00> : vector<24xf32>
    %219 = vector.multi_reduction <add>, %218, %cst_101 [1] : vector<24x32xf32> to vector<24xf32>
    %220 = vector.shape_cast %219 : vector<24xf32> to vector<24x1xf32>
    %cst_102 = arith.constant 3.200000e+01 : f32
    %221 = vector.broadcast %cst_102 : f32 to vector<24x1xf32>
    %222 = arith.divf %220, %221 : vector<24x1xf32>
    %223 = vector.broadcast %222 : vector<24x1xf32> to vector<24x32xf32>
    %224 = arith.subf %218, %223 : vector<24x32xf32>
    %225 = arith.mulf %224, %224 : vector<24x32xf32>
    %cst_103 = arith.constant dense<0.000000e+00> : vector<24xf32>
    %226 = vector.multi_reduction <add>, %225, %cst_103 [1] : vector<24x32xf32> to vector<24xf32>
    %227 = vector.shape_cast %226 : vector<24xf32> to vector<24x1xf32>
    %cst_104 = arith.constant 3.200000e+01 : f32
    %228 = vector.broadcast %cst_104 : f32 to vector<24x1xf32>
    %229 = arith.divf %227, %228 : vector<24x1xf32>
    %230 = vector.broadcast %222 : vector<24x1xf32> to vector<24x32xf32>
    %231 = arith.subf %218, %230 : vector<24x32xf32>
    %cst_105 = arith.constant 9.99999974E-6 : f32
    %232 = vector.broadcast %cst_105 : f32 to vector<24x1xf32>
    %233 = arith.addf %229, %232 : vector<24x1xf32>
    %234 = math.rsqrt %233 : vector<24x1xf32>
    %235 = vector.broadcast %234 : vector<24x1xf32> to vector<24x32xf32>
    %236 = arith.mulf %231, %235 : vector<24x32xf32>
    %237 = arith.truncf %236 : vector<24x32xf32> to vector<24x32xbf16>
    %c1_106 = arith.constant 1 : index
    %c0_107 = arith.constant 0 : index
    %c0_108 = arith.constant 0 : index
    %238 = vector.load %arg12[%c1_106, %c0_107, %c0_108] : memref<2x32x128xbf16, #tpu.memory_space<vmem>>, vector<1x32x128xbf16>
    %239 = vector.shape_cast %238 : vector<1x32x128xbf16> to vector<32x128xbf16>
    %cst_109 = arith.constant dense<0.000000e+00> : vector<24x128xf32>
    %240 = tpu.matmul %237, %239, %cst_109 {dimension_numbers = #tpu.dot_dimension_numbers<[1], [0], [0], [1], [0, 0, 1, 1], [], []>} : vector<24x32xbf16>, vector<32x128xbf16>, vector<24x128xf32> -> vector<24x128xf32>
    %c1_110 = arith.constant 1 : index
    %c0_111 = arith.constant 0 : index
    %c0_112 = arith.constant 0 : index
    %241 = vector.load %arg13[%c1_110, %c0_111, %c0_112] : memref<2x1x128xf32, #tpu.memory_space<vmem>>, vector<1x1x128xf32>
    %242 = vector.shape_cast %241 : vector<1x1x128xf32> to vector<1x128xf32>
    %243 = vector.broadcast %242 : vector<1x128xf32> to vector<24x128xf32>
    %244 = arith.addf %240, %243 : vector<24x128xf32>
    %cst_113 = arith.constant 1.702000e+00 : f32
    %245 = vector.broadcast %cst_113 : f32 to vector<24x128xf32>
    %246 = arith.mulf %245, %244 : vector<24x128xf32>
    %247 = arith.negf %246 : vector<24x128xf32>
    %248 = math.exp %247 : vector<24x128xf32>
    %cst_114 = arith.constant 1.000000e+00 : f32
    %249 = vector.broadcast %cst_114 : f32 to vector<24x128xf32>
    %250 = arith.addf %249, %248 : vector<24x128xf32>
    %251 = arith.divf %249, %250 : vector<24x128xf32>
    %252 = arith.mulf %244, %251 : vector<24x128xf32>
    %253 = arith.truncf %252 : vector<24x128xf32> to vector<24x128xbf16>
    %c1_115 = arith.constant 1 : index
    %c0_116 = arith.constant 0 : index
    %c0_117 = arith.constant 0 : index
    %254 = vector.load %arg14[%c1_115, %c0_116, %c0_117] : memref<2x128x32xbf16, #tpu.memory_space<vmem>>, vector<1x128x32xbf16>
    %255 = vector.shape_cast %254 : vector<1x128x32xbf16> to vector<128x32xbf16>
    %cst_118 = arith.constant dense<0.000000e+00> : vector<24x32xf32>
    %256 = tpu.matmul %253, %255, %cst_118 {dimension_numbers = #tpu.dot_dimension_numbers<[1], [0], [0], [1], [0, 0, 1, 1], [], []>} : vector<24x128xbf16>, vector<128x32xbf16>, vector<24x32xf32> -> vector<24x32xf32>
    %257 = arith.addf %218, %256 : vector<24x32xf32>
    %c1_119 = arith.constant 1 : index
    %c0_120 = arith.constant 0 : index
    %c0_121 = arith.constant 0 : index
    %258 = vector.load %arg15[%c1_119, %c0_120, %c0_121] : memref<2x1x32xf32, #tpu.memory_space<vmem>>, vector<1x1x32xf32>
    %259 = vector.shape_cast %258 : vector<1x1x32xf32> to vector<1x32xf32>
    %260 = vector.broadcast %259 : vector<1x32xf32> to vector<24x32xf32>
    %261 = arith.addf %257, %260 : vector<24x32xf32>
    %262 = vector.shape_cast %261 : vector<24x32xf32> to vector<3x8x32xf32>
    %c0_122 = arith.constant 0 : index
    %c0_123 = arith.constant 0 : index
    %c0_124 = arith.constant 0 : index
    %263 = vector.load %arg3[%c0_122, %c0_123, %c0_124] : memref<3x8x1xf32, #tpu.memory_space<vmem>>, vector<3x8x1xf32>
    %264 = vector.broadcast %263 : vector<3x8x1xf32> to vector<3x8x32xf32>
    %265 = arith.mulf %264, %262 : vector<3x8x32xf32>
    %cst_125 = arith.constant dense<0.000000e+00> : vector<3x32xf32>
    %266 = vector.multi_reduction <add>, %265, %cst_125 [1] : vector<3x8x32xf32> to vector<3x32xf32>
    %cst_126 = arith.constant dense<0.000000e+00> : vector<3xf32>
    %267 = vector.multi_reduction <add>, %266, %cst_126 [1] : vector<3x32xf32> to vector<3xf32>
    %268 = vector.shape_cast %267 : vector<3xf32> to vector<3x1xf32>
    %cst_127 = arith.constant 3.200000e+01 : f32
    %269 = vector.broadcast %cst_127 : f32 to vector<3x1xf32>
    %270 = arith.divf %268, %269 : vector<3x1xf32>
    %271 = vector.broadcast %270 : vector<3x1xf32> to vector<3x32xf32>
    %272 = arith.subf %266, %271 : vector<3x32xf32>
    %273 = arith.mulf %272, %272 : vector<3x32xf32>
    %cst_128 = arith.constant dense<0.000000e+00> : vector<3xf32>
    %274 = vector.multi_reduction <add>, %273, %cst_128 [1] : vector<3x32xf32> to vector<3xf32>
    %275 = vector.shape_cast %274 : vector<3xf32> to vector<3x1xf32>
    %cst_129 = arith.constant 3.200000e+01 : f32
    %276 = vector.broadcast %cst_129 : f32 to vector<3x1xf32>
    %277 = arith.divf %275, %276 : vector<3x1xf32>
    %278 = vector.broadcast %270 : vector<3x1xf32> to vector<3x32xf32>
    %279 = arith.subf %266, %278 : vector<3x32xf32>
    %cst_130 = arith.constant 9.99999974E-6 : f32
    %280 = vector.broadcast %cst_130 : f32 to vector<3x1xf32>
    %281 = arith.addf %277, %280 : vector<3x1xf32>
    %282 = math.rsqrt %281 : vector<3x1xf32>
    %283 = vector.broadcast %282 : vector<3x1xf32> to vector<3x32xf32>
    %284 = arith.mulf %279, %283 : vector<3x32xf32>
    %285 = arith.truncf %284 : vector<3x32xf32> to vector<3x32xbf16>
    %c0_131 = arith.constant 0 : index
    %c0_132 = arith.constant 0 : index
    %286 = vector.load %arg16[%c0_131, %c0_132] : memref<32x32xbf16, #tpu.memory_space<vmem>>, vector<32x32xbf16>
    %cst_133 = arith.constant dense<0.000000e+00> : vector<3x32xf32>
    %287 = tpu.matmul %285, %286, %cst_133 {dimension_numbers = #tpu.dot_dimension_numbers<[1], [0], [0], [1], [0, 0, 1, 1], [], []>} : vector<3x32xbf16>, vector<32x32xbf16>, vector<3x32xf32> -> vector<3x32xf32>
    %c0_134 = arith.constant 0 : index
    %c0_135 = arith.constant 0 : index
    %288 = vector.load %arg17[%c0_134, %c0_135] : memref<1x32xf32, #tpu.memory_space<vmem>>, vector<1x32xf32>
    %289 = vector.broadcast %288 : vector<1x32xf32> to vector<3x32xf32>
    %290 = arith.addf %287, %289 : vector<3x32xf32>
    %291 = vector.shape_cast %290 : vector<3x32xf32> to vector<3x1x32xf32>
    %c0_136 = arith.constant 0 : index
    %c0_137 = arith.constant 0 : index
    %c0_138 = arith.constant 0 : index
    %292 = vector.load %arg18[%c0_136, %c0_137, %c0_138] : memref<3x1x32xf32, #tpu.memory_space<vmem>>, vector<3x1x32xf32>
    tpu.vector_store %arg18[%c0_136, %c0_137, %c0_138], %291 {strides = array<i32>} : memref<3x1x32xf32, #tpu.memory_space<vmem>>, vector<3x1x32xf32>,
    return
  }
  func.func @transform_0(%arg0: i32) -> (i32, i32, i32) {
    %c0_i32 = arith.constant 0 : i32
    %c0_i32_0 = arith.constant 0 : i32
    %c0_i32_1 = arith.constant 0 : i32
    return %arg0, %c0_i32, %c0_i32_0 : i32, i32, i32
  }
  func.func @transform_1(%arg0: i32) -> (i32, i32) {
    %c0_i32 = arith.constant 0 : i32
    %c0_i32_0 = arith.constant 0 : i32
    %c0_i32_1 = arith.constant 0 : i32
    return %c0_i32, %c0_i32_0 : i32, i32
  }
  func.func @transform_2(%arg0: i32) -> (i32, i32, i32) {
    %c0_i32 = arith.constant 0 : i32
    %c0_i32_0 = arith.constant 0 : i32
    %c0_i32_1 = arith.constant 0 : i32
    return %arg0, %c0_i32, %c0_i32_0 : i32, i32, i32
  }
  func.func @transform_3(%arg0: i32) -> (i32, i32, i32) {
    %c0_i32 = arith.constant 0 : i32
    %c0_i32_0 = arith.constant 0 : i32
    %c0_i32_1 = arith.constant 0 : i32
    %c0_i32_2 = arith.constant 0 : i32
    return %c0_i32, %c0_i32_0, %c0_i32_1 : i32, i32, i32
  }
  func.func @transform_4(%arg0: i32) -> (i32, i32, i32) {
    %c0_i32 = arith.constant 0 : i32
    %c0_i32_0 = arith.constant 0 : i32
    %c0_i32_1 = arith.constant 0 : i32
    %c0_i32_2 = arith.constant 0 : i32
    return %c0_i32, %c0_i32_0, %c0_i32_1 : i32, i32, i32
  }
  func.func @transform_5(%arg0: i32) -> (i32, i32, i32) {
    %c0_i32 = arith.constant 0 : i32
    %c0_i32_0 = arith.constant 0 : i32
    %c0_i32_1 = arith.constant 0 : i32
    %c0_i32_2 = arith.constant 0 : i32
    return %c0_i32, %c0_i32_0, %c0_i32_1 : i32, i32, i32
  }
  func.func @transform_6(%arg0: i32) -> (i32, i32, i32) {
    %c0_i32 = arith.constant 0 : i32
    %c0_i32_0 = arith.constant 0 : i32
    %c0_i32_1 = arith.constant 0 : i32
    %c0_i32_2 = arith.constant 0 : i32
    return %c0_i32, %c0_i32_0, %c0_i32_1 : i32, i32, i32
  }
  func.func @transform_7(%arg0: i32) -> (i32, i32, i32) {
    %c0_i32 = arith.constant 0 : i32
    %c0_i32_0 = arith.constant 0 : i32
    %c0_i32_1 = arith.constant 0 : i32
    %c0_i32_2 = arith.constant 0 : i32
    return %c0_i32, %c0_i32_0, %c0_i32_1 : i32, i32, i32
  }
  func.func @transform_8(%arg0: i32) -> (i32, i32, i32) {
    %c0_i32 = arith.constant 0 : i32
    %c0_i32_0 = arith.constant 0 : i32
    %c0_i32_1 = arith.constant 0 : i32
    %c0_i32_2 = arith.constant 0 : i32
    return %c0_i32, %c0_i32_0, %c0_i32_1 : i32, i32, i32
  }
  func.func @transform_9(%arg0: i32) -> (i32, i32, i32) {
    %c0_i32 = arith.constant 0 : i32
    %c0_i32_0 = arith.constant 0 : i32
    %c0_i32_1 = arith.constant 0 : i32
    %c0_i32_2 = arith.constant 0 : i32
    return %c0_i32, %c0_i32_0, %c0_i32_1 : i32, i32, i32
  }
  func.func @transform_10(%arg0: i32) -> (i32, i32, i32) {
    %c0_i32 = arith.constant 0 : i32
    %c0_i32_0 = arith.constant 0 : i32
    %c0_i32_1 = arith.constant 0 : i32
    %c0_i32_2 = arith.constant 0 : i32
    return %c0_i32, %c0_i32_0, %c0_i32_1 : i32, i32, i32
  }
  func.func @transform_11(%arg0: i32) -> (i32, i32, i32) {
    %c0_i32 = arith.constant 0 : i32
    %c0_i32_0 = arith.constant 0 : i32
    %c0_i32_1 = arith.constant 0 : i32
    %c0_i32_2 = arith.constant 0 : i32
    return %c0_i32, %c0_i32_0, %c0_i32_1 : i32, i32, i32
  }
  func.func @transform_12(%arg0: i32) -> (i32, i32, i32) {
    %c0_i32 = arith.constant 0 : i32
    %c0_i32_0 = arith.constant 0 : i32
    %c0_i32_1 = arith.constant 0 : i32
    %c0_i32_2 = arith.constant 0 : i32
    return %c0_i32, %c0_i32_0, %c0_i32_1 : i32, i32, i32
  }
  func.func @transform_13(%arg0: i32) -> (i32, i32, i32) {
    %c0_i32 = arith.constant 0 : i32
    %c0_i32_0 = arith.constant 0 : i32
    %c0_i32_1 = arith.constant 0 : i32
    %c0_i32_2 = arith.constant 0 : i32
    return %c0_i32, %c0_i32_0, %c0_i32_1 : i32, i32, i32
  }
  func.func @transform_14(%arg0: i32) -> (i32, i32, i32) {
    %c0_i32 = arith.constant 0 : i32
    %c0_i32_0 = arith.constant 0 : i32
    %c0_i32_1 = arith.constant 0 : i32
    %c0_i32_2 = arith.constant 0 : i32
    return %c0_i32, %c0_i32_0, %c0_i32_1 : i32, i32, i32
  }
  func.func @transform_15(%arg0: i32) -> (i32, i32) {
    %c0_i32 = arith.constant 0 : i32
    %c0_i32_0 = arith.constant 0 : i32
    %c0_i32_1 = arith.constant 0 : i32
    return %c0_i32, %c0_i32_0 : i32, i32
  }
  func.func @transform_16(%arg0: i32) -> (i32, i32) {
    %c0_i32 = arith.constant 0 : i32
    %c0_i32_0 = arith.constant 0 : i32
    %c0_i32_1 = arith.constant 0 : i32
    return %c0_i32, %c0_i32_0 : i32, i32
  }
  func.func @transform_17(%arg0: i32) -> (i32, i32, i32) {
    %c0_i32 = arith.constant 0 : i32
    %c0_i32_0 = arith.constant 0 : i32
    %c0_i32_1 = arith.constant 0 : i32
    return %arg0, %c0_i32, %c0_i32_0 : i32, i32, i32
  }
}

</mosaic_0001>

<llo_original>
// kernel: text_encoder_forward.1
$region0: #{text_encoder_forward.1}
  #allocation0 [shape = 'u32[]', space=smem, size = 0x4, offset = 0x4, fixed_abs, tag = 'smem constant byte address 0x4 - core index']
  #allocation1 [shape = 'u32[144,128]{1,0:T(1,128)}', space=vmem, size = 0x12000, scoped, tag = 'internal scratch']
  %s0 = inlined_call_operand.vmem [shape: f32[6,8,32], index: 0, kind: input, shape index: {}]
  %s1 = inlined_call_operand.vmem [shape: f32[8,32], index: 1, kind: input, shape index: {}]
  %s2 = inlined_call_operand.vmem [shape: f32[6,8,1], index: 2, kind: input, shape index: {}]
  %s3 = inlined_call_operand.vmem [shape: bf16[2,32,32], index: 3, kind: input, shape index: {}]
  %s4 = inlined_call_operand.vmem [shape: f32[2,1,32], index: 4, kind: input, shape index: {}]
  %s5 = inlined_call_operand.vmem [shape: bf16[2,32,32], index: 5, kind: input, shape index: {}]
  %s6 = inlined_call_operand.hbm [shape: f32[2,1,32], index: 6, kind: input, shape index: {}]
  %s7 = inlined_call_operand.vmem [shape: bf16[2,32,32], index: 7, kind: input, shape index: {}]
  %s8 = inlined_call_operand.hbm [shape: f32[2,1,32], index: 8, kind: input, shape index: {}]
  %s9 = inlined_call_operand.vmem [shape: bf16[2,32,32], index: 9, kind: input, shape index: {}]
  %s10 = inlined_call_operand.hbm [shape: f32[2,1,32], index: 10, kind: input, shape index: {}]
  %s11 = inlined_call_operand.hbm [shape: bf16[2,32,128], index: 11, kind: input, shape index: {}]
  %s12 = inlined_call_operand.hbm [shape: f32[2,1,128], index: 12, kind: input, shape index: {}]
  %s13 = inlined_call_operand.vmem [shape: bf16[2,128,32], index: 13, kind: input, shape index: {}]
  %s14 = inlined_call_operand.hbm [shape: f32[2,1,32], index: 14, kind: input, shape index: {}]
  %s15 = inlined_call_operand.vmem [shape: bf16[32,32], index: 15, kind: input, shape index: {}]
  %s16 = inlined_call_operand.vmem [shape: f32[1,32], index: 16, kind: input, shape index: {}]
  %s17 = inlined_call_operand.vmem [shape: f32[6,1,32], index: 17, kind: output, shape index: {}]
  %s18 = sld [smem:[#allocation0]]
  $region125: #{text_encoder_forward.1} parent=0
    _
  %s20 = ssub.s32 1, %s18
  %s21 = scalar_select 0, %s20, %s18
  $region1: #{text_encoder_forward.1} parent=0
    #allocation2 [shape = 'u8[1024]{0}', space=vmem, size = 0x400, scoped, tag = 'input window, operand 6, single buffered']
    #allocation3 [shape = 's32[2]{0}', space=sflag, size = 0x8, scoped, tag = 'scoped memory for text_encoder_forward.1']
    #allocation4 [shape = 'u8[1024]{0}', space=vmem, size = 0x400, scoped, tag = 'input window, operand 8, single buffered']
    #allocation5 [shape = 's32[1]{0}', space=sflag, size = 0x4, scoped, tag = 'scoped memory for text_encoder_forward.1']
    #allocation6 [shape = 'u8[1024]{0}', space=vmem, size = 0x400, scoped, tag = 'input window, operand 10, single buffered']
    #allocation7 [shape = 'u8[16384]{0}', space=vmem, size = 0x4000, scoped, tag = 'input window, operand 11, single buffered']
    #allocation8 [shape = 's32[1]{0}', space=sflag, size = 0x4, scoped, tag = 'scoped memory for text_encoder_forward.1']
    #allocation9 [shape = 'u8[1024]{0}', space=vmem, size = 0x400, scoped, tag = 'input window, operand 12, single buffered']
    #allocation10 [shape = 'u8[1024]{0}', space=vmem, size = 0x400, scoped, tag = 'input window, operand 14, single buffered']
    #allocation11 [shape = 's32[1]{0}', space=sflag, size = 0x4, scoped, tag = 'scoped memory for text_encoder_forward.1']
    %22 = vsyncpa [#allocation3], 0
    %23 = vsyncpa [#allocation5], 0
    %24 = vsyncpa [#allocation8], 0
    %25 = vsyncpa [#allocation11], 0
    loop: start=0, step=1, limit=4
    $region2: #{text_encoder_forward.1} parent=1 // loop_pre_header
      _
    $region3: #{text_encoder_forward.1} parent=1 // loop_header
      %s27 = sphi 0, %s31
      %p28 = scmp.ge.s32.totalorder %s27, 4
      %s37 = sphi 0, %s39
      %s40 = sphi 0, %s37
      %s41 = sphi 0, %s40
      %s57 = sphi 0, %s41
      %s61 = sphi 0, %s61
      %s63 = sphi 0, %s61
      %s64 = sphi 0, %s63
      %s78 = sphi 0, %s64
      %s84 = sphi 0, %s86
      %s87 = sphi 0, %s84
      %s88 = sphi 0, %s87
      %s104 = sphi 0, %s88
      %s108 = sphi 0, %s108
      %s110 = sphi 0, %s108
      %s111 = sphi 0, %s110
      %s125 = sphi 0, %s111
      %s129 = sphi 0, %s129
      %s131 = sphi 0, %s129
      %s132 = sphi 0, %s131
      %s146 = sphi 0, %s132
      %s150 = sphi 0, %s150
      %s152 = sphi 0, %s150
      %s153 = sphi 0, %s152
      %s167 = sphi 0, %s153
      %s171 = sphi 0, %s171
      %s173 = sphi 0, %s171
      %s174 = sphi 0, %s173
      %s188 = sphi 0, %s174
      %s192 = sphi 0, %s192
      %s194 = sphi 0, %s192
      %s195 = sphi 0, %s194
      %s209 = sphi 0, %s195
      %s213 = sphi 0, %s213
      %s215 = sphi 0, %s213
      %s216 = sphi 0, %s215
      %s230 = sphi 0, %s216
      %s234 = sphi 0, %s234
      %s236 = sphi 0, %s234
      %s237 = sphi 0, %s236
      %s251 = sphi 0, %s237
      %s255 = sphi 0, %s255
      %s257 = sphi 0, %s255
      %s258 = sphi 0, %s257
      %s272 = sphi 0, %s258
      %s276 = sphi 0, %s276
      %s278 = sphi 0, %s276
      %s279 = sphi 0, %s278
      %s293 = sphi 0, %s279
      %s297 = sphi 0, %s297
      %s299 = sphi 0, %s297
      %s300 = sphi 0, %s299
      %s314 = sphi 0, %s300
      %s318 = sphi 0, %s318
      %s320 = sphi 0, %s318
      %s321 = sphi 0, %s320
      %s335 = sphi 0, %s321
      %s339 = sphi 0, %s339
      %s341 = sphi 0, %s339
      %s342 = sphi 0, %s341
      %s356 = sphi 0, %s342
      %s360 = sphi 0, %s360
      %s362 = sphi 0, %s360
      %s363 = sphi 0, %s362
      %s377 = sphi 0, %s363
      %s381 = sphi 0, %s381
      %s383 = sphi 0, %s381
      %s384 = sphi 0, %s383
      %s398 = sphi 0, %s384
      %s404 = sphi 0, %s406
      %s407 = sphi 0, %s404
      %s408 = sphi 0, %s407
      %s424 = sphi 0, %s408
    $region4: #{text_encoder_forward.1} parent=1 // loop_header_branch
      %30 = sbr.rel (%p28) target = $region8
    $region5: #{text_encoder_forward.1} parent=1 // loop_body
      %s32 = ssub.s32 %s27, 1
      %s33 = ssub.s32 %s27, 2
      %s34 = sadd.s32 %s27, 1
      %s35 = ssub.s32 %s27, %s34
      %p36 = scmp.eq.s32.totalorder %s35, 0
      %s38 = sadd.s32 %s37, 1
      %s39 = scalar_select %p36, %s37, %s38
      %p42 = pneg %p36
      %p43 = scmp.eq.s32.totalorder %s27, 1
      %p44 = por %p42, %p43
      %p45 = scmp.ne.s32.totalorder %s37, %s40
      %p46 = scmp.eq.s32.totalorder %s27, 0
      %p47 = por %p45, %p46
      %p48 = scmp.ne.s32.totalorder %s37, %s40
      %p49 = scmp.eq.s32.totalorder %s32, 1
      %p50 = por %p48, %p49
      %p51 = scmp.ne.s32.totalorder %s40, %s41
      %p52 = scmp.eq.s32.totalorder %s32, 0
      %p53 = por %p51, %p52
      %p54 = scmp.ne.s32.totalorder %s40, %s41
      %p55 = scmp.eq.s32.totalorder %s33, 1
      %p56 = por %p54, %p55
      %p58 = scmp.ne.s32.totalorder %s41, %s57
      %p59 = scmp.eq.s32.totalorder %s33, 0
      %p60 = por %p58, %p59
      %s62 = sadd.s32 %s61, 1
      %p65 = scmp.eq.s32.totalorder %s27, 1
      %p66 = scmp.ne.s32.totalorder %s61, %s63
      %p67 = scmp.eq.s32.totalorder %s27, 0
      %p68 = por %p66, %p67
      %p69 = scmp.ne.s32.totalorder %s61, %s63
      %p70 = scmp.eq.s32.totalorder %s32, 1
      %p71 = por %p69, %p70
      %p72 = scmp.ne.s32.totalorder %s63, %s64
      %p73 = scmp.eq.s32.totalorder %s32, 0
      %p74 = por %p72, %p73
      %p75 = scmp.ne.s32.totalorder %s63, %s64
      %p76 = scmp.eq.s32.totalorder %s33, 1
      %p77 = por %p75, %p76
      %p79 = scmp.ne.s32.totalorder %s64, %s78
      %p80 = scmp.eq.s32.totalorder %s33, 0
      %p81 = por %p79, %p80
      %s82 = ssub.s32 %s27, %s34
      %p83 = scmp.eq.s32.totalorder %s82, 0
      %s85 = sadd.s32 %s84, 1
      %s86 = scalar_select %p83, %s84, %s85
      %p89 = pneg %p83
      %p90 = scmp.eq.s32.totalorder %s27, 1
      %p91 = por %p89, %p90
      %p92 = scmp.ne.s32.totalorder %s84, %s87
      %p93 = scmp.eq.s32.totalorder %s27, 0
      %p94 = por %p92, %p93
      %p95 = scmp.ne.s32.totalorder %s84, %s87
      %p96 = scmp.eq.s32.totalorder %s32, 1
      %p97 = por %p95, %p96
      %p98 = scmp.ne.s32.totalorder %s87, %s88
      %p99 = scmp.eq.s32.totalorder %s32, 0
      %p100 = por %p98, %p99
      %p101 = scmp.ne.s32.totalorder %s87, %s88
      %p102 = scmp.eq.s32.totalorder %s33, 1
      %p103 = por %p101, %p102
      %p105 = scmp.ne.s32.totalorder %s88, %s104
      %p106 = scmp.eq.s32.totalorder %s33, 0
      %p107 = por %p105, %p106
      %s109 = sadd.s32 %s108, 1
      %p112 = scmp.eq.s32.totalorder %s27, 1
      %p113 = scmp.ne.s32.totalorder %s108, %s110
      %p114 = scmp.eq.s32.totalorder %s27, 0
      %p115 = por %p113, %p114
      %p116 = scmp.ne.s32.totalorder %s108, %s110
      %p117 = scmp.eq.s32.totalorder %s32, 1
      %p118 = por %p116, %p117
      %p119 = scmp.ne.s32.totalorder %s110, %s111
      %p120 = scmp.eq.s32.totalorder %s32, 0
      %p121 = por %p119, %p120
      %p122 = scmp.ne.s32.totalorder %s110, %s111
      %p123 = scmp.eq.s32.totalorder %s33, 1
      %p124 = por %p122, %p123
      %p126 = scmp.ne.s32.totalorder %s111, %s125
      %p127 = scmp.eq.s32.totalorder %s33, 0
      %p128 = por %p126, %p127
      %s130 = sadd.s32 %s129, 1
      %p133 = scmp.eq.s32.totalorder %s27, 1
      %p134 = scmp.ne.s32.totalorder %s129, %s131
      %p135 = scmp.eq.s32.totalorder %s27, 0
      %p136 = por %p134, %p135
      %p137 = scmp.ne.s32.totalorder %s129, %s131
      %p138 = scmp.eq.s32.totalorder %s32, 1
      %p139 = por %p137, %p138
      %p140 = scmp.ne.s32.totalorder %s131, %s132
      %p141 = scmp.eq.s32.totalorder %s32, 0
      %p142 = por %p140, %p141
      %p143 = scmp.ne.s32.totalorder %s131, %s132
      %p144 = scmp.eq.s32.totalorder %s33, 1
      %p145 = por %p143, %p144
      %p147 = scmp.ne.s32.totalorder %s132, %s146
      %p148 = scmp.eq.s32.totalorder %s33, 0
      %p149 = por %p147, %p148
      %s151 = sadd.s32 %s150, 1
      %p154 = scmp.eq.s32.totalorder %s27, 1
      %p155 = scmp.ne.s32.totalorder %s150, %s152
      %p156 = scmp.eq.s32.totalorder %s27, 0
      %p157 = por %p155, %p156
      %p158 = scmp.ne.s32.totalorder %s150, %s152
      %p159 = scmp.eq.s32.totalorder %s32, 1
      %p160 = por %p158, %p159
      %p161 = scmp.ne.s32.totalorder %s152, %s153
      %p162 = scmp.eq.s32.totalorder %s32, 0
      %p163 = por %p161, %p162
      %p164 = scmp.ne.s32.totalorder %s152, %s153
      %p165 = scmp.eq.s32.totalorder %s33, 1
      %p166 = por %p164, %p165
      %p168 = scmp.ne.s32.totalorder %s153, %s167
      %p169 = scmp.eq.s32.totalorder %s33, 0
      %p170 = por %p168, %p169
      %s172 = sadd.s32 %s171, 1
      %p175 = scmp.eq.s32.totalorder %s27, 1
      %p176 = scmp.ne.s32.totalorder %s171, %s173
      %p177 = scmp.eq.s32.totalorder %s27, 0
      %p178 = por %p176, %p177
      %p179 = scmp.ne.s32.totalorder %s171, %s173
      %p180 = scmp.eq.s32.totalorder %s32, 1
      %p181 = por %p179, %p180
      %p182 = scmp.ne.s32.totalorder %s173, %s174
      %p183 = scmp.eq.s32.totalorder %s32, 0
      %p184 = por %p182, %p183
      %p185 = scmp.ne.s32.totalorder %s173, %s174
      %p186 = scmp.eq.s32.totalorder %s33, 1
      %p187 = por %p185, %p186
      %p189 = scmp.ne.s32.totalorder %s174, %s188
      %p190 = scmp.eq.s32.totalorder %s33, 0
      %p191 = por %p189, %p190
      %s193 = sadd.s32 %s192, 1
      %p196 = scmp.eq.s32.totalorder %s27, 1
      %p197 = scmp.ne.s32.totalorder %s192, %s194
      %p198 = scmp.eq.s32.totalorder %s27, 0
      %p199 = por %p197, %p198
      %p200 = scmp.ne.s32.totalorder %s192, %s194
      %p201 = scmp.eq.s32.totalorder %s32, 1
      %p202 = por %p200, %p201
      %p203 = scmp.ne.s32.totalorder %s194, %s195
      %p204 = scmp.eq.s32.totalorder %s32, 0
      %p205 = por %p203, %p204
      %p206 = scmp.ne.s32.totalorder %s194, %s195
      %p207 = scmp.eq.s32.totalorder %s33, 1
      %p208 = por %p206, %p207
      %p210 = scmp.ne.s32.totalorder %s195, %s209
      %p211 = scmp.eq.s32.totalorder %s33, 0
      %p212 = por %p210, %p211
      %s214 = sadd.s32 %s213, 1
      %p217 = scmp.eq.s32.totalorder %s27, 1
      %p218 = scmp.ne.s32.totalorder %s213, %s215
      %p219 = scmp.eq.s32.totalorder %s27, 0
      %p220 = por %p218, %p219
      %p221 = scmp.ne.s32.totalorder %s213, %s215
      %p222 = scmp.eq.s32.totalorder %s32, 1
      %p223 = por %p221, %p222
      %p224 = scmp.ne.s32.totalorder %s215, %s216
      %p225 = scmp.eq.s32.totalorder %s32, 0
      %p226 = por %p224, %p225
      %p227 = scmp.ne.s32.totalorder %s215, %s216
      %p228 = scmp.eq.s32.totalorder %s33, 1
      %p229 = por %p227, %p228
      %p231 = scmp.ne.s32.totalorder %s216, %s230
      %p232 = scmp.eq.s32.totalorder %s33, 0
      %p233 = por %p231, %p232
      %s235 = sadd.s32 %s234, 1
      %p238 = scmp.eq.s32.totalorder %s27, 1
      %p239 = scmp.ne.s32.totalorder %s234, %s236
      %p240 = scmp.eq.s32.totalorder %s27, 0
      %p241 = por %p239, %p240
      %p242 = scmp.ne.s32.totalorder %s234, %s236
      %p243 = scmp.eq.s32.totalorder %s32, 1
      %p244 = por %p242, %p243
      %p245 = scmp.ne.s32.totalorder %s236, %s237
      %p246 = scmp.eq.s32.totalorder %s32, 0
      %p247 = por %p245, %p246
      %p248 = scmp.ne.s32.totalorder %s236, %s237
      %p249 = scmp.eq.s32.totalorder %s33, 1
      %p250 = por %p248, %p249
      %p252 = scmp.ne.s32.totalorder %s237, %s251
      %p253 = scmp.eq.s32.totalorder %s33, 0
      %p254 = por %p252, %p253
      %s256 = sadd.s32 %s255, 1
      %p259 = scmp.eq.s32.totalorder %s27, 1
      %p260 = scmp.ne.s32.totalorder %s255, %s257
      %p261 = scmp.eq.s32.totalorder %s27, 0
      %p262 = por %p260, %p261
      %p263 = scmp.ne.s32.totalorder %s255, %s257
      %p264 = scmp.eq.s32.totalorder %s32, 1
      %p265 = por %p263, %p264
      %p266 = scmp.ne.s32.totalorder %s257, %s258
      %p267 = scmp.eq.s32.totalorder %s32, 0
      %p268 = por %p266, %p267
      %p269 = scmp.ne.s32.totalorder %s257, %s258
      %p270 = scmp.eq.s32.totalorder %s33, 1
      %p271 = por %p269, %p270
      %p273 = scmp.ne.s32.totalorder %s258, %s272
      %p274 = scmp.eq.s32.totalorder %s33, 0
      %p275 = por %p273, %p274
      %s277 = sadd.s32 %s276, 1
      %p280 = scmp.eq.s32.totalorder %s27, 1
      %p281 = scmp.ne.s32.totalorder %s276, %s278
      %p282 = scmp.eq.s32.totalorder %s27, 0
      %p283 = por %p281, %p282
      %p284 = scmp.ne.s32.totalorder %s276, %s278
      %p285 = scmp.eq.s32.totalorder %s32, 1
      %p286 = por %p284, %p285
      %p287 = scmp.ne.s32.totalorder %s278, %s279
      %p288 = scmp.eq.s32.totalorder %s32, 0
      %p289 = por %p287, %p288
      %p290 = scmp.ne.s32.totalorder %s278, %s279
      %p291 = scmp.eq.s32.totalorder %s33, 1
      %p292 = por %p290, %p291
      %p294 = scmp.ne.s32.totalorder %s279, %s293
      %p295 = scmp.eq.s32.totalorder %s33, 0
      %p296 = por %p294, %p295
      %s298 = sadd.s32 %s297, 1
      %p301 = scmp.eq.s32.totalorder %s27, 1
      %p302 = scmp.ne.s32.totalorder %s297, %s299
      %p303 = scmp.eq.s32.totalorder %s27, 0
      %p304 = por %p302, %p303
      %p305 = scmp.ne.s32.totalorder %s297, %s299
      %p306 = scmp.eq.s32.totalorder %s32, 1
      %p307 = por %p305, %p306
      %p308 = scmp.ne.s32.totalorder %s299, %s300
      %p309 = scmp.eq.s32.totalorder %s32, 0
      %p310 = por %p308, %p309
      %p311 = scmp.ne.s32.totalorder %s299, %s300
      %p312 = scmp.eq.s32.totalorder %s33, 1
      %p313 = por %p311, %p312
      %p315 = scmp.ne.s32.totalorder %s300, %s314
      %p316 = scmp.eq.s32.totalorder %s33, 0
      %p317 = por %p315, %p316
      %s319 = sadd.s32 %s318, 1
      %p322 = scmp.eq.s32.totalorder %s27, 1
      %p323 = scmp.ne.s32.totalorder %s318, %s320
      %p324 = scmp.eq.s32.totalorder %s27, 0
      %p325 = por %p323, %p324
      %p326 = scmp.ne.s32.totalorder %s318, %s320
      %p327 = scmp.eq.s32.totalorder %s32, 1
      %p328 = por %p326, %p327
      %p329 = scmp.ne.s32.totalorder %s320, %s321
      %p330 = scmp.eq.s32.totalorder %s32, 0
      %p331 = por %p329, %p330
      %p332 = scmp.ne.s32.totalorder %s320, %s321
      %p333 = scmp.eq.s32.totalorder %s33, 1
      %p334 = por %p332, %p333
      %p336 = scmp.ne.s32.totalorder %s321, %s335
      %p337 = scmp.eq.s32.totalorder %s33, 0
      %p338 = por %p336, %p337
      %s340 = sadd.s32 %s339, 1
      %p343 = scmp.eq.s32.totalorder %s27, 1
      %p344 = scmp.ne.s32.totalorder %s339, %s341
      %p345 = scmp.eq.s32.totalorder %s27, 0
      %p346 = por %p344, %p345
      %p347 = scmp.ne.s32.totalorder %s339, %s341
      %p348 = scmp.eq.s32.totalorder %s32, 1
      %p349 = por %p347, %p348
      %p350 = scmp.ne.s32.totalorder %s341, %s342
      %p351 = scmp.eq.s32.totalorder %s32, 0
      %p352 = por %p350, %p351
      %p353 = scmp.ne.s32.totalorder %s341, %s342
      %p354 = scmp.eq.s32.totalorder %s33, 1
      %p355 = por %p353, %p354
      %p357 = scmp.ne.s32.totalorder %s342, %s356
      %p358 = scmp.eq.s32.totalorder %s33, 0
      %p359 = por %p357, %p358
      %s361 = sadd.s32 %s360, 1
      %p364 = scmp.eq.s32.totalorder %s27, 1
      %p365 = scmp.ne.s32.totalorder %s360, %s362
      %p366 = scmp.eq.s32.totalorder %s27, 0
      %p367 = por %p365, %p366
      %p368 = scmp.ne.s32.totalorder %s360, %s362
      %p369 = scmp.eq.s32.totalorder %s32, 1
      %p370 = por %p368, %p369
      %p371 = scmp.ne.s32.totalorder %s362, %s363
      %p372 = scmp.eq.s32.totalorder %s32, 0
      %p373 = por %p371, %p372
      %p374 = scmp.ne.s32.totalorder %s362, %s363
      %p375 = scmp.eq.s32.totalorder %s33, 1
      %p376 = por %p374, %p375
      %p378 = scmp.ne.s32.totalorder %s363, %s377
      %p379 = scmp.eq.s32.totalorder %s33, 0
      %p380 = por %p378, %p379
      %s382 = sadd.s32 %s381, 1
      %p385 = scmp.eq.s32.totalorder %s27, 1
      %p386 = scmp.ne.s32.totalorder %s381, %s383
      %p387 = scmp.eq.s32.totalorder %s27, 0
      %p388 = por %p386, %p387
      %p389 = scmp.ne.s32.totalorder %s381, %s383
      %p390 = scmp.eq.s32.totalorder %s32, 1
      %p391 = por %p389, %p390
      %p392 = scmp.ne.s32.totalorder %s383, %s384
      %p393 = scmp.eq.s32.totalorder %s32, 0
      %p394 = por %p392, %p393
      %p395 = scmp.ne.s32.totalorder %s383, %s384
      %p396 = scmp.eq.s32.totalorder %s33, 1
      %p397 = por %p395, %p396
      %p399 = scmp.ne.s32.totalorder %s384, %s398
      %p400 = scmp.eq.s32.totalorder %s33, 0
      %p401 = por %p399, %p400
      %s402 = ssub.s32 %s27, %s34
      %p403 = scmp.eq.s32.totalorder %s402, 0
      %s405 = sadd.s32 %s404, 1
      %s406 = scalar_select %p403, %s404, %s405
      %p409 = pneg %p403
      %p410 = scmp.eq.s32.totalorder %s27, 1
      %p411 = por %p409, %p410
      %p412 = scmp.ne.s32.totalorder %s404, %s407
      %p413 = scmp.eq.s32.totalorder %s27, 0
      %p414 = por %p412, %p413
      %p415 = scmp.ne.s32.totalorder %s404, %s407
      %p416 = scmp.eq.s32.totalorder %s32, 1
      %p417 = por %p415, %p416
      %p418 = scmp.ne.s32.totalorder %s407, %s408
      %p419 = scmp.eq.s32.totalorder %s32, 0
      %p420 = por %p418, %p419
      %p421 = scmp.ne.s32.totalorder %s407, %s408
      %p422 = scmp.eq.s32.totalorder %s33, 1
      %p423 = por %p421, %p422
      %p425 = scmp.ne.s32.totalorder %s408, %s424
      %p426 = scmp.eq.s32.totalorder %s33, 0
      %p427 = por %p425, %p426
      %p428 = scmp.le.s32.totalorder 1, %s27
      %p429 = scmp.lt.s32.totalorder %s27, 3
      %p430 = pnand %p428, %p429
      %p431 = pneg %p430
      // Predicated region
      $region9: #{text_encoder_forward.1} parent=5 // pred_check
        _
      $region10: #{text_encoder_forward.1} parent=5 // pred_check_branch
        %433 = sbr.rel (%p430) target = $region12
      $region11: #{text_encoder_forward.1} parent=5 // pred_region
        %s434 = ssub.s32 %s27, 1
        // Predicated region
        $region13: #{text_encoder_forward.1} parent=11 // pred_check
          %p435 = pneg %p74
        $region14: #{text_encoder_forward.1} parent=11 // pred_check_branch
          %437 = sbr.rel (%p435) target = $region16
        $region15: #{text_encoder_forward.1} parent=11 // pred_region
          _
        $region16: #{text_encoder_forward.1} parent=11 // pred_fallthru
          _
        // Predicated region
        $region17: #{text_encoder_forward.1} parent=11 // pred_check
          %p438 = pneg %p121
        $region18: #{text_encoder_forward.1} parent=11 // pred_check_branch
          %440 = sbr.rel (%p438) target = $region20
        $region19: #{text_encoder_forward.1} parent=11 // pred_region
          _
        $region20: #{text_encoder_forward.1} parent=11 // pred_fallthru
          _
        // Predicated region
        $region21: #{text_encoder_forward.1} parent=11 // pred_check
          %p441 = pneg %p142
        $region22: #{text_encoder_forward.1} parent=11 // pred_check_branch
          %443 = sbr.rel (%p441) target = $region24
        $region23: #{text_encoder_forward.1} parent=11 // pred_region
          _
        $region24: #{text_encoder_forward.1} parent=11 // pred_fallthru
          _
        // Predicated region
        $region25: #{text_encoder_forward.1} parent=11 // pred_check
          %p444 = pneg %p163
        $region26: #{text_encoder_forward.1} parent=11 // pred_check_branch
          %446 = sbr.rel (%p444) target = $region28
        $region27: #{text_encoder_forward.1} parent=11 // pred_region
          _
        $region28: #{text_encoder_forward.1} parent=11 // pred_fallthru
          _
        // Predicated region
        $region29: #{text_encoder_forward.1} parent=11 // pred_check
          %p447 = pneg %p184
        $region30: #{text_encoder_forward.1} parent=11 // pred_check_branch
          %449 = sbr.rel (%p447) target = $region32
        $region31: #{text_encoder_forward.1} parent=11 // pred_region
          %s451 = ssub.s32 32, 32
          %452 = vsyncadd [#allocation3], %s451
          %s453 = sshll.u32 [#allocation2], 4
          %s454 = int_to_ptr.vmem [resolvable:$true] %s453
          %459 = dma.hbm_to_vmem [thread:$0]  %s6, 32, %s454, [#allocation3], 16, 16, 1
        $region32: #{text_encoder_forward.1} parent=11 // pred_fallthru
          _
        // Predicated region
        $region33: #{text_encoder_forward.1} parent=11 // pred_check
          %p460 = pneg %p205
        $region34: #{text_encoder_forward.1} parent=11 // pred_check_branch
          %462 = sbr.rel (%p460) target = $region36
        $region35: #{text_encoder_forward.1} parent=11 // pred_region
          _
        $region36: #{text_encoder_forward.1} parent=11 // pred_fallthru
          _
        // Predicated region
        $region37: #{text_encoder_forward.1} parent=11 // pred_check
          %p463 = pneg %p226
        $region38: #{text_encoder_forward.1} parent=11 // pred_check_branch
          %465 = sbr.rel (%p463) target = $region40
        $region39: #{text_encoder_forward.1} parent=11 // pred_region
          %s467 = ssub.s32 32, 32
          %468 = vsyncadd [#allocation5], %s467
          %s469 = sshll.u32 [#allocation4], 4
          %s470 = int_to_ptr.vmem [resolvable:$true] %s469
          %475 = dma.hbm_to_vmem [thread:$0]  %s8, 32, %s470, [#allocation5], 16, 16, 1
        $region40: #{text_encoder_forward.1} parent=11 // pred_fallthru
          _
        // Predicated region
        $region41: #{text_encoder_forward.1} parent=11 // pred_check
          %p476 = pneg %p247
        $region42: #{text_encoder_forward.1} parent=11 // pred_check_branch
          %478 = sbr.rel (%p476) target = $region44
        $region43: #{text_encoder_forward.1} parent=11 // pred_region
          _
        $region44: #{text_encoder_forward.1} parent=11 // pred_fallthru
          _
        // Predicated region
        $region45: #{text_encoder_forward.1} parent=11 // pred_check
          %p479 = pneg %p268
        $region46: #{text_encoder_forward.1} parent=11 // pred_check_branch
          %481 = sbr.rel (%p479) target = $region48
        $region47: #{text_encoder_forward.1} parent=11 // pred_region
          %s483 = ssub.s32 32, 32
          %484 = vsyncadd [#allocation5], %s483
          %s485 = sshll.u32 [#allocation6], 4
          %s486 = int_to_ptr.vmem [resolvable:$true] %s485
          %491 = dma.hbm_to_vmem [thread:$0]  %s10, 32, %s486, [#allocation5], 16, 16, 1
        $region48: #{text_encoder_forward.1} parent=11 // pred_fallthru
          _
        // Predicated region
        $region49: #{text_encoder_forward.1} parent=11 // pred_check
          %p492 = pneg %p289
        $region50: #{text_encoder_forward.1} parent=11 // pred_check_branch
          %494 = sbr.rel (%p492) target = $region52
        $region51: #{text_encoder_forward.1} parent=11 // pred_region
          %s496 = ssub.s32 512, 512
          %497 = vsyncadd [#allocation8], %s496
          %s498 = sshll.u32 [#allocation7], 4
          %s499 = int_to_ptr.vmem [resolvable:$true] %s498
          %504 = dma.hbm_to_vmem [thread:$0]  %s11, 512, %s499, [#allocation8], 64, 64, 4
        $region52: #{text_encoder_forward.1} parent=11 // pred_fallthru
          _
        // Predicated region
        $region53: #{text_encoder_forward.1} parent=11 // pred_check
          %p505 = pneg %p310
        $region54: #{text_encoder_forward.1} parent=11 // pred_check_branch
          %507 = sbr.rel (%p505) target = $region56
        $region55: #{text_encoder_forward.1} parent=11 // pred_region
          %s509 = ssub.s32 32, 32
          %510 = vsyncadd [#allocation8], %s509
          %s511 = sshll.u32 [#allocation9], 4
          %s512 = int_to_ptr.vmem [resolvable:$true] %s511
          %517 = dma.hbm_to_vmem [thread:$0]  %s12, 32, %s512, [#allocation8], 16, 16, 1
        $region56: #{text_encoder_forward.1} parent=11 // pred_fallthru
          _
        // Predicated region
        $region57: #{text_encoder_forward.1} parent=11 // pred_check
          %p518 = pneg %p331
        $region58: #{text_encoder_forward.1} parent=11 // pred_check_branch
          %520 = sbr.rel (%p518) target = $region60
        $region59: #{text_encoder_forward.1} parent=11 // pred_region
          _
        $region60: #{text_encoder_forward.1} parent=11 // pred_fallthru
          _
        // Predicated region
        $region61: #{text_encoder_forward.1} parent=11 // pred_check
          %p521 = pneg %p352
        $region62: #{text_encoder_forward.1} parent=11 // pred_check_branch
          %523 = sbr.rel (%p521) target = $region64
        $region63: #{text_encoder_forward.1} parent=11 // pred_region
          %s525 = ssub.s32 32, 32
          %526 = vsyncadd [#allocation11], %s525
          %s527 = sshll.u32 [#allocation10], 4
          %s528 = int_to_ptr.vmem [resolvable:$true] %s527
          %533 = dma.hbm_to_vmem [thread:$0]  %s14, 32, %s528, [#allocation11], 16, 16, 1
        $region64: #{text_encoder_forward.1} parent=11 // pred_fallthru
          _
        // Predicated region
        $region65: #{text_encoder_forward.1} parent=11 // pred_check
          %p534 = pneg %p373
        $region66: #{text_encoder_forward.1} parent=11 // pred_check_branch
          %536 = sbr.rel (%p534) target = $region68
        $region67: #{text_encoder_forward.1} parent=11 // pred_region
          _
        $region68: #{text_encoder_forward.1} parent=11 // pred_fallthru
          _
        // Predicated region
        $region69: #{text_encoder_forward.1} parent=11 // pred_check
          %p537 = pneg %p394
        $region70: #{text_encoder_forward.1} parent=11 // pred_check_branch
          %539 = sbr.rel (%p537) target = $region72
        $region71: #{text_encoder_forward.1} parent=11 // pred_region
          _
        $region72: #{text_encoder_forward.1} parent=11 // pred_fallthru
          _
      $region12: #{text_encoder_forward.1} parent=5 // pred_fallthru
        _
      %p540 = scmp.lt.s32.totalorder %s27, 2
      // Predicated region
      $region73: #{text_encoder_forward.1} parent=5 // pred_check
        %p541 = pneg %p540
      $region74: #{text_encoder_forward.1} parent=5 // pred_check_branch
        %543 = sbr.rel (%p541) target = $region76
      $region75: #{text_encoder_forward.1} parent=5 // pred_region
        // Predicated region
        $region77: #{text_encoder_forward.1} parent=75 // pred_check
          %p544 = pneg %p47
        $region78: #{text_encoder_forward.1} parent=75 // pred_check_branch
          %546 = sbr.rel (%p544) target = $region80
        $region79: #{text_encoder_forward.1} parent=75 // pred_region
          %s547 = smul.u32 3, %s27
          %p548 = scmp.lt.s32.totalorder %s547, 5
          %s549 = scalar_select %p548, %s547, 5
          %s550 = smul.addr %s549, 8
          %s551 = scalar_lea.vmem %s0, %s550
          %s552 = smul.u32 3, %s27
        $region80: #{text_encoder_forward.1} parent=75 // pred_fallthru
          _
        // Predicated region
        $region81: #{text_encoder_forward.1} parent=75 // pred_check
          %p553 = pneg %p94
        $region82: #{text_encoder_forward.1} parent=75 // pred_check_branch
          %555 = sbr.rel (%p553) target = $region84
        $region83: #{text_encoder_forward.1} parent=75 // pred_region
          %s556 = smul.u32 3, %s27
          %p557 = scmp.lt.s32.totalorder %s556, 5
          %s558 = scalar_select %p557, %s556, 5
          %s559 = smul.addr %s558, 8
          %s560 = scalar_lea.vmem %s2, %s559
          %s561 = smul.u32 3, %s27
        $region84: #{text_encoder_forward.1} parent=75 // pred_fallthru
          _
      $region76: #{text_encoder_forward.1} parent=5 // pred_fallthru
        _
      %p562 = scmp.le.s32.totalorder 1, %s27
      %p563 = scmp.lt.s32.totalorder %s27, 3
      %p564 = pnand %p562, %p563
      %p565 = pneg %p564
      // Predicated region
      $region85: #{text_encoder_forward.1} parent=5 // pred_check
        _
      $region86: #{text_encoder_forward.1} parent=5 // pred_check_branch
        %567 = sbr.rel (%p564) target = $region88
      $region87: #{text_encoder_forward.1} parent=5 // pred_region
        %s568 = ssub.s32 %s27, 1
        // Predicated region
        $region89: #{text_encoder_forward.1} parent=87 // pred_check
          %p569 = pneg %p184
        $region90: #{text_encoder_forward.1} parent=87 // pred_check_branch
          %571 = sbr.rel (%p569) target = $region92
        $region91: #{text_encoder_forward.1} parent=87 // pred_region
          %572 = dma.done [#allocation3], 32
        $region92: #{text_encoder_forward.1} parent=87 // pred_fallthru
          _
        // Predicated region
        $region93: #{text_encoder_forward.1} parent=87 // pred_check
          %p573 = pneg %p226
        $region94: #{text_encoder_forward.1} parent=87 // pred_check_branch
          %575 = sbr.rel (%p573) target = $region96
        $region95: #{text_encoder_forward.1} parent=87 // pred_region
          %576 = dma.done [#allocation5], 32
        $region96: #{text_encoder_forward.1} parent=87 // pred_fallthru
          _
        // Predicated region
        $region97: #{text_encoder_forward.1} parent=87 // pred_check
          %p577 = pneg %p268
        $region98: #{text_encoder_forward.1} parent=87 // pred_check_branch
          %579 = sbr.rel (%p577) target = $region100
        $region99: #{text_encoder_forward.1} parent=87 // pred_region
          %580 = dma.done [#allocation5], 32
        $region100: #{text_encoder_forward.1} parent=87 // pred_fallthru
          _
        // Predicated region
        $region101: #{text_encoder_forward.1} parent=87 // pred_check
          %p581 = pneg %p289
        $region102: #{text_encoder_forward.1} parent=87 // pred_check_branch
          %583 = sbr.rel (%p581) target = $region104
        $region103: #{text_encoder_forward.1} parent=87 // pred_region
          %584 = dma.done [#allocation8], 512
        $region104: #{text_encoder_forward.1} parent=87 // pred_fallthru
          _
        // Predicated region
        $region105: #{text_encoder_forward.1} parent=87 // pred_check
          %p585 = pneg %p310
        $region106: #{text_encoder_forward.1} parent=87 // pred_check_branch
          %587 = sbr.rel (%p585) target = $region108
        $region107: #{text_encoder_forward.1} parent=87 // pred_region
          %588 = dma.done [#allocation8], 32
        $region108: #{text_encoder_forward.1} parent=87 // pred_fallthru
          _
        // Predicated region
        $region109: #{text_encoder_forward.1} parent=87 // pred_check
          %p589 = pneg %p352
        $region110: #{text_encoder_forward.1} parent=87 // pred_check_branch
          %591 = sbr.rel (%p589) target = $region112
        $region111: #{text_encoder_forward.1} parent=87 // pred_region
          %592 = dma.done [#allocation11], 32
        $region112: #{text_encoder_forward.1} parent=87 // pred_fallthru
          _
        %s593 = smul.u32 3, %s32
        %p594 = scmp.lt.s32.totalorder %s593, 5
        %s595 = scalar_select %p594, %s593, 5
        %s596 = smul.addr %s595, 8
        %s597 = scalar_lea.vmem %s0, %s596
        %p598 = pneg %p53
        %p599 = pneg %p50
        %p600 = pneg %p74
        %p601 = pneg %p71
        %s602 = smul.u32 3, %s32
        %p603 = scmp.lt.s32.totalorder %s602, 5
        %s604 = scalar_select %p603, %s602, 5
        %s605 = smul.addr %s604, 8
        %s606 = scalar_lea.vmem %s2, %s605
        %p607 = pneg %p100
        %p608 = pneg %p97
        %p609 = pneg %p121
        %p610 = pneg %p118
        %p611 = pneg %p142
        %p612 = pneg %p139
        %p613 = pneg %p163
        %p614 = pneg %p160
        %p615 = pneg %p184
        %p616 = pneg %p181
        %p617 = pneg %p205
        %p618 = pneg %p202
        %p619 = pneg %p226
        %p620 = pneg %p223
        %p621 = pneg %p247
        %p622 = pneg %p244
        %p623 = pneg %p268
        %p624 = pneg %p265
        %p625 = pneg %p289
        %p626 = pneg %p286
        %p627 = pneg %p310
        %p628 = pneg %p307
        %p629 = pneg %p331
        %p630 = pneg %p328
        %p631 = pneg %p352
        %p632 = pneg %p349
        %p633 = pneg %p373
        %p634 = pneg %p370
        %p635 = pneg %p394
        %p636 = pneg %p391
        %p637 = pneg %p420
        %p638 = pneg %p417
        %s639 = smul.u32 3, %s32
        %p640 = scmp.lt.s32.totalorder %s639, 5
        %s641 = scalar_select %p640, %s639, 5
        %s642 = scalar_lea.vmem %s17, %s641
        %s643 = smul.u32 3, %s32
        %p644 = scmp.lt.s32.totalorder %s643, 5
        %s645 = scalar_select %p644, %s643, 5
        %s646 = smul.addr %s645, 8
        %s647 = scalar_lea.vmem %s0, %s646
        %s648 = smul.u32 3, %s32
        %s649 = smul.u32 3, %s32
        %p650 = scmp.lt.s32.totalorder %s649, 5
        %s651 = scalar_select %p650, %s649, 5
        %s652 = smul.addr %s651, 8
        %s653 = scalar_lea.vmem %s2, %s652
        %s654 = smul.u32 3, %s32
        %s655 = smul.u32 3, %s32
        %p656 = scmp.lt.s32.totalorder %s655, 5
        %s657 = scalar_select %p656, %s655, 5
        %s658 = scalar_lea.vmem %s17, %s657
        %s659 = smul.u32 3, %s32
        %v661 = vld [vmem:[%s647] sm:$0xff]
        %v662 = vld [vmem:[%s647 + $0x8] sm:$0xff]
        %v663 = vld [vmem:[%s647 + $0x10] sm:$0xff]
        %v664 = vld [vmem:[%s1] sm:$0xff]
        %v665 = vadd.f32 %v661, %v664
        %v666 = vadd.f32 %v662, %v664
        %v667 = vadd.f32 %v663, %v664
        %v668 = vlaneseq
        %v669 = vshrl.u32 %v668, 7
        %v670 = vlaneseq
        %v671 = vand.u32 %v670, 127
        %vm672 = vcmp.gt.s32.totalorder %v671, %v669
        %v673 = vsel %vm672, -1e+30, 0.0
        %vm674 = vcmask 261120
        %v675 = vsel %vm674, %v665, 0.0
        %676 = vadd.xlane.f32.xlu0 %v675
        %v677 = vpop.xlane.xlu0 %676
        %v678 = vsel %vm674, %v666, 0.0
        %679 = vadd.xlane.f32.xlu0 %v678
        %v680 = vpop.xlane.xlu0 %679
        %v681 = vsel %vm674, %v667, 0.0
        %682 = vadd.xlane.f32.xlu0 %v681
        %v683 = vpop.xlane.xlu0 %682
        %v684 = vrcp.pop 32.0
        %v685 = vmul.f32 %v677, %v684
        %v686 = vmul.f32 %v680, %v684
        %v687 = vmul.f32 %v683, %v684
        %v688 = vsub.f32 %v665, %v685
        %v689 = vsub.f32 %v666, %v686
        %v690 = vsub.f32 %v667, %v687
        %v691 = vmul.f32 %v688, %v688
        %v692 = vmul.f32 %v689, %v689
        %v693 = vmul.f32 %v690, %v690
        %v694 = vsel %vm674, %v691, 0.0
        %695 = vadd.xlane.f32.xlu0 %v694
        %v696 = vpop.xlane.xlu0 %695
        %v697 = vsel %vm674, %v692, 0.0
        %698 = vadd.xlane.f32.xlu0 %v697
        %v699 = vpop.xlane.xlu0 %698
        %v700 = vsel %vm674, %v693, 0.0
        %701 = vadd.xlane.f32.xlu0 %v700
        %v702 = vpop.xlane.xlu0 %701
        %v703 = vmul.f32 %v696, %v684
        %v704 = vmul.f32 %v699, %v684
        %v705 = vmul.f32 %v702, %v684
        %v706 = vadd.f32 %v703, 1e-05
        %v707 = vadd.f32 %v704, 1e-05
        %v708 = vadd.f32 %v705, 1e-05
        %v709 = vrsqrt.pop %v706
        %v710 = vrsqrt.pop %v707
        %v711 = vrsqrt.pop %v708
        %v712 = vmul.f32 %v688, %v709
        %v713 = vmul.f32 %v689, %v710
        %v714 = vmul.f32 %v690, %v711
        %v715 = vpack.c.bf16 %v713, %v712
        %v716 = vpack.c.bf16 %v714, %v714
        %v717 = vld [vmem:[%s3] sm:$0xf]
        %v718 = vld [vmem:[%s3 + $0x4] sm:$0xf]
        %v719 = vld [vmem:[%s3 + $0x8] sm:$0xf]
        %v720 = vld [vmem:[%s3 + $0xc] sm:$0xf]
        %v721 = vld [vmem:[%s4] sm:$0x1]
        %v723 = vlaneseq
        %v724 = vshrl.u32 %v723, 7
        %v725 = vsub.s32 0, %v724
        %v726 = vrot.slane %v721, %v725
        %v732 = vunpack.c.l.b16 %v717
        %v733 = vunpack.c.l.b16 %v718
        %v734 = vunpack.c.l.b16 %v719
        %v735 = vunpack.c.l.b16 %v720
        %v736 = vpack.c.b16 %v733, %v732
        %v737 = vpack.c.b16 %v735, %v734
        %v741 = vsel %vm674, %v715, 0
        %v744 = vsel %vm674, %v716, 0
        %746 = vmatprep.subr.bf16.mxu0 0
        %747 = vmatpush1.bf16.msra.mxu0 0
        %748 = vmatprep.subr.bf16.mxu0 0
        %749 = vmatpush1.bf16.msra.mxu0 0
        %750 = vmatprep.subr.bf16.mxu0 0
        %751 = vmatpush1.bf16.msra.mxu0 0
        %752 = vmatprep.subr.bf16.mxu0 0
        %753 = vmatpush1.bf16.msra.mxu0 0
        %754 = vmatprep.subr.bf16.mxu0 0
        %755 = vmatpush1.bf16.msra.mxu0 0
        %756 = vmatprep.subr.bf16.mxu0 0
        %757 = vmatpush1.bf16.msra.mxu0 0
        %758 = vmatprep.subr.bf16.mxu0 0
        %759 = vmatpush1.bf16.msra.mxu0 %v737
        %760 = vmatprep.subr.bf16.mxu0 0
        %761 = vmatpush1.bf16.msra.mxu0 %v736
        %762 = vmatprep.subr.bf16.mxu0 0
        %763 = vmatpush2.bf16.msra.mxu0 0
        %764 = vmatprep.subr.bf16.mxu0 0
        %765 = vmatpush2.bf16.msra.mxu0 0
        %766 = vmatprep.subr.bf16.mxu0 0
        %767 = vmatpush2.bf16.msra.mxu0 0
        %768 = vmatprep.subr.bf16.mxu0 0
        %769 = vmatpush2.bf16.msra.mxu0 0
        %770 = vmatprep.subr.bf16.mxu0 0
        %771 = vmatpush2.bf16.msra.mxu0 0
        %772 = vmatprep.subr.bf16.mxu0 0
        %773 = vmatpush2.bf16.msra.mxu0 0
        %774 = vmatprep.subr.bf16.mxu0 0
        %775 = vmatpush2.bf16.msra.mxu0 0
        %776 = vmatprep.subr.bf16.mxu0 0
        %777 = vmatpush2.bf16.msra.mxu0 0
        %778 = vmatprep.mubr.bf16.mxu0 0
        %779 = vmatmul.mubr.bf16.gmra.mxu0 %v741
        %v780 = vpop.f32.mrf.mxu0
        %v781 = vadd.f32 %v726, %v780
        %v782 = vpop.f32.mrf.mxu0
        %v783 = vpop.f32.mrf.mxu0
        %v784 = vadd.f32 %v726, %v783
        %v785 = vpop.f32.mrf.mxu0
        %786 = vmatprep.mubr.bf16.mxu0 0
        %787 = vmatmul.mubr.bf16.gmra.mxu0 %v744
        %v788 = vpop.f32.mrf.mxu0
        %v789 = vadd.f32 %v726, %v788
        %v790 = vpop.f32.mrf.mxu0
        %v791 = vpop.f32.mrf.mxu0
        %v792 = vpop.f32.mrf.mxu0
        %793 = vdwg.mxu0
        %v794 = vld [vmem:[%s5] sm:$0xf]
        %v795 = vld [vmem:[%s5 + $0x4] sm:$0xf]
        %v796 = vld [vmem:[%s5 + $0x8] sm:$0xf]
        %v797 = vld [vmem:[%s5 + $0xc] sm:$0xf]
        %v798 = vld [vmem:[#allocation2] sm:$0x1]
        %v800 = vlaneseq
        %v801 = vshrl.u32 %v800, 7
        %v802 = vsub.s32 0, %v801
        %v803 = vrot.slane %v798, %v802
        %v809 = vunpack.c.l.b16 %v794
        %v810 = vunpack.c.l.b16 %v795
        %v811 = vunpack.c.l.b16 %v796
        %v812 = vunpack.c.l.b16 %v797
        %v813 = vpack.c.b16 %v810, %v809
        %v814 = vpack.c.b16 %v812, %v811
        %817 = vmatprep.subr.bf16.mxu0 0
        %818 = vmatpush1.bf16.msra.mxu0 0
        %819 = vmatprep.subr.bf16.mxu0 0
        %820 = vmatpush1.bf16.msra.mxu0 0
        %821 = vmatprep.subr.bf16.mxu0 0
        %822 = vmatpush1.bf16.msra.mxu0 0
        %823 = vmatprep.subr.bf16.mxu0 0
        %824 = vmatpush1.bf16.msra.mxu0 0
        %825 = vmatprep.subr.bf16.mxu0 0
        %826 = vmatpush1.bf16.msra.mxu0 0
        %827 = vmatprep.subr.bf16.mxu0 0
        %828 = vmatpush1.bf16.msra.mxu0 0
        %829 = vmatprep.subr.bf16.mxu0 0
        %830 = vmatpush1.bf16.msra.mxu0 %v814
        %831 = vmatprep.subr.bf16.mxu0 0
        %832 = vmatpush1.bf16.msra.mxu0 %v813
        %833 = vmatprep.subr.bf16.mxu0 0
        %834 = vmatpush2.bf16.msra.mxu0 0
        %835 = vmatprep.subr.bf16.mxu0 0
        %836 = vmatpush2.bf16.msra.mxu0 0
        %837 = vmatprep.subr.bf16.mxu0 0
        %838 = vmatpush2.bf16.msra.mxu0 0
        %839 = vmatprep.subr.bf16.mxu0 0
        %840 = vmatpush2.bf16.msra.mxu0 0
        %841 = vmatprep.subr.bf16.mxu0 0
        %842 = vmatpush2.bf16.msra.mxu0 0
        %843 = vmatprep.subr.bf16.mxu0 0
        %844 = vmatpush2.bf16.msra.mxu0 0
        %845 = vmatprep.subr.bf16.mxu0 0
        %846 = vmatpush2.bf16.msra.mxu0 0
        %847 = vmatprep.subr.bf16.mxu0 0
        %848 = vmatpush2.bf16.msra.mxu0 0
        %849 = vmatprep.mubr.bf16.mxu0 0
        %850 = vmatmul.mubr.bf16.gmra.mxu0 %v741
        %v851 = vpop.f32.mrf.mxu0
        %v852 = vadd.f32 %v803, %v851
        %v853 = vpop.f32.mrf.mxu0
        %v854 = vpop.f32.mrf.mxu0
        %v855 = vadd.f32 %v803, %v854
        %v856 = vpop.f32.mrf.mxu0
        %857 = vmatprep.mubr.bf16.mxu0 0
        %858 = vmatmul.mubr.bf16.gmra.mxu0 %v744
        %v859 = vpop.f32.mrf.mxu0
        %v860 = vadd.f32 %v803, %v859
        %v861 = vpop.f32.mrf.mxu0
        %v862 = vpop.f32.mrf.mxu0
        %v863 = vpop.f32.mrf.mxu0
        %864 = vdwg.mxu0
        %v865 = vld [vmem:[%s7] sm:$0xf]
        %v866 = vld [vmem:[%s7 + $0x4] sm:$0xf]
        %v867 = vld [vmem:[%s7 + $0x8] sm:$0xf]
        %v868 = vld [vmem:[%s7 + $0xc] sm:$0xf]
        %v869 = vld [vmem:[#allocation4] sm:$0x1]
        %v871 = vlaneseq
        %v872 = vshrl.u32 %v871, 7
        %v873 = vsub.s32 0, %v872
        %v874 = vrot.slane %v869, %v873
        %v880 = vunpack.c.l.b16 %v865
        %v881 = vunpack.c.l.b16 %v866
        %v882 = vunpack.c.l.b16 %v867
        %v883 = vunpack.c.l.b16 %v868
        %v884 = vpack.c.b16 %v881, %v880
        %v885 = vpack.c.b16 %v883, %v882
        %888 = vmatprep.subr.bf16.mxu0 0
        %889 = vmatpush1.bf16.msra.mxu0 0
        %890 = vmatprep.subr.bf16.mxu0 0
        %891 = vmatpush1.bf16.msra.mxu0 0
        %892 = vmatprep.subr.bf16.mxu0 0
        %893 = vmatpush1.bf16.msra.mxu0 0
        %894 = vmatprep.subr.bf16.mxu0 0
        %895 = vmatpush1.bf16.msra.mxu0 0
        %896 = vmatprep.subr.bf16.mxu0 0
        %897 = vmatpush1.bf16.msra.mxu0 0
        %898 = vmatprep.subr.bf16.mxu0 0
        %899 = vmatpush1.bf16.msra.mxu0 0
        %900 = vmatprep.subr.bf16.mxu0 0
        %901 = vmatpush1.bf16.msra.mxu0 %v885
        %902 = vmatprep.subr.bf16.mxu0 0
        %903 = vmatpush1.bf16.msra.mxu0 %v884
        %904 = vmatprep.subr.bf16.mxu0 0
        %905 = vmatpush2.bf16.msra.mxu0 0
        %906 = vmatprep.subr.bf16.mxu0 0
        %907 = vmatpush2.bf16.msra.mxu0 0
        %908 = vmatprep.subr.bf16.mxu0 0
        %909 = vmatpush2.bf16.msra.mxu0 0
        %910 = vmatprep.subr.bf16.mxu0 0
        %911 = vmatpush2.bf16.msra.mxu0 0
        %912 = vmatprep.subr.bf16.mxu0 0
        %913 = vmatpush2.bf16.msra.mxu0 0
        %914 = vmatprep.subr.bf16.mxu0 0
        %915 = vmatpush2.bf16.msra.mxu0 0
        %916 = vmatprep.subr.bf16.mxu0 0
        %917 = vmatpush2.bf16.msra.mxu0 0
        %918 = vmatprep.subr.bf16.mxu0 0
        %919 = vmatpush2.bf16.msra.mxu0 0
        %920 = vmatprep.mubr.bf16.mxu0 0
        %921 = vmatmul.mubr.bf16.gmra.mxu0 %v741
        %v922 = vpop.f32.mrf.mxu0
        %v923 = vadd.f32 %v874, %v922
        %v924 = vpop.f32.mrf.mxu0
        %v925 = vpop.f32.mrf.mxu0
        %v926 = vadd.f32 %v874, %v925
        %v927 = vpop.f32.mrf.mxu0
        %928 = vmatprep.mubr.bf16.mxu0 0
        %929 = vmatmul.mubr.bf16.gmra.mxu0 %v744
        %v930 = vpop.f32.mrf.mxu0
        %v931 = vadd.f32 %v874, %v930
        %v932 = vpop.f32.mrf.mxu0
        %v933 = vpop.f32.mrf.mxu0
        %v934 = vpop.f32.mrf.mxu0
        %935 = vdwg.mxu0
        %939 = vrot.lane.b32.xlu0 %v781, 112
        %v940 = vpop.permute.xlu0 %939
        %941 = vrot.lane.b32.xlu0 %v784, 112
        %v942 = vpop.permute.xlu0 %941
        %943 = vrot.lane.b32.xlu0 %v789, 112
        %v944 = vpop.permute.xlu0 %943
        %v948 = vcombine.high %v781, 0.0
        %v950 = vunpack.c.l.s4 1983009808
        %v951 = vunpack.c.0.s8 %v950
        %v952 = vlaneseq
        %v953 = vshrl.u32 %v952, 7
        %v954 = vsub.s32 %v951, %v953
        %v955 = vrot.slane %v781, %v954
        %v957 = vunpack.c.l.s4 1983009808
        %v958 = vunpack.c.0.s8 %v957
        %v959 = vlaneseq
        %v960 = vshrl.u32 %v959, 7
        %v961 = vsub.s32 %v958, %v960
        %v962 = vrot.slane %v948, %v961
        %v963 = vcombine.high %v940, 0.0
        %v965 = vunpack.c.l.s4 1983009808
        %v966 = vunpack.c.0.s8 %v965
        %v967 = vlaneseq
        %v968 = vshrl.u32 %v967, 7
        %v969 = vsub.s32 %v966, %v968
        %v970 = vrot.slane %v940, %v969
        %v972 = vunpack.c.l.s4 1983009808
        %v973 = vunpack.c.0.s8 %v972
        %v974 = vlaneseq
        %v975 = vshrl.u32 %v974, 7
        %v976 = vsub.s32 %v973, %v975
        %v977 = vrot.slane %v963, %v976
        %v978 = vcombine.low %v955, %v970
        %v979 = vcombine.high %v955, %v970
        %v981 = vunpack.c.l.s4 1934713408
        %v982 = vunpack.c.0.s8 %v981
        %v983 = vlaneseq
        %v984 = vshrl.u32 %v983, 7
        %v985 = vsub.s32 %v982, %v984
        %v986 = vrot.slane %v978, %v985
        %v988 = vunpack.c.l.s4 1934713408
        %v989 = vunpack.c.0.s8 %v988
        %v990 = vlaneseq
        %v991 = vshrl.u32 %v990, 7
        %v992 = vsub.s32 %v989, %v991
        %v993 = vrot.slane %v979, %v992
        %v994 = vcombine.low %v962, %v977
        %v995 = vcombine.high %v962, %v977
        %v997 = vunpack.c.l.s4 1934713408
        %v998 = vunpack.c.0.s8 %v997
        %v999 = vlaneseq
        %v1000 = vshrl.u32 %v999, 7
        %v1001 = vsub.s32 %v998, %v1000
        %v1002 = vrot.slane %v994, %v1001
        %v1004 = vunpack.c.l.s4 1934713408
        %v1005 = vunpack.c.0.s8 %v1004
        %v1006 = vlaneseq
        %v1007 = vshrl.u32 %v1006, 7
        %v1008 = vsub.s32 %v1005, %v1007
        %v1009 = vrot.slane %v995, %v1008
        %v1010 = vcombine.high %v986, 0.0
        %v1011 = vcombine.high %v993, 0.0
        %v1012 = vcombine.high %v1002, 0.0
        %v1013 = vcombine.high %v1009, 0.0
        %v1014 = vcombine.high %v784, 0.0
        %v1016 = vunpack.c.l.s4 1983009808
        %v1017 = vunpack.c.0.s8 %v1016
        %v1018 = vlaneseq
        %v1019 = vshrl.u32 %v1018, 7
        %v1020 = vsub.s32 %v1017, %v1019
        %v1021 = vrot.slane %v784, %v1020
        %v1023 = vunpack.c.l.s4 1983009808
        %v1024 = vunpack.c.0.s8 %v1023
        %v1025 = vlaneseq
        %v1026 = vshrl.u32 %v1025, 7
        %v1027 = vsub.s32 %v1024, %v1026
        %v1028 = vrot.slane %v1014, %v1027
        %v1029 = vcombine.high %v942, 0.0
        %v1031 = vunpack.c.l.s4 1983009808
        %v1032 = vunpack.c.0.s8 %v1031
        %v1033 = vlaneseq
        %v1034 = vshrl.u32 %v1033, 7
        %v1035 = vsub.s32 %v1032, %v1034
        %v1036 = vrot.slane %v942, %v1035
        %v1038 = vunpack.c.l.s4 1983009808
        %v1039 = vunpack.c.0.s8 %v1038
        %v1040 = vlaneseq
        %v1041 = vshrl.u32 %v1040, 7
        %v1042 = vsub.s32 %v1039, %v1041
        %v1043 = vrot.slane %v1029, %v1042
        %v1044 = vcombine.low %v1021, %v1036
        %v1045 = vcombine.high %v1021, %v1036
        %v1047 = vunpack.c.l.s4 1934713408
        %v1048 = vunpack.c.0.s8 %v1047
        %v1049 = vlaneseq
        %v1050 = vshrl.u32 %v1049, 7
        %v1051 = vsub.s32 %v1048, %v1050
        %v1052 = vrot.slane %v1044, %v1051
        %v1054 = vunpack.c.l.s4 1934713408
        %v1055 = vunpack.c.0.s8 %v1054
        %v1056 = vlaneseq
        %v1057 = vshrl.u32 %v1056, 7
        %v1058 = vsub.s32 %v1055, %v1057
        %v1059 = vrot.slane %v1045, %v1058
        %v1060 = vcombine.low %v1028, %v1043
        %v1061 = vcombine.high %v1028, %v1043
        %v1063 = vunpack.c.l.s4 1934713408
        %v1064 = vunpack.c.0.s8 %v1063
        %v1065 = vlaneseq
        %v1066 = vshrl.u32 %v1065, 7
        %v1067 = vsub.s32 %v1064, %v1066
        %v1068 = vrot.slane %v1060, %v1067
        %v1070 = vunpack.c.l.s4 1934713408
        %v1071 = vunpack.c.0.s8 %v1070
        %v1072 = vlaneseq
        %v1073 = vshrl.u32 %v1072, 7
        %v1074 = vsub.s32 %v1071, %v1073
        %v1075 = vrot.slane %v1061, %v1074
        %v1076 = vcombine.high %v1052, 0.0
        %v1077 = vcombine.high %v1059, 0.0
        %v1078 = vcombine.high %v1068, 0.0
        %v1079 = vcombine.high %v1075, 0.0
        %v1080 = vcombine.high %v789, 0.0
        %v1082 = vunpack.c.l.s4 1983009808
        %v1083 = vunpack.c.0.s8 %v1082
        %v1084 = vlaneseq
        %v1085 = vshrl.u32 %v1084, 7
        %v1086 = vsub.s32 %v1083, %v1085
        %v1087 = vrot.slane %v789, %v1086
        %v1089 = vunpack.c.l.s4 1983009808
        %v1090 = vunpack.c.0.s8 %v1089
        %v1091 = vlaneseq
        %v1092 = vshrl.u32 %v1091, 7
        %v1093 = vsub.s32 %v1090, %v1092
        %v1094 = vrot.slane %v1080, %v1093
        %v1095 = vcombine.high %v944, 0.0
        %v1097 = vunpack.c.l.s4 1983009808
        %v1098 = vunpack.c.0.s8 %v1097
        %v1099 = vlaneseq
        %v1100 = vshrl.u32 %v1099, 7
        %v1101 = vsub.s32 %v1098, %v1100
        %v1102 = vrot.slane %v944, %v1101
        %v1104 = vunpack.c.l.s4 1983009808
        %v1105 = vunpack.c.0.s8 %v1104
        %v1106 = vlaneseq
        %v1107 = vshrl.u32 %v1106, 7
        %v1108 = vsub.s32 %v1105, %v1107
        %v1109 = vrot.slane %v1095, %v1108
        %v1110 = vcombine.low %v1087, %v1102
        %v1111 = vcombine.high %v1087, %v1102
        %v1113 = vunpack.c.l.s4 1934713408
        %v1114 = vunpack.c.0.s8 %v1113
        %v1115 = vlaneseq
        %v1116 = vshrl.u32 %v1115, 7
        %v1117 = vsub.s32 %v1114, %v1116
        %v1118 = vrot.slane %v1110, %v1117
        %v1120 = vunpack.c.l.s4 1934713408
        %v1121 = vunpack.c.0.s8 %v1120
        %v1122 = vlaneseq
        %v1123 = vshrl.u32 %v1122, 7
        %v1124 = vsub.s32 %v1121, %v1123
        %v1125 = vrot.slane %v1111, %v1124
        %v1126 = vcombine.low %v1094, %v1109
        %v1127 = vcombine.high %v1094, %v1109
        %v1129 = vunpack.c.l.s4 1934713408
        %v1130 = vunpack.c.0.s8 %v1129
        %v1131 = vlaneseq
        %v1132 = vshrl.u32 %v1131, 7
        %v1133 = vsub.s32 %v1130, %v1132
        %v1134 = vrot.slane %v1126, %v1133
        %v1136 = vunpack.c.l.s4 1934713408
        %v1137 = vunpack.c.0.s8 %v1136
        %v1138 = vlaneseq
        %v1139 = vshrl.u32 %v1138, 7
        %v1140 = vsub.s32 %v1137, %v1139
        %v1141 = vrot.slane %v1127, %v1140
        %v1142 = vcombine.high %v1118, 0.0
        %v1143 = vcombine.high %v1125, 0.0
        %v1144 = vcombine.high %v1134, 0.0
        %v1145 = vcombine.high %v1141, 0.0
        %v1146 = vcombine.low %v986, %v993
        %v1148 = vunpack.c.l.s4 1983009808
        %v1149 = vunpack.c.0.s8 %v1148
        %v1150 = vlaneseq
        %v1151 = vshrl.u32 %v1150, 7
        %v1152 = vsub.s32 %v1149, %v1151
        %v1153 = vrot.slane %v1146, %v1152
        %v1154 = vcombine.low %v1010, %v1011
        %v1156 = vunpack.c.l.s4 1983009808
        %v1157 = vunpack.c.0.s8 %v1156
        %v1158 = vlaneseq
        %v1159 = vshrl.u32 %v1158, 7
        %v1160 = vsub.s32 %v1157, %v1159
        %v1161 = vrot.slane %v1154, %v1160
        %v1162 = vcombine.low %v1002, %v1009
        %v1164 = vunpack.c.l.s4 1983009808
        %v1165 = vunpack.c.0.s8 %v1164
        %v1166 = vlaneseq
        %v1167 = vshrl.u32 %v1166, 7
        %v1168 = vsub.s32 %v1165, %v1167
        %v1169 = vrot.slane %v1162, %v1168
        %v1170 = vcombine.low %v1012, %v1013
        %v1172 = vunpack.c.l.s4 1983009808
        %v1173 = vunpack.c.0.s8 %v1172
        %v1174 = vlaneseq
        %v1175 = vshrl.u32 %v1174, 7
        %v1176 = vsub.s32 %v1173, %v1175
        %v1177 = vrot.slane %v1170, %v1176
        %v1178 = vcombine.low %v1153, %v1161
        %v1180 = vunpack.c.l.s4 1934713408
        %v1181 = vunpack.c.0.s8 %v1180
        %v1182 = vlaneseq
        %v1183 = vshrl.u32 %v1182, 7
        %v1184 = vsub.s32 %v1181, %v1183
        %v1185 = vrot.slane %v1178, %v1184
        %v1186 = vcombine.low %v1169, %v1177
        %v1188 = vunpack.c.l.s4 1934713408
        %v1189 = vunpack.c.0.s8 %v1188
        %v1190 = vlaneseq
        %v1191 = vshrl.u32 %v1190, 7
        %v1192 = vsub.s32 %v1189, %v1191
        %v1193 = vrot.slane %v1186, %v1192
        %v1194 = vcombine.low %v1185, %v1193
        %v1195 = vcombine.high %v1185, %v1193
        %v1196 = vcombine.low %v1052, %v1059
        %v1198 = vunpack.c.l.s4 1983009808
        %v1199 = vunpack.c.0.s8 %v1198
        %v1200 = vlaneseq
        %v1201 = vshrl.u32 %v1200, 7
        %v1202 = vsub.s32 %v1199, %v1201
        %v1203 = vrot.slane %v1196, %v1202
        %v1204 = vcombine.low %v1076, %v1077
        %v1206 = vunpack.c.l.s4 1983009808
        %v1207 = vunpack.c.0.s8 %v1206
        %v1208 = vlaneseq
        %v1209 = vshrl.u32 %v1208, 7
        %v1210 = vsub.s32 %v1207, %v1209
        %v1211 = vrot.slane %v1204, %v1210
        %v1212 = vcombine.low %v1068, %v1075
        %v1214 = vunpack.c.l.s4 1983009808
        %v1215 = vunpack.c.0.s8 %v1214
        %v1216 = vlaneseq
        %v1217 = vshrl.u32 %v1216, 7
        %v1218 = vsub.s32 %v1215, %v1217
        %v1219 = vrot.slane %v1212, %v1218
        %v1220 = vcombine.low %v1078, %v1079
        %v1222 = vunpack.c.l.s4 1983009808
        %v1223 = vunpack.c.0.s8 %v1222
        %v1224 = vlaneseq
        %v1225 = vshrl.u32 %v1224, 7
        %v1226 = vsub.s32 %v1223, %v1225
        %v1227 = vrot.slane %v1220, %v1226
        %v1228 = vcombine.low %v1203, %v1211
        %v1230 = vunpack.c.l.s4 1934713408
        %v1231 = vunpack.c.0.s8 %v1230
        %v1232 = vlaneseq
        %v1233 = vshrl.u32 %v1232, 7
        %v1234 = vsub.s32 %v1231, %v1233
        %v1235 = vrot.slane %v1228, %v1234
        %v1236 = vcombine.low %v1219, %v1227
        %v1238 = vunpack.c.l.s4 1934713408
        %v1239 = vunpack.c.0.s8 %v1238
        %v1240 = vlaneseq
        %v1241 = vshrl.u32 %v1240, 7
        %v1242 = vsub.s32 %v1239, %v1241
        %v1243 = vrot.slane %v1236, %v1242
        %v1244 = vcombine.low %v1235, %v1243
        %v1245 = vcombine.high %v1235, %v1243
        %v1246 = vcombine.low %v1118, %v1125
        %v1248 = vunpack.c.l.s4 1983009808
        %v1249 = vunpack.c.0.s8 %v1248
        %v1250 = vlaneseq
        %v1251 = vshrl.u32 %v1250, 7
        %v1252 = vsub.s32 %v1249, %v1251
        %v1253 = vrot.slane %v1246, %v1252
        %v1254 = vcombine.low %v1142, %v1143
        %v1256 = vunpack.c.l.s4 1983009808
        %v1257 = vunpack.c.0.s8 %v1256
        %v1258 = vlaneseq
        %v1259 = vshrl.u32 %v1258, 7
        %v1260 = vsub.s32 %v1257, %v1259
        %v1261 = vrot.slane %v1254, %v1260
        %v1262 = vcombine.low %v1134, %v1141
        %v1264 = vunpack.c.l.s4 1983009808
        %v1265 = vunpack.c.0.s8 %v1264
        %v1266 = vlaneseq
        %v1267 = vshrl.u32 %v1266, 7
        %v1268 = vsub.s32 %v1265, %v1267
        %v1269 = vrot.slane %v1262, %v1268
        %v1270 = vcombine.low %v1144, %v1145
        %v1272 = vunpack.c.l.s4 1983009808
        %v1273 = vunpack.c.0.s8 %v1272
        %v1274 = vlaneseq
        %v1275 = vshrl.u32 %v1274, 7
        %v1276 = vsub.s32 %v1273, %v1275
        %v1277 = vrot.slane %v1270, %v1276
        %v1278 = vcombine.low %v1253, %v1261
        %v1280 = vunpack.c.l.s4 1934713408
        %v1281 = vunpack.c.0.s8 %v1280
        %v1282 = vlaneseq
        %v1283 = vshrl.u32 %v1282, 7
        %v1284 = vsub.s32 %v1281, %v1283
        %v1285 = vrot.slane %v1278, %v1284
        %v1286 = vcombine.low %v1269, %v1277
        %v1288 = vunpack.c.l.s4 1934713408
        %v1289 = vunpack.c.0.s8 %v1288
        %v1290 = vlaneseq
        %v1291 = vshrl.u32 %v1290, 7
        %v1292 = vsub.s32 %v1289, %v1291
        %v1293 = vrot.slane %v1286, %v1292
        %v1294 = vcombine.low %v1285, %v1293
        %v1295 = vcombine.high %v1285, %v1293
        %1299 = vrot.lane.b32.xlu0 %v852, 112
        %v1300 = vpop.permute.xlu0 %1299
        %1301 = vrot.lane.b32.xlu0 %v855, 112
        %v1302 = vpop.permute.xlu0 %1301
        %1303 = vrot.lane.b32.xlu0 %v860, 112
        %v1304 = vpop.permute.xlu0 %1303
        %v1308 = vcombine.high %v852, 0.0
        %v1310 = vunpack.c.l.s4 1983009808
        %v1311 = vunpack.c.0.s8 %v1310
        %v1312 = vlaneseq
        %v1313 = vshrl.u32 %v1312, 7
        %v1314 = vsub.s32 %v1311, %v1313
        %v1315 = vrot.slane %v852, %v1314
        %v1317 = vunpack.c.l.s4 1983009808
        %v1318 = vunpack.c.0.s8 %v1317
        %v1319 = vlaneseq
        %v1320 = vshrl.u32 %v1319, 7
        %v1321 = vsub.s32 %v1318, %v1320
        %v1322 = vrot.slane %v1308, %v1321
        %v1323 = vcombine.high %v1300, 0.0
        %v1325 = vunpack.c.l.s4 1983009808
        %v1326 = vunpack.c.0.s8 %v1325
        %v1327 = vlaneseq
        %v1328 = vshrl.u32 %v1327, 7
        %v1329 = vsub.s32 %v1326, %v1328
        %v1330 = vrot.slane %v1300, %v1329
        %v1332 = vunpack.c.l.s4 1983009808
        %v1333 = vunpack.c.0.s8 %v1332
        %v1334 = vlaneseq
        %v1335 = vshrl.u32 %v1334, 7
        %v1336 = vsub.s32 %v1333, %v1335
        %v1337 = vrot.slane %v1323, %v1336
        %v1338 = vcombine.low %v1315, %v1330
        %v1339 = vcombine.high %v1315, %v1330
        %v1341 = vunpack.c.l.s4 1934713408
        %v1342 = vunpack.c.0.s8 %v1341
        %v1343 = vlaneseq
        %v1344 = vshrl.u32 %v1343, 7
        %v1345 = vsub.s32 %v1342, %v1344
        %v1346 = vrot.slane %v1338, %v1345
        %v1348 = vunpack.c.l.s4 1934713408
        %v1349 = vunpack.c.0.s8 %v1348
        %v1350 = vlaneseq
        %v1351 = vshrl.u32 %v1350, 7
        %v1352 = vsub.s32 %v1349, %v1351
        %v1353 = vrot.slane %v1339, %v1352
        %v1354 = vcombine.low %v1322, %v1337
        %v1355 = vcombine.high %v1322, %v1337
        %v1357 = vunpack.c.l.s4 1934713408
        %v1358 = vunpack.c.0.s8 %v1357
        %v1359 = vlaneseq
        %v1360 = vshrl.u32 %v1359, 7
        %v1361 = vsub.s32 %v1358, %v1360
        %v1362 = vrot.slane %v1354, %v1361
        %v1364 = vunpack.c.l.s4 1934713408
        %v1365 = vunpack.c.0.s8 %v1364
        %v1366 = vlaneseq
        %v1367 = vshrl.u32 %v1366, 7
        %v1368 = vsub.s32 %v1365, %v1367
        %v1369 = vrot.slane %v1355, %v1368
        %v1370 = vcombine.high %v1346, 0.0
        %v1371 = vcombine.high %v1353, 0.0
        %v1372 = vcombine.high %v1362, 0.0
        %v1373 = vcombine.high %v1369, 0.0
        %v1374 = vcombine.high %v855, 0.0
        %v1376 = vunpack.c.l.s4 1983009808
        %v1377 = vunpack.c.0.s8 %v1376
        %v1378 = vlaneseq
        %v1379 = vshrl.u32 %v1378, 7
        %v1380 = vsub.s32 %v1377, %v1379
        %v1381 = vrot.slane %v855, %v1380
        %v1383 = vunpack.c.l.s4 1983009808
        %v1384 = vunpack.c.0.s8 %v1383
        %v1385 = vlaneseq
        %v1386 = vshrl.u32 %v1385, 7
        %v1387 = vsub.s32 %v1384, %v1386
        %v1388 = vrot.slane %v1374, %v1387
        %v1389 = vcombine.high %v1302, 0.0
        %v1391 = vunpack.c.l.s4 1983009808
        %v1392 = vunpack.c.0.s8 %v1391
        %v1393 = vlaneseq
        %v1394 = vshrl.u32 %v1393, 7
        %v1395 = vsub.s32 %v1392, %v1394
        %v1396 = vrot.slane %v1302, %v1395
        %v1398 = vunpack.c.l.s4 1983009808
        %v1399 = vunpack.c.0.s8 %v1398
        %v1400 = vlaneseq
        %v1401 = vshrl.u32 %v1400, 7
        %v1402 = vsub.s32 %v1399, %v1401
        %v1403 = vrot.slane %v1389, %v1402
        %v1404 = vcombine.low %v1381, %v1396
        %v1405 = vcombine.high %v1381, %v1396
        %v1407 = vunpack.c.l.s4 1934713408
        %v1408 = vunpack.c.0.s8 %v1407
        %v1409 = vlaneseq
        %v1410 = vshrl.u32 %v1409, 7
        %v1411 = vsub.s32 %v1408, %v1410
        %v1412 = vrot.slane %v1404, %v1411
        %v1414 = vunpack.c.l.s4 1934713408
        %v1415 = vunpack.c.0.s8 %v1414
        %v1416 = vlaneseq
        %v1417 = vshrl.u32 %v1416, 7
        %v1418 = vsub.s32 %v1415, %v1417
        %v1419 = vrot.slane %v1405, %v1418
        %v1420 = vcombine.low %v1388, %v1403
        %v1421 = vcombine.high %v1388, %v1403
        %v1423 = vunpack.c.l.s4 1934713408
        %v1424 = vunpack.c.0.s8 %v1423
        %v1425 = vlaneseq
        %v1426 = vshrl.u32 %v1425, 7
        %v1427 = vsub.s32 %v1424, %v1426
        %v1428 = vrot.slane %v1420, %v1427
        %v1430 = vunpack.c.l.s4 1934713408
        %v1431 = vunpack.c.0.s8 %v1430
        %v1432 = vlaneseq
        %v1433 = vshrl.u32 %v1432, 7
        %v1434 = vsub.s32 %v1431, %v1433
        %v1435 = vrot.slane %v1421, %v1434
        %v1436 = vcombine.high %v1412, 0.0
        %v1437 = vcombine.high %v1419, 0.0
        %v1438 = vcombine.high %v1428, 0.0
        %v1439 = vcombine.high %v1435, 0.0
        %v1440 = vcombine.high %v860, 0.0
        %v1442 = vunpack.c.l.s4 1983009808
        %v1443 = vunpack.c.0.s8 %v1442
        %v1444 = vlaneseq
        %v1445 = vshrl.u32 %v1444, 7
        %v1446 = vsub.s32 %v1443, %v1445
        %v1447 = vrot.slane %v860, %v1446
        %v1449 = vunpack.c.l.s4 1983009808
        %v1450 = vunpack.c.0.s8 %v1449
        %v1451 = vlaneseq
        %v1452 = vshrl.u32 %v1451, 7
        %v1453 = vsub.s32 %v1450, %v1452
        %v1454 = vrot.slane %v1440, %v1453
        %v1455 = vcombine.high %v1304, 0.0
        %v1457 = vunpack.c.l.s4 1983009808
        %v1458 = vunpack.c.0.s8 %v1457
        %v1459 = vlaneseq
        %v1460 = vshrl.u32 %v1459, 7
        %v1461 = vsub.s32 %v1458, %v1460
        %v1462 = vrot.slane %v1304, %v1461
        %v1464 = vunpack.c.l.s4 1983009808
        %v1465 = vunpack.c.0.s8 %v1464
        %v1466 = vlaneseq
        %v1467 = vshrl.u32 %v1466, 7
        %v1468 = vsub.s32 %v1465, %v1467
        %v1469 = vrot.slane %v1455, %v1468
        %v1470 = vcombine.low %v1447, %v1462
        %v1471 = vcombine.high %v1447, %v1462
        %v1473 = vunpack.c.l.s4 1934713408
        %v1474 = vunpack.c.0.s8 %v1473
        %v1475 = vlaneseq
        %v1476 = vshrl.u32 %v1475, 7
        %v1477 = vsub.s32 %v1474, %v1476
        %v1478 = vrot.slane %v1470, %v1477
        %v1480 = vunpack.c.l.s4 1934713408
        %v1481 = vunpack.c.0.s8 %v1480
        %v1482 = vlaneseq
        %v1483 = vshrl.u32 %v1482, 7
        %v1484 = vsub.s32 %v1481, %v1483
        %v1485 = vrot.slane %v1471, %v1484
        %v1486 = vcombine.low %v1454, %v1469
        %v1487 = vcombine.high %v1454, %v1469
        %v1489 = vunpack.c.l.s4 1934713408
        %v1490 = vunpack.c.0.s8 %v1489
        %v1491 = vlaneseq
        %v1492 = vshrl.u32 %v1491, 7
        %v1493 = vsub.s32 %v1490, %v1492
        %v1494 = vrot.slane %v1486, %v1493
        %v1496 = vunpack.c.l.s4 1934713408
        %v1497 = vunpack.c.0.s8 %v1496
        %v1498 = vlaneseq
        %v1499 = vshrl.u32 %v1498, 7
        %v1500 = vsub.s32 %v1497, %v1499
        %v1501 = vrot.slane %v1487, %v1500
        %v1502 = vcombine.high %v1478, 0.0
        %v1503 = vcombine.high %v1485, 0.0
        %v1504 = vcombine.high %v1494, 0.0
        %v1505 = vcombine.high %v1501, 0.0
        %v1506 = vcombine.low %v1346, %v1353
        %v1508 = vunpack.c.l.s4 1983009808
        %v1509 = vunpack.c.0.s8 %v1508
        %v1510 = vlaneseq
        %v1511 = vshrl.u32 %v1510, 7
        %v1512 = vsub.s32 %v1509, %v1511
        %v1513 = vrot.slane %v1506, %v1512
        %v1514 = vcombine.low %v1370, %v1371
        %v1516 = vunpack.c.l.s4 1983009808
        %v1517 = vunpack.c.0.s8 %v1516
        %v1518 = vlaneseq
        %v1519 = vshrl.u32 %v1518, 7
        %v1520 = vsub.s32 %v1517, %v1519
        %v1521 = vrot.slane %v1514, %v1520
        %v1522 = vcombine.low %v1362, %v1369
        %v1524 = vunpack.c.l.s4 1983009808
        %v1525 = vunpack.c.0.s8 %v1524
        %v1526 = vlaneseq
        %v1527 = vshrl.u32 %v1526, 7
        %v1528 = vsub.s32 %v1525, %v1527
        %v1529 = vrot.slane %v1522, %v1528
        %v1530 = vcombine.low %v1372, %v1373
        %v1532 = vunpack.c.l.s4 1983009808
        %v1533 = vunpack.c.0.s8 %v1532
        %v1534 = vlaneseq
        %v1535 = vshrl.u32 %v1534, 7
        %v1536 = vsub.s32 %v1533, %v1535
        %v1537 = vrot.slane %v1530, %v1536
        %v1538 = vcombine.low %v1513, %v1521
        %v1540 = vunpack.c.l.s4 1934713408
        %v1541 = vunpack.c.0.s8 %v1540
        %v1542 = vlaneseq
        %v1543 = vshrl.u32 %v1542, 7
        %v1544 = vsub.s32 %v1541, %v1543
        %v1545 = vrot.slane %v1538, %v1544
        %v1546 = vcombine.low %v1529, %v1537
        %v1548 = vunpack.c.l.s4 1934713408
        %v1549 = vunpack.c.0.s8 %v1548
        %v1550 = vlaneseq
        %v1551 = vshrl.u32 %v1550, 7
        %v1552 = vsub.s32 %v1549, %v1551
        %v1553 = vrot.slane %v1546, %v1552
        %v1554 = vcombine.low %v1545, %v1553
        %v1555 = vcombine.high %v1545, %v1553
        %v1556 = vcombine.low %v1412, %v1419
        %v1558 = vunpack.c.l.s4 1983009808
        %v1559 = vunpack.c.0.s8 %v1558
        %v1560 = vlaneseq
        %v1561 = vshrl.u32 %v1560, 7
        %v1562 = vsub.s32 %v1559, %v1561
        %v1563 = vrot.slane %v1556, %v1562
        %v1564 = vcombine.low %v1436, %v1437
        %v1566 = vunpack.c.l.s4 1983009808
        %v1567 = vunpack.c.0.s8 %v1566
        %v1568 = vlaneseq
        %v1569 = vshrl.u32 %v1568, 7
        %v1570 = vsub.s32 %v1567, %v1569
        %v1571 = vrot.slane %v1564, %v1570
        %v1572 = vcombine.low %v1428, %v1435
        %v1574 = vunpack.c.l.s4 1983009808
        %v1575 = vunpack.c.0.s8 %v1574
        %v1576 = vlaneseq
        %v1577 = vshrl.u32 %v1576, 7
        %v1578 = vsub.s32 %v1575, %v1577
        %v1579 = vrot.slane %v1572, %v1578
        %v1580 = vcombine.low %v1438, %v1439
        %v1582 = vunpack.c.l.s4 1983009808
        %v1583 = vunpack.c.0.s8 %v1582
        %v1584 = vlaneseq
        %v1585 = vshrl.u32 %v1584, 7
        %v1586 = vsub.s32 %v1583, %v1585
        %v1587 = vrot.slane %v1580, %v1586
        %v1588 = vcombine.low %v1563, %v1571
        %v1590 = vunpack.c.l.s4 1934713408
        %v1591 = vunpack.c.0.s8 %v1590
        %v1592 = vlaneseq
        %v1593 = vshrl.u32 %v1592, 7
        %v1594 = vsub.s32 %v1591, %v1593
        %v1595 = vrot.slane %v1588, %v1594
        %v1596 = vcombine.low %v1579, %v1587
        %v1598 = vunpack.c.l.s4 1934713408
        %v1599 = vunpack.c.0.s8 %v1598
        %v1600 = vlaneseq
        %v1601 = vshrl.u32 %v1600, 7
        %v1602 = vsub.s32 %v1599, %v1601
        %v1603 = vrot.slane %v1596, %v1602
        %v1604 = vcombine.low %v1595, %v1603
        %v1605 = vcombine.high %v1595, %v1603
        %v1606 = vcombine.low %v1478, %v1485
        %v1608 = vunpack.c.l.s4 1983009808
        %v1609 = vunpack.c.0.s8 %v1608
        %v1610 = vlaneseq
        %v1611 = vshrl.u32 %v1610, 7
        %v1612 = vsub.s32 %v1609, %v1611
        %v1613 = vrot.slane %v1606, %v1612
        %v1614 = vcombine.low %v1502, %v1503
        %v1616 = vunpack.c.l.s4 1983009808
        %v1617 = vunpack.c.0.s8 %v1616
        %v1618 = vlaneseq
        %v1619 = vshrl.u32 %v1618, 7
        %v1620 = vsub.s32 %v1617, %v1619
        %v1621 = vrot.slane %v1614, %v1620
        %v1622 = vcombine.low %v1494, %v1501
        %v1624 = vunpack.c.l.s4 1983009808
        %v1625 = vunpack.c.0.s8 %v1624
        %v1626 = vlaneseq
        %v1627 = vshrl.u32 %v1626, 7
        %v1628 = vsub.s32 %v1625, %v1627
        %v1629 = vrot.slane %v1622, %v1628
        %v1630 = vcombine.low %v1504, %v1505
        %v1632 = vunpack.c.l.s4 1983009808
        %v1633 = vunpack.c.0.s8 %v1632
        %v1634 = vlaneseq
        %v1635 = vshrl.u32 %v1634, 7
        %v1636 = vsub.s32 %v1633, %v1635
        %v1637 = vrot.slane %v1630, %v1636
        %v1638 = vcombine.low %v1613, %v1621
        %v1640 = vunpack.c.l.s4 1934713408
        %v1641 = vunpack.c.0.s8 %v1640
        %v1642 = vlaneseq
        %v1643 = vshrl.u32 %v1642, 7
        %v1644 = vsub.s32 %v1641, %v1643
        %v1645 = vrot.slane %v1638, %v1644
        %v1646 = vcombine.low %v1629, %v1637
        %v1648 = vunpack.c.l.s4 1934713408
        %v1649 = vunpack.c.0.s8 %v1648
        %v1650 = vlaneseq
        %v1651 = vshrl.u32 %v1650, 7
        %v1652 = vsub.s32 %v1649, %v1651
        %v1653 = vrot.slane %v1646, %v1652
        %v1654 = vcombine.low %v1645, %v1653
        %v1655 = vcombine.high %v1645, %v1653
        %1659 = vrot.lane.b32.xlu0 %v923, 112
        %v1660 = vpop.permute.xlu0 %1659
        %1661 = vrot.lane.b32.xlu0 %v926, 112
        %v1662 = vpop.permute.xlu0 %1661
        %1663 = vrot.lane.b32.xlu0 %v931, 112
        %v1664 = vpop.permute.xlu0 %1663
        %v1668 = vcombine.high %v923, 0.0
        %v1670 = vunpack.c.l.s4 1983009808
        %v1671 = vunpack.c.0.s8 %v1670
        %v1672 = vlaneseq
        %v1673 = vshrl.u32 %v1672, 7
        %v1674 = vsub.s32 %v1671, %v1673
        %v1675 = vrot.slane %v923, %v1674
        %v1677 = vunpack.c.l.s4 1983009808
        %v1678 = vunpack.c.0.s8 %v1677
        %v1679 = vlaneseq
        %v1680 = vshrl.u32 %v1679, 7
        %v1681 = vsub.s32 %v1678, %v1680
        %v1682 = vrot.slane %v1668, %v1681
        %v1683 = vcombine.high %v1660, 0.0
        %v1685 = vunpack.c.l.s4 1983009808
        %v1686 = vunpack.c.0.s8 %v1685
        %v1687 = vlaneseq
        %v1688 = vshrl.u32 %v1687, 7
        %v1689 = vsub.s32 %v1686, %v1688
        %v1690 = vrot.slane %v1660, %v1689
        %v1692 = vunpack.c.l.s4 1983009808
        %v1693 = vunpack.c.0.s8 %v1692
        %v1694 = vlaneseq
        %v1695 = vshrl.u32 %v1694, 7
        %v1696 = vsub.s32 %v1693, %v1695
        %v1697 = vrot.slane %v1683, %v1696
        %v1698 = vcombine.low %v1675, %v1690
        %v1699 = vcombine.high %v1675, %v1690
        %v1701 = vunpack.c.l.s4 1934713408
        %v1702 = vunpack.c.0.s8 %v1701
        %v1703 = vlaneseq
        %v1704 = vshrl.u32 %v1703, 7
        %v1705 = vsub.s32 %v1702, %v1704
        %v1706 = vrot.slane %v1698, %v1705
        %v1708 = vunpack.c.l.s4 1934713408
        %v1709 = vunpack.c.0.s8 %v1708
        %v1710 = vlaneseq
        %v1711 = vshrl.u32 %v1710, 7
        %v1712 = vsub.s32 %v1709, %v1711
        %v1713 = vrot.slane %v1699, %v1712
        %v1714 = vcombine.low %v1682, %v1697
        %v1715 = vcombine.high %v1682, %v1697
        %v1717 = vunpack.c.l.s4 1934713408
        %v1718 = vunpack.c.0.s8 %v1717
        %v1719 = vlaneseq
        %v1720 = vshrl.u32 %v1719, 7
        %v1721 = vsub.s32 %v1718, %v1720
        %v1722 = vrot.slane %v1714, %v1721
        %v1724 = vunpack.c.l.s4 1934713408
        %v1725 = vunpack.c.0.s8 %v1724
        %v1726 = vlaneseq
        %v1727 = vshrl.u32 %v1726, 7
        %v1728 = vsub.s32 %v1725, %v1727
        %v1729 = vrot.slane %v1715, %v1728
        %v1730 = vcombine.high %v1706, 0.0
        %v1731 = vcombine.high %v1713, 0.0
        %v1732 = vcombine.high %v1722, 0.0
        %v1733 = vcombine.high %v1729, 0.0
        %v1734 = vcombine.high %v926, 0.0
        %v1736 = vunpack.c.l.s4 1983009808
        %v1737 = vunpack.c.0.s8 %v1736
        %v1738 = vlaneseq
        %v1739 = vshrl.u32 %v1738, 7
        %v1740 = vsub.s32 %v1737, %v1739
        %v1741 = vrot.slane %v926, %v1740
        %v1743 = vunpack.c.l.s4 1983009808
        %v1744 = vunpack.c.0.s8 %v1743
        %v1745 = vlaneseq
        %v1746 = vshrl.u32 %v1745, 7
        %v1747 = vsub.s32 %v1744, %v1746
        %v1748 = vrot.slane %v1734, %v1747
        %v1749 = vcombine.high %v1662, 0.0
        %v1751 = vunpack.c.l.s4 1983009808
        %v1752 = vunpack.c.0.s8 %v1751
        %v1753 = vlaneseq
        %v1754 = vshrl.u32 %v1753, 7
        %v1755 = vsub.s32 %v1752, %v1754
        %v1756 = vrot.slane %v1662, %v1755
        %v1758 = vunpack.c.l.s4 1983009808
        %v1759 = vunpack.c.0.s8 %v1758
        %v1760 = vlaneseq
        %v1761 = vshrl.u32 %v1760, 7
        %v1762 = vsub.s32 %v1759, %v1761
        %v1763 = vrot.slane %v1749, %v1762
        %v1764 = vcombine.low %v1741, %v1756
        %v1765 = vcombine.high %v1741, %v1756
        %v1767 = vunpack.c.l.s4 1934713408
        %v1768 = vunpack.c.0.s8 %v1767
        %v1769 = vlaneseq
        %v1770 = vshrl.u32 %v1769, 7
        %v1771 = vsub.s32 %v1768, %v1770
        %v1772 = vrot.slane %v1764, %v1771
        %v1774 = vunpack.c.l.s4 1934713408
        %v1775 = vunpack.c.0.s8 %v1774
        %v1776 = vlaneseq
        %v1777 = vshrl.u32 %v1776, 7
        %v1778 = vsub.s32 %v1775, %v1777
        %v1779 = vrot.slane %v1765, %v1778
        %v1780 = vcombine.low %v1748, %v1763
        %v1781 = vcombine.high %v1748, %v1763
        %v1783 = vunpack.c.l.s4 1934713408
        %v1784 = vunpack.c.0.s8 %v1783
        %v1785 = vlaneseq
        %v1786 = vshrl.u32 %v1785, 7
        %v1787 = vsub.s32 %v1784, %v1786
        %v1788 = vrot.slane %v1780, %v1787
        %v1790 = vunpack.c.l.s4 1934713408
        %v1791 = vunpack.c.0.s8 %v1790
        %v1792 = vlaneseq
        %v1793 = vshrl.u32 %v1792, 7
        %v1794 = vsub.s32 %v1791, %v1793
        %v1795 = vrot.slane %v1781, %v1794
        %v1796 = vcombine.high %v1772, 0.0
        %v1797 = vcombine.high %v1779, 0.0
        %v1798 = vcombine.high %v1788, 0.0
        %v1799 = vcombine.high %v1795, 0.0
        %v1800 = vcombine.high %v931, 0.0
        %v1802 = vunpack.c.l.s4 1983009808
        %v1803 = vunpack.c.0.s8 %v1802
        %v1804 = vlaneseq
        %v1805 = vshrl.u32 %v1804, 7
        %v1806 = vsub.s32 %v1803, %v1805
        %v1807 = vrot.slane %v931, %v1806
        %v1809 = vunpack.c.l.s4 1983009808
        %v1810 = vunpack.c.0.s8 %v1809
        %v1811 = vlaneseq
        %v1812 = vshrl.u32 %v1811, 7
        %v1813 = vsub.s32 %v1810, %v1812
        %v1814 = vrot.slane %v1800, %v1813
        %v1815 = vcombine.high %v1664, 0.0
        %v1817 = vunpack.c.l.s4 1983009808
        %v1818 = vunpack.c.0.s8 %v1817
        %v1819 = vlaneseq
        %v1820 = vshrl.u32 %v1819, 7
        %v1821 = vsub.s32 %v1818, %v1820
        %v1822 = vrot.slane %v1664, %v1821
        %v1824 = vunpack.c.l.s4 1983009808
        %v1825 = vunpack.c.0.s8 %v1824
        %v1826 = vlaneseq
        %v1827 = vshrl.u32 %v1826, 7
        %v1828 = vsub.s32 %v1825, %v1827
        %v1829 = vrot.slane %v1815, %v1828
        %v1830 = vcombine.low %v1807, %v1822
        %v1831 = vcombine.high %v1807, %v1822
        %v1833 = vunpack.c.l.s4 1934713408
        %v1834 = vunpack.c.0.s8 %v1833
        %v1835 = vlaneseq
        %v1836 = vshrl.u32 %v1835, 7
        %v1837 = vsub.s32 %v1834, %v1836
        %v1838 = vrot.slane %v1830, %v1837
        %v1840 = vunpack.c.l.s4 1934713408
        %v1841 = vunpack.c.0.s8 %v1840
        %v1842 = vlaneseq
        %v1843 = vshrl.u32 %v1842, 7
        %v1844 = vsub.s32 %v1841, %v1843
        %v1845 = vrot.slane %v1831, %v1844
        %v1846 = vcombine.low %v1814, %v1829
        %v1847 = vcombine.high %v1814, %v1829
        %v1849 = vunpack.c.l.s4 1934713408
        %v1850 = vunpack.c.0.s8 %v1849
        %v1851 = vlaneseq
        %v1852 = vshrl.u32 %v1851, 7
        %v1853 = vsub.s32 %v1850, %v1852
        %v1854 = vrot.slane %v1846, %v1853
        %v1856 = vunpack.c.l.s4 1934713408
        %v1857 = vunpack.c.0.s8 %v1856
        %v1858 = vlaneseq
        %v1859 = vshrl.u32 %v1858, 7
        %v1860 = vsub.s32 %v1857, %v1859
        %v1861 = vrot.slane %v1847, %v1860
        %v1862 = vcombine.high %v1838, 0.0
        %v1863 = vcombine.high %v1845, 0.0
        %v1864 = vcombine.high %v1854, 0.0
        %v1865 = vcombine.high %v1861, 0.0
        %v1866 = vcombine.low %v1706, %v1713
        %v1868 = vunpack.c.l.s4 1983009808
        %v1869 = vunpack.c.0.s8 %v1868
        %v1870 = vlaneseq
        %v1871 = vshrl.u32 %v1870, 7
        %v1872 = vsub.s32 %v1869, %v1871
        %v1873 = vrot.slane %v1866, %v1872
        %v1874 = vcombine.low %v1730, %v1731
        %v1876 = vunpack.c.l.s4 1983009808
        %v1877 = vunpack.c.0.s8 %v1876
        %v1878 = vlaneseq
        %v1879 = vshrl.u32 %v1878, 7
        %v1880 = vsub.s32 %v1877, %v1879
        %v1881 = vrot.slane %v1874, %v1880
        %v1882 = vcombine.low %v1722, %v1729
        %v1884 = vunpack.c.l.s4 1983009808
        %v1885 = vunpack.c.0.s8 %v1884
        %v1886 = vlaneseq
        %v1887 = vshrl.u32 %v1886, 7
        %v1888 = vsub.s32 %v1885, %v1887
        %v1889 = vrot.slane %v1882, %v1888
        %v1890 = vcombine.low %v1732, %v1733
        %v1892 = vunpack.c.l.s4 1983009808
        %v1893 = vunpack.c.0.s8 %v1892
        %v1894 = vlaneseq
        %v1895 = vshrl.u32 %v1894, 7
        %v1896 = vsub.s32 %v1893, %v1895
        %v1897 = vrot.slane %v1890, %v1896
        %v1898 = vcombine.low %v1873, %v1881
        %v1900 = vunpack.c.l.s4 1934713408
        %v1901 = vunpack.c.0.s8 %v1900
        %v1902 = vlaneseq
        %v1903 = vshrl.u32 %v1902, 7
        %v1904 = vsub.s32 %v1901, %v1903
        %v1905 = vrot.slane %v1898, %v1904
        %v1906 = vcombine.low %v1889, %v1897
        %v1908 = vunpack.c.l.s4 1934713408
        %v1909 = vunpack.c.0.s8 %v1908
        %v1910 = vlaneseq
        %v1911 = vshrl.u32 %v1910, 7
        %v1912 = vsub.s32 %v1909, %v1911
        %v1913 = vrot.slane %v1906, %v1912
        %v1914 = vcombine.low %v1905, %v1913
        %v1915 = vcombine.high %v1905, %v1913
        %v1916 = vcombine.low %v1772, %v1779
        %v1918 = vunpack.c.l.s4 1983009808
        %v1919 = vunpack.c.0.s8 %v1918
        %v1920 = vlaneseq
        %v1921 = vshrl.u32 %v1920, 7
        %v1922 = vsub.s32 %v1919, %v1921
        %v1923 = vrot.slane %v1916, %v1922
        %v1924 = vcombine.low %v1796, %v1797
        %v1926 = vunpack.c.l.s4 1983009808
        %v1927 = vunpack.c.0.s8 %v1926
        %v1928 = vlaneseq
        %v1929 = vshrl.u32 %v1928, 7
        %v1930 = vsub.s32 %v1927, %v1929
        %v1931 = vrot.slane %v1924, %v1930
        %v1932 = vcombine.low %v1788, %v1795
        %v1934 = vunpack.c.l.s4 1983009808
        %v1935 = vunpack.c.0.s8 %v1934
        %v1936 = vlaneseq
        %v1937 = vshrl.u32 %v1936, 7
        %v1938 = vsub.s32 %v1935, %v1937
        %v1939 = vrot.slane %v1932, %v1938
        %v1940 = vcombine.low %v1798, %v1799
        %v1942 = vunpack.c.l.s4 1983009808
        %v1943 = vunpack.c.0.s8 %v1942
        %v1944 = vlaneseq
        %v1945 = vshrl.u32 %v1944, 7
        %v1946 = vsub.s32 %v1943, %v1945
        %v1947 = vrot.slane %v1940, %v1946
        %v1948 = vcombine.low %v1923, %v1931
        %v1950 = vunpack.c.l.s4 1934713408
        %v1951 = vunpack.c.0.s8 %v1950
        %v1952 = vlaneseq
        %v1953 = vshrl.u32 %v1952, 7
        %v1954 = vsub.s32 %v1951, %v1953
        %v1955 = vrot.slane %v1948, %v1954
        %v1956 = vcombine.low %v1939, %v1947
        %v1958 = vunpack.c.l.s4 1934713408
        %v1959 = vunpack.c.0.s8 %v1958
        %v1960 = vlaneseq
        %v1961 = vshrl.u32 %v1960, 7
        %v1962 = vsub.s32 %v1959, %v1961
        %v1963 = vrot.slane %v1956, %v1962
        %v1964 = vcombine.low %v1955, %v1963
        %v1965 = vcombine.high %v1955, %v1963
        %v1966 = vcombine.low %v1838, %v1845
        %v1968 = vunpack.c.l.s4 1983009808
        %v1969 = vunpack.c.0.s8 %v1968
        %v1970 = vlaneseq
        %v1971 = vshrl.u32 %v1970, 7
        %v1972 = vsub.s32 %v1969, %v1971
        %v1973 = vrot.slane %v1966, %v1972
        %v1974 = vcombine.low %v1862, %v1863
        %v1976 = vunpack.c.l.s4 1983009808
        %v1977 = vunpack.c.0.s8 %v1976
        %v1978 = vlaneseq
        %v1979 = vshrl.u32 %v1978, 7
        %v1980 = vsub.s32 %v1977, %v1979
        %v1981 = vrot.slane %v1974, %v1980
        %v1982 = vcombine.low %v1854, %v1861
        %v1984 = vunpack.c.l.s4 1983009808
        %v1985 = vunpack.c.0.s8 %v1984
        %v1986 = vlaneseq
        %v1987 = vshrl.u32 %v1986, 7
        %v1988 = vsub.s32 %v1985, %v1987
        %v1989 = vrot.slane %v1982, %v1988
        %v1990 = vcombine.low %v1864, %v1865
        %v1992 = vunpack.c.l.s4 1983009808
        %v1993 = vunpack.c.0.s8 %v1992
        %v1994 = vlaneseq
        %v1995 = vshrl.u32 %v1994, 7
        %v1996 = vsub.s32 %v1993, %v1995
        %v1997 = vrot.slane %v1990, %v1996
        %v1998 = vcombine.low %v1973, %v1981
        %v2000 = vunpack.c.l.s4 1934713408
        %v2001 = vunpack.c.0.s8 %v2000
        %v2002 = vlaneseq
        %v2003 = vshrl.u32 %v2002, 7
        %v2004 = vsub.s32 %v2001, %v2003
        %v2005 = vrot.slane %v1998, %v2004
        %v2006 = vcombine.low %v1989, %v1997
        %v2008 = vunpack.c.l.s4 1934713408
        %v2009 = vunpack.c.0.s8 %v2008
        %v2010 = vlaneseq
        %v2011 = vshrl.u32 %v2010, 7
        %v2012 = vsub.s32 %v2009, %v2011
        %v2013 = vrot.slane %v2006, %v2012
        %v2014 = vcombine.low %v2005, %v2013
        %v2015 = vcombine.high %v2005, %v2013
        %v2016 = vpack.c.bf16 %v1194, %v1194
        %v2017 = vpack.c.bf16 %v1195, %v1195
        %v2018 = vpack.c.bf16 %v1244, %v1244
        %v2019 = vpack.c.bf16 %v1245, %v1245
        %v2020 = vpack.c.bf16 %v1294, %v1294
        %v2021 = vpack.c.bf16 %v1295, %v1295
        %v2022 = vpack.c.bf16 %v1554, %v1554
        %v2023 = vpack.c.bf16 %v1555, %v1555
        %v2024 = vpack.c.bf16 %v1604, %v1604
        %v2025 = vpack.c.bf16 %v1605, %v1605
        %v2026 = vpack.c.bf16 %v1654, %v1654
        %v2027 = vpack.c.bf16 %v1655, %v1655
        %vm2028 = vcmask 130048
        %v2030 = vsel %vm2028, %v2016, 0
        %v2033 = vsel %vm2028, %v2022, 0
        %2035 = vmatprep.subr.bf16.mxu0 0
        %2036 = vmatpush1.bf16.xpose.msra.mxu0 0
        %2037 = vmatprep.subr.bf16.mxu0 0
        %2038 = vmatpush1.bf16.xpose.msra.mxu0 0
        %2039 = vmatprep.subr.bf16.mxu0 0
        %2040 = vmatpush1.bf16.xpose.msra.mxu0 0
        %2041 = vmatprep.subr.bf16.mxu0 0
        %2042 = vmatpush1.bf16.xpose.msra.mxu0 0
        %2043 = vmatprep.subr.bf16.mxu0 0
        %2044 = vmatpush1.bf16.xpose.msra.mxu0 0
        %2045 = vmatprep.subr.bf16.mxu0 0
        %2046 = vmatpush1.bf16.xpose.msra.mxu0 0
        %2047 = vmatprep.subr.bf16.mxu0 0
        %2048 = vmatpush1.bf16.xpose.msra.mxu0 0
        %2049 = vmatprep.subr.bf16.mxu0 0
        %2050 = vmatpush1.bf16.xpose.msra.mxu0 %v2033
        %2051 = vmatprep.subr.bf16.mxu0 0
        %2052 = vmatpush2.bf16.xpose.msra.mxu0 0
        %2053 = vmatprep.subr.bf16.mxu0 0
        %2054 = vmatpush2.bf16.xpose.msra.mxu0 0
        %2055 = vmatprep.subr.bf16.mxu0 0
        %2056 = vmatpush2.bf16.xpose.msra.mxu0 0
        %2057 = vmatprep.subr.bf16.mxu0 0
        %2058 = vmatpush2.bf16.xpose.msra.mxu0 0
        %2059 = vmatprep.subr.bf16.mxu0 0
        %2060 = vmatpush2.bf16.xpose.msra.mxu0 0
        %2061 = vmatprep.subr.bf16.mxu0 0
        %2062 = vmatpush2.bf16.xpose.msra.mxu0 0
        %2063 = vmatprep.subr.bf16.mxu0 0
        %2064 = vmatpush2.bf16.xpose.msra.mxu0 0
        %2065 = vmatprep.subr.bf16.mxu0 0
        %2066 = vmatpush2.bf16.xpose.msra.mxu0 0
        %2067 = vmatprep.mubr.bf16.mxu0 0
        %2068 = vmatmul.mubr.bf16.gmra.mxu0 %v2030
        %v2069 = vpop.f32.mrf.mxu0
        %v2070 = vadd.f32 0.0, %v2069
        %v2071 = vpop.f32.mrf.mxu0
        %v2072 = vpop.f32.mrf.mxu0
        %v2073 = vpop.f32.mrf.mxu0
        %2074 = vdwg.mxu0
        %v2076 = vsel %vm2028, %v2017, 0
        %v2079 = vsel %vm2028, %v2023, 0
        %2081 = vmatprep.subr.bf16.mxu0 0
        %2082 = vmatpush1.bf16.xpose.msra.mxu0 0
        %2083 = vmatprep.subr.bf16.mxu0 0
        %2084 = vmatpush1.bf16.xpose.msra.mxu0 0
        %2085 = vmatprep.subr.bf16.mxu0 0
        %2086 = vmatpush1.bf16.xpose.msra.mxu0 0
        %2087 = vmatprep.subr.bf16.mxu0 0
        %2088 = vmatpush1.bf16.xpose.msra.mxu0 0
        %2089 = vmatprep.subr.bf16.mxu0 0
        %2090 = vmatpush1.bf16.xpose.msra.mxu0 0
        %2091 = vmatprep.subr.bf16.mxu0 0
        %2092 = vmatpush1.bf16.xpose.msra.mxu0 0
        %2093 = vmatprep.subr.bf16.mxu0 0
        %2094 = vmatpush1.bf16.xpose.msra.mxu0 0
        %2095 = vmatprep.subr.bf16.mxu0 0
        %2096 = vmatpush1.bf16.xpose.msra.mxu0 %v2079
        %2097 = vmatprep.subr.bf16.mxu0 0
        %2098 = vmatpush2.bf16.xpose.msra.mxu0 0
        %2099 = vmatprep.subr.bf16.mxu0 0
        %2100 = vmatpush2.bf16.xpose.msra.mxu0 0
        %2101 = vmatprep.subr.bf16.mxu0 0
        %2102 = vmatpush2.bf16.xpose.msra.mxu0 0
        %2103 = vmatprep.subr.bf16.mxu0 0
        %2104 = vmatpush2.bf16.xpose.msra.mxu0 0
        %2105 = vmatprep.subr.bf16.mxu0 0
        %2106 = vmatpush2.bf16.xpose.msra.mxu0 0
        %2107 = vmatprep.subr.bf16.mxu0 0
        %2108 = vmatpush2.bf16.xpose.msra.mxu0 0
        %2109 = vmatprep.subr.bf16.mxu0 0
        %2110 = vmatpush2.bf16.xpose.msra.mxu0 0
        %2111 = vmatprep.subr.bf16.mxu0 0
        %2112 = vmatpush2.bf16.xpose.msra.mxu0 0
        %2113 = vmatprep.mubr.bf16.mxu0 0
        %2114 = vmatmul.mubr.bf16.gmra.mxu0 %v2076
        %v2115 = vpop.f32.mrf.mxu0
        %v2116 = vadd.f32 0.0, %v2115
        %v2117 = vpop.f32.mrf.mxu0
        %v2118 = vpop.f32.mrf.mxu0
        %v2119 = vpop.f32.mrf.mxu0
        %2120 = vdwg.mxu0
        %v2122 = vsel %vm2028, %v2018, 0
        %v2125 = vsel %vm2028, %v2024, 0
        %2127 = vmatprep.subr.bf16.mxu0 0
        %2128 = vmatpush1.bf16.xpose.msra.mxu0 0
        %2129 = vmatprep.subr.bf16.mxu0 0
        %2130 = vmatpush1.bf16.xpose.msra.mxu0 0
        %2131 = vmatprep.subr.bf16.mxu0 0
        %2132 = vmatpush1.bf16.xpose.msra.mxu0 0
        %2133 = vmatprep.subr.bf16.mxu0 0
        %2134 = vmatpush1.bf16.xpose.msra.mxu0 0
        %2135 = vmatprep.subr.bf16.mxu0 0
        %2136 = vmatpush1.bf16.xpose.msra.mxu0 0
        %2137 = vmatprep.subr.bf16.mxu0 0
        %2138 = vmatpush1.bf16.xpose.msra.mxu0 0
        %2139 = vmatprep.subr.bf16.mxu0 0
        %2140 = vmatpush1.bf16.xpose.msra.mxu0 0
        %2141 = vmatprep.subr.bf16.mxu0 0
        %2142 = vmatpush1.bf16.xpose.msra.mxu0 %v2125
        %2143 = vmatprep.subr.bf16.mxu0 0
        %2144 = vmatpush2.bf16.xpose.msra.mxu0 0
        %2145 = vmatprep.subr.bf16.mxu0 0
        %2146 = vmatpush2.bf16.xpose.msra.mxu0 0
        %2147 = vmatprep.subr.bf16.mxu0 0
        %2148 = vmatpush2.bf16.xpose.msra.mxu0 0
        %2149 = vmatprep.subr.bf16.mxu0 0
        %2150 = vmatpush2.bf16.xpose.msra.mxu0 0
        %2151 = vmatprep.subr.bf16.mxu0 0
        %2152 = vmatpush2.bf16.xpose.msra.mxu0 0
        %2153 = vmatprep.subr.bf16.mxu0 0
        %2154 = vmatpush2.bf16.xpose.msra.mxu0 0
        %2155 = vmatprep.subr.bf16.mxu0 0
        %2156 = vmatpush2.bf16.xpose.msra.mxu0 0
        %2157 = vmatprep.subr.bf16.mxu0 0
        %2158 = vmatpush2.bf16.xpose.msra.mxu0 0
        %2159 = vmatprep.mubr.bf16.mxu0 0
        %2160 = vmatmul.mubr.bf16.gmra.mxu0 %v2122
        %v2161 = vpop.f32.mrf.mxu0
        %v2162 = vadd.f32 0.0, %v2161
        %v2163 = vpop.f32.mrf.mxu0
        %v2164 = vpop.f32.mrf.mxu0
        %v2165 = vpop.f32.mrf.mxu0
        %2166 = vdwg.mxu0
        %v2168 = vsel %vm2028, %v2019, 0
        %v2171 = vsel %vm2028, %v2025, 0
        %2173 = vmatprep.subr.bf16.mxu0 0
        %2174 = vmatpush1.bf16.xpose.msra.mxu0 0
        %2175 = vmatprep.subr.bf16.mxu0 0
        %2176 = vmatpush1.bf16.xpose.msra.mxu0 0
        %2177 = vmatprep.subr.bf16.mxu0 0
        %2178 = vmatpush1.bf16.xpose.msra.mxu0 0
        %2179 = vmatprep.subr.bf16.mxu0 0
        %2180 = vmatpush1.bf16.xpose.msra.mxu0 0
        %2181 = vmatprep.subr.bf16.mxu0 0
        %2182 = vmatpush1.bf16.xpose.msra.mxu0 0
        %2183 = vmatprep.subr.bf16.mxu0 0
        %2184 = vmatpush1.bf16.xpose.msra.mxu0 0
        %2185 = vmatprep.subr.bf16.mxu0 0
        %2186 = vmatpush1.bf16.xpose.msra.mxu0 0
        %2187 = vmatprep.subr.bf16.mxu0 0
        %2188 = vmatpush1.bf16.xpose.msra.mxu0 %v2171
        %2189 = vmatprep.subr.bf16.mxu0 0
        %2190 = vmatpush2.bf16.xpose.msra.mxu0 0
        %2191 = vmatprep.subr.bf16.mxu0 0
        %2192 = vmatpush2.bf16.xpose.msra.mxu0 0
        %2193 = vmatprep.subr.bf16.mxu0 0
        %2194 = vmatpush2.bf16.xpose.msra.mxu0 0
        %2195 = vmatprep.subr.bf16.mxu0 0
        %2196 = vmatpush2.bf16.xpose.msra.mxu0 0
        %2197 = vmatprep.subr.bf16.mxu0 0
        %2198 = vmatpush2.bf16.xpose.msra.mxu0 0
        %2199 = vmatprep.subr.bf16.mxu0 0
        %2200 = vmatpush2.bf16.xpose.msra.mxu0 0
        %2201 = vmatprep.subr.bf16.mxu0 0
        %2202 = vmatpush2.bf16.xpose.msra.mxu0 0
        %2203 = vmatprep.subr.bf16.mxu0 0
        %2204 = vmatpush2.bf16.xpose.msra.mxu0 0
        %2205 = vmatprep.mubr.bf16.mxu0 0
        %2206 = vmatmul.mubr.bf16.gmra.mxu0 %v2168
        %v2207 = vpop.f32.mrf.mxu0
        %v2208 = vadd.f32 0.0, %v2207
        %v2209 = vpop.f32.mrf.mxu0
        %v2210 = vpop.f32.mrf.mxu0
        %v2211 = vpop.f32.mrf.mxu0
        %2212 = vdwg.mxu0
        %v2214 = vsel %vm2028, %v2020, 0
        %v2217 = vsel %vm2028, %v2026, 0
        %2219 = vmatprep.subr.bf16.mxu0 0
        %2220 = vmatpush1.bf16.xpose.msra.mxu0 0
        %2221 = vmatprep.subr.bf16.mxu0 0
        %2222 = vmatpush1.bf16.xpose.msra.mxu0 0
        %2223 = vmatprep.subr.bf16.mxu0 0
        %2224 = vmatpush1.bf16.xpose.msra.mxu0 0
        %2225 = vmatprep.subr.bf16.mxu0 0
        %2226 = vmatpush1.bf16.xpose.msra.mxu0 0
        %2227 = vmatprep.subr.bf16.mxu0 0
        %2228 = vmatpush1.bf16.xpose.msra.mxu0 0
        %2229 = vmatprep.subr.bf16.mxu0 0
        %2230 = vmatpush1.bf16.xpose.msra.mxu0 0
        %2231 = vmatprep.subr.bf16.mxu0 0
        %2232 = vmatpush1.bf16.xpose.msra.mxu0 0
        %2233 = vmatprep.subr.bf16.mxu0 0
        %2234 = vmatpush1.bf16.xpose.msra.mxu0 %v2217
        %2235 = vmatprep.subr.bf16.mxu0 0
        %2236 = vmatpush2.bf16.xpose.msra.mxu0 0
        %2237 = vmatprep.subr.bf16.mxu0 0
        %2238 = vmatpush2.bf16.xpose.msra.mxu0 0
        %2239 = vmatprep.subr.bf16.mxu0 0
        %2240 = vmatpush2.bf16.xpose.msra.mxu0 0
        %2241 = vmatprep.subr.bf16.mxu0 0
        %2242 = vmatpush2.bf16.xpose.msra.mxu0 0
        %2243 = vmatprep.subr.bf16.mxu0 0
        %2244 = vmatpush2.bf16.xpose.msra.mxu0 0
        %2245 = vmatprep.subr.bf16.mxu0 0
        %2246 = vmatpush2.bf16.xpose.msra.mxu0 0
        %2247 = vmatprep.subr.bf16.mxu0 0
        %2248 = vmatpush2.bf16.xpose.msra.mxu0 0
        %2249 = vmatprep.subr.bf16.mxu0 0
        %2250 = vmatpush2.bf16.xpose.msra.mxu0 0
        %2251 = vmatprep.mubr.bf16.mxu0 0
        %2252 = vmatmul.mubr.bf16.gmra.mxu0 %v2214
        %v2253 = vpop.f32.mrf.mxu0
        %v2254 = vadd.f32 0.0, %v2253
        %v2255 = vpop.f32.mrf.mxu0
        %v2256 = vpop.f32.mrf.mxu0
        %v2257 = vpop.f32.mrf.mxu0
        %2258 = vdwg.mxu0
        %v2260 = vsel %vm2028, %v2021, 0
        %v2263 = vsel %vm2028, %v2027, 0
        %2265 = vmatprep.subr.bf16.mxu0 0
        %2266 = vmatpush1.bf16.xpose.msra.mxu0 0
        %2267 = vmatprep.subr.bf16.mxu0 0
        %2268 = vmatpush1.bf16.xpose.msra.mxu0 0
        %2269 = vmatprep.subr.bf16.mxu0 0
        %2270 = vmatpush1.bf16.xpose.msra.mxu0 0
        %2271 = vmatprep.subr.bf16.mxu0 0
        %2272 = vmatpush1.bf16.xpose.msra.mxu0 0
        %2273 = vmatprep.subr.bf16.mxu0 0
        %2274 = vmatpush1.bf16.xpose.msra.mxu0 0
        %2275 = vmatprep.subr.bf16.mxu0 0
        %2276 = vmatpush1.bf16.xpose.msra.mxu0 0
        %2277 = vmatprep.subr.bf16.mxu0 0
        %2278 = vmatpush1.bf16.xpose.msra.mxu0 0
        %2279 = vmatprep.subr.bf16.mxu0 0
        %2280 = vmatpush1.bf16.xpose.msra.mxu0 %v2263
        %2281 = vmatprep.subr.bf16.mxu0 0
        %2282 = vmatpush2.bf16.xpose.msra.mxu0 0
        %2283 = vmatprep.subr.bf16.mxu0 0
        %2284 = vmatpush2.bf16.xpose.msra.mxu0 0
        %2285 = vmatprep.subr.bf16.mxu0 0
        %2286 = vmatpush2.bf16.xpose.msra.mxu0 0
        %2287 = vmatprep.subr.bf16.mxu0 0
        %2288 = vmatpush2.bf16.xpose.msra.mxu0 0
        %2289 = vmatprep.subr.bf16.mxu0 0
        %2290 = vmatpush2.bf16.xpose.msra.mxu0 0
        %2291 = vmatprep.subr.bf16.mxu0 0
        %2292 = vmatpush2.bf16.xpose.msra.mxu0 0
        %2293 = vmatprep.subr.bf16.mxu0 0
        %2294 = vmatpush2.bf16.xpose.msra.mxu0 0
        %2295 = vmatprep.subr.bf16.mxu0 0
        %2296 = vmatpush2.bf16.xpose.msra.mxu0 0
        %2297 = vmatprep.mubr.bf16.mxu0 0
        %2298 = vmatmul.mubr.bf16.gmra.mxu0 %v2260
        %v2299 = vpop.f32.mrf.mxu0
        %v2300 = vadd.f32 0.0, %v2299
        %v2301 = vpop.f32.mrf.mxu0
        %v2302 = vpop.f32.mrf.mxu0
        %v2303 = vpop.f32.mrf.mxu0
        %2304 = vdwg.mxu0
        %v2305 = vmul.f32 %v2070, 0.25
        %v2306 = vmul.f32 %v2116, 0.25
        %v2307 = vmul.f32 %v2162, 0.25
        %v2308 = vmul.f32 %v2208, 0.25
        %v2309 = vmul.f32 %v2254, 0.25
        %v2310 = vmul.f32 %v2300, 0.25
        %v2311 = vadd.f32 %v2305, %v673
        %v2312 = vadd.f32 %v2306, %v673
        %v2313 = vadd.f32 %v2307, %v673
        %v2314 = vadd.f32 %v2308, %v673
        %v2315 = vadd.f32 %v2309, %v673
        %v2316 = vadd.f32 %v2310, %v673
        %vm2317 = vcmask 64512
        %v2318 = vsel %vm2317, %v2311, -inf
        %2319 = vmax.xlane.f32.xlu0 %v2318
        %v2320 = vpop.xlane.xlu0 %2319
        %v2321 = vsel %vm2317, %v2312, -inf
        %2322 = vmax.xlane.f32.xlu0 %v2321
        %v2323 = vpop.xlane.xlu0 %2322
        %v2324 = vsel %vm2317, %v2313, -inf
        %2325 = vmax.xlane.f32.xlu0 %v2324
        %v2326 = vpop.xlane.xlu0 %2325
        %v2327 = vsel %vm2317, %v2314, -inf
        %2328 = vmax.xlane.f32.xlu0 %v2327
        %v2329 = vpop.xlane.xlu0 %2328
        %v2330 = vsel %vm2317, %v2315, -inf
        %2331 = vmax.xlane.f32.xlu0 %v2330
        %v2332 = vpop.xlane.xlu0 %2331
        %v2333 = vsel %vm2317, %v2316, -inf
        %2334 = vmax.xlane.f32.xlu0 %v2333
        %v2335 = vpop.xlane.xlu0 %2334
        %v2336 = vsub.f32 %v2311, %v2320
        %v2337 = vsub.f32 %v2312, %v2323
        %v2338 = vsub.f32 %v2313, %v2326
        %v2339 = vsub.f32 %v2314, %v2329
        %v2340 = vsub.f32 %v2315, %v2332
        %v2341 = vsub.f32 %v2316, %v2335
        %v2342 = vmul.f32 %v2336, 1.442695
        %v2343 = vpow.pop %v2342
        %v2344 = vmul.f32 %v2337, 1.442695
        %v2345 = vpow.pop %v2344
        %v2346 = vmul.f32 %v2338, 1.442695
        %v2347 = vpow.pop %v2346
        %v2348 = vmul.f32 %v2339, 1.442695
        %v2349 = vpow.pop %v2348
        %v2350 = vmul.f32 %v2340, 1.442695
        %v2351 = vpow.pop %v2350
        %v2352 = vmul.f32 %v2341, 1.442695
        %v2353 = vpow.pop %v2352
        %v2354 = vsel %vm2317, %v2343, 0.0
        %2355 = vadd.xlane.f32.xlu0 %v2354
        %v2356 = vpop.xlane.xlu0 %2355
        %v2357 = vsel %vm2317, %v2345, 0.0
        %2358 = vadd.xlane.f32.xlu0 %v2357
        %v2359 = vpop.xlane.xlu0 %2358
        %v2360 = vsel %vm2317, %v2347, 0.0
        %2361 = vadd.xlane.f32.xlu0 %v2360
        %v2362 = vpop.xlane.xlu0 %2361
        %v2363 = vsel %vm2317, %v2349, 0.0
        %2364 = vadd.xlane.f32.xlu0 %v2363
        %v2365 = vpop.xlane.xlu0 %2364
        %v2366 = vsel %vm2317, %v2351, 0.0
        %2367 = vadd.xlane.f32.xlu0 %v2366
        %v2368 = vpop.xlane.xlu0 %2367
        %v2369 = vsel %vm2317, %v2353, 0.0
        %2370 = vadd.xlane.f32.xlu0 %v2369
        %v2371 = vpop.xlane.xlu0 %2370
        %v2372 = vrcp.pop %v2356
        %v2373 = vrcp.pop %v2359
        %v2374 = vrcp.pop %v2362
        %v2375 = vrcp.pop %v2365
        %v2376 = vrcp.pop %v2368
        %v2377 = vrcp.pop %v2371
        %v2378 = vmul.f32 %v2343, %v2372
        %v2379 = vmul.f32 %v2345, %v2373
        %v2380 = vmul.f32 %v2347, %v2374
        %v2381 = vmul.f32 %v2349, %v2375
        %v2382 = vmul.f32 %v2351, %v2376
        %v2383 = vmul.f32 %v2353, %v2377
        %v2384 = vpack.c.bf16 %v2378, %v2378
        %v2385 = vpack.c.bf16 %v2379, %v2379
        %v2386 = vpack.c.bf16 %v2380, %v2380
        %v2387 = vpack.c.bf16 %v2381, %v2381
        %v2388 = vpack.c.bf16 %v2382, %v2382
        %v2389 = vpack.c.bf16 %v2383, %v2383
        %v2390 = vpack.c.bf16 %v1914, %v1914
        %v2391 = vpack.c.bf16 %v1915, %v1915
        %v2392 = vpack.c.bf16 %v1964, %v1964
        %v2393 = vpack.c.bf16 %v1965, %v1965
        %v2394 = vpack.c.bf16 %v2014, %v2014
        %v2395 = vpack.c.bf16 %v2015, %v2015
        %v2397 = vsel %vm2317, %v2384, 0
        %vm2399 = vcmask 1043456
        %v2401 = vsel %vm2399, %v2390, 0
        %2403 = vmatprep.subr.bf16.mxu0 0
        %2404 = vmatpush1.bf16.msra.mxu0 0
        %2405 = vmatprep.subr.bf16.mxu0 0
        %2406 = vmatpush1.bf16.msra.mxu0 0
        %2407 = vmatprep.subr.bf16.mxu0 0
        %2408 = vmatpush1.bf16.msra.mxu0 0
        %2409 = vmatprep.subr.bf16.mxu0 0
        %2410 = vmatpush1.bf16.msra.mxu0 0
        %2411 = vmatprep.subr.bf16.mxu0 0
        %2412 = vmatpush1.bf16.msra.mxu0 0
        %2413 = vmatprep.subr.bf16.mxu0 0
        %2414 = vmatpush1.bf16.msra.mxu0 0
        %2415 = vmatprep.subr.bf16.mxu0 0
        %2416 = vmatpush1.bf16.msra.mxu0 0
        %2417 = vmatprep.subr.bf16.mxu0 0
        %2418 = vmatpush1.bf16.msra.mxu0 %v2401
        %2419 = vmatprep.subr.bf16.mxu0 0
        %2420 = vmatpush2.bf16.msra.mxu0 0
        %2421 = vmatprep.subr.bf16.mxu0 0
        %2422 = vmatpush2.bf16.msra.mxu0 0
        %2423 = vmatprep.subr.bf16.mxu0 0
        %2424 = vmatpush2.bf16.msra.mxu0 0
        %2425 = vmatprep.subr.bf16.mxu0 0
        %2426 = vmatpush2.bf16.msra.mxu0 0
        %2427 = vmatprep.subr.bf16.mxu0 0
        %2428 = vmatpush2.bf16.msra.mxu0 0
        %2429 = vmatprep.subr.bf16.mxu0 0
        %2430 = vmatpush2.bf16.msra.mxu0 0
        %2431 = vmatprep.subr.bf16.mxu0 0
        %2432 = vmatpush2.bf16.msra.mxu0 0
        %2433 = vmatprep.subr.bf16.mxu0 0
        %2434 = vmatpush2.bf16.msra.mxu0 0
        %2435 = vmatprep.mubr.bf16.mxu0 0
        %2436 = vmatmul.mubr.bf16.gmra.mxu0 %v2397
        %v2437 = vpop.f32.mrf.mxu0
        %v2438 = vadd.f32 0.0, %v2437
        %v2439 = vpop.f32.mrf.mxu0
        %v2440 = vpop.f32.mrf.mxu0
        %v2441 = vpop.f32.mrf.mxu0
        %2442 = vdwg.mxu0
        %v2444 = vsel %vm2317, %v2385, 0
        %v2447 = vsel %vm2399, %v2391, 0
        %2449 = vmatprep.subr.bf16.mxu0 0
        %2450 = vmatpush1.bf16.msra.mxu0 0
        %2451 = vmatprep.subr.bf16.mxu0 0
        %2452 = vmatpush1.bf16.msra.mxu0 0
        %2453 = vmatprep.subr.bf16.mxu0 0
        %2454 = vmatpush1.bf16.msra.mxu0 0
        %2455 = vmatprep.subr.bf16.mxu0 0
        %2456 = vmatpush1.bf16.msra.mxu0 0
        %2457 = vmatprep.subr.bf16.mxu0 0
        %2458 = vmatpush1.bf16.msra.mxu0 0
        %2459 = vmatprep.subr.bf16.mxu0 0
        %2460 = vmatpush1.bf16.msra.mxu0 0
        %2461 = vmatprep.subr.bf16.mxu0 0
        %2462 = vmatpush1.bf16.msra.mxu0 0
        %2463 = vmatprep.subr.bf16.mxu0 0
        %2464 = vmatpush1.bf16.msra.mxu0 %v2447
        %2465 = vmatprep.subr.bf16.mxu0 0
        %2466 = vmatpush2.bf16.msra.mxu0 0
        %2467 = vmatprep.subr.bf16.mxu0 0
        %2468 = vmatpush2.bf16.msra.mxu0 0
        %2469 = vmatprep.subr.bf16.mxu0 0
        %2470 = vmatpush2.bf16.msra.mxu0 0
        %2471 = vmatprep.subr.bf16.mxu0 0
        %2472 = vmatpush2.bf16.msra.mxu0 0
        %2473 = vmatprep.subr.bf16.mxu0 0
        %2474 = vmatpush2.bf16.msra.mxu0 0
        %2475 = vmatprep.subr.bf16.mxu0 0
        %2476 = vmatpush2.bf16.msra.mxu0 0
        %2477 = vmatprep.subr.bf16.mxu0 0
        %2478 = vmatpush2.bf16.msra.mxu0 0
        %2479 = vmatprep.subr.bf16.mxu0 0
        %2480 = vmatpush2.bf16.msra.mxu0 0
        %2481 = vmatprep.mubr.bf16.mxu0 0
        %2482 = vmatmul.mubr.bf16.gmra.mxu0 %v2444
        %v2483 = vpop.f32.mrf.mxu0
        %v2484 = vadd.f32 0.0, %v2483
        %v2485 = vpop.f32.mrf.mxu0
        %v2486 = vpop.f32.mrf.mxu0
        %v2487 = vpop.f32.mrf.mxu0
        %2488 = vdwg.mxu0
        %v2490 = vsel %vm2317, %v2386, 0
        %v2493 = vsel %vm2399, %v2392, 0
        %2495 = vmatprep.subr.bf16.mxu0 0
        %2496 = vmatpush1.bf16.msra.mxu0 0
        %2497 = vmatprep.subr.bf16.mxu0 0
        %2498 = vmatpush1.bf16.msra.mxu0 0
        %2499 = vmatprep.subr.bf16.mxu0 0
        %2500 = vmatpush1.bf16.msra.mxu0 0
        %2501 = vmatprep.subr.bf16.mxu0 0
        %2502 = vmatpush1.bf16.msra.mxu0 0
        %2503 = vmatprep.subr.bf16.mxu0 0
        %2504 = vmatpush1.bf16.msra.mxu0 0
        %2505 = vmatprep.subr.bf16.mxu0 0
        %2506 = vmatpush1.bf16.msra.mxu0 0
        %2507 = vmatprep.subr.bf16.mxu0 0
        %2508 = vmatpush1.bf16.msra.mxu0 0
        %2509 = vmatprep.subr.bf16.mxu0 0
        %2510 = vmatpush1.bf16.msra.mxu0 %v2493
        %2511 = vmatprep.subr.bf16.mxu0 0
        %2512 = vmatpush2.bf16.msra.mxu0 0
        %2513 = vmatprep.subr.bf16.mxu0 0
        %2514 = vmatpush2.bf16.msra.mxu0 0
        %2515 = vmatprep.subr.bf16.mxu0 0
        %2516 = vmatpush2.bf16.msra.mxu0 0
        %2517 = vmatprep.subr.bf16.mxu0 0
        %2518 = vmatpush2.bf16.msra.mxu0 0
        %2519 = vmatprep.subr.bf16.mxu0 0
        %2520 = vmatpush2.bf16.msra.mxu0 0
        %2521 = vmatprep.subr.bf16.mxu0 0
        %2522 = vmatpush2.bf16.msra.mxu0 0
        %2523 = vmatprep.subr.bf16.mxu0 0
        %2524 = vmatpush2.bf16.msra.mxu0 0
        %2525 = vmatprep.subr.bf16.mxu0 0
        %2526 = vmatpush2.bf16.msra.mxu0 0
        %2527 = vmatprep.mubr.bf16.mxu0 0
        %2528 = vmatmul.mubr.bf16.gmra.mxu0 %v2490
        %v2529 = vpop.f32.mrf.mxu0
        %v2530 = vadd.f32 0.0, %v2529
        %v2531 = vpop.f32.mrf.mxu0
        %v2532 = vpop.f32.mrf.mxu0
        %v2533 = vpop.f32.mrf.mxu0
        %2534 = vdwg.mxu0
        %v2536 = vsel %vm2317, %v2387, 0
        %v2539 = vsel %vm2399, %v2393, 0
        %2541 = vmatprep.subr.bf16.mxu0 0
        %2542 = vmatpush1.bf16.msra.mxu0 0
        %2543 = vmatprep.subr.bf16.mxu0 0
        %2544 = vmatpush1.bf16.msra.mxu0 0
        %2545 = vmatprep.subr.bf16.mxu0 0
        %2546 = vmatpush1.bf16.msra.mxu0 0
        %2547 = vmatprep.subr.bf16.mxu0 0
        %2548 = vmatpush1.bf16.msra.mxu0 0
        %2549 = vmatprep.subr.bf16.mxu0 0
        %2550 = vmatpush1.bf16.msra.mxu0 0
        %2551 = vmatprep.subr.bf16.mxu0 0
        %2552 = vmatpush1.bf16.msra.mxu0 0
        %2553 = vmatprep.subr.bf16.mxu0 0
        %2554 = vmatpush1.bf16.msra.mxu0 0
        %2555 = vmatprep.subr.bf16.mxu0 0
        %2556 = vmatpush1.bf16.msra.mxu0 %v2539
        %2557 = vmatprep.subr.bf16.mxu0 0
        %2558 = vmatpush2.bf16.msra.mxu0 0
        %2559 = vmatprep.subr.bf16.mxu0 0
        %2560 = vmatpush2.bf16.msra.mxu0 0
        %2561 = vmatprep.subr.bf16.mxu0 0
        %2562 = vmatpush2.bf16.msra.mxu0 0
        %2563 = vmatprep.subr.bf16.mxu0 0
        %2564 = vmatpush2.bf16.msra.mxu0 0
        %2565 = vmatprep.subr.bf16.mxu0 0
        %2566 = vmatpush2.bf16.msra.mxu0 0
        %2567 = vmatprep.subr.bf16.mxu0 0
        %2568 = vmatpush2.bf16.msra.mxu0 0
        %2569 = vmatprep.subr.bf16.mxu0 0
        %2570 = vmatpush2.bf16.msra.mxu0 0
        %2571 = vmatprep.subr.bf16.mxu0 0
        %2572 = vmatpush2.bf16.msra.mxu0 0
        %2573 = vmatprep.mubr.bf16.mxu0 0
        %2574 = vmatmul.mubr.bf16.gmra.mxu0 %v2536
        %v2575 = vpop.f32.mrf.mxu0
        %v2576 = vadd.f32 0.0, %v2575
        %v2577 = vpop.f32.mrf.mxu0
        %v2578 = vpop.f32.mrf.mxu0
        %v2579 = vpop.f32.mrf.mxu0
        %2580 = vdwg.mxu0
        %v2582 = vsel %vm2317, %v2388, 0
        %v2585 = vsel %vm2399, %v2394, 0
        %2587 = vmatprep.subr.bf16.mxu0 0
        %2588 = vmatpush1.bf16.msra.mxu0 0
        %2589 = vmatprep.subr.bf16.mxu0 0
        %2590 = vmatpush1.bf16.msra.mxu0 0
        %2591 = vmatprep.subr.bf16.mxu0 0
        %2592 = vmatpush1.bf16.msra.mxu0 0
        %2593 = vmatprep.subr.bf16.mxu0 0
        %2594 = vmatpush1.bf16.msra.mxu0 0
        %2595 = vmatprep.subr.bf16.mxu0 0
        %2596 = vmatpush1.bf16.msra.mxu0 0
        %2597 = vmatprep.subr.bf16.mxu0 0
        %2598 = vmatpush1.bf16.msra.mxu0 0
        %2599 = vmatprep.subr.bf16.mxu0 0
        %2600 = vmatpush1.bf16.msra.mxu0 0
        %2601 = vmatprep.subr.bf16.mxu0 0
        %2602 = vmatpush1.bf16.msra.mxu0 %v2585
        %2603 = vmatprep.subr.bf16.mxu0 0
        %2604 = vmatpush2.bf16.msra.mxu0 0
        %2605 = vmatprep.subr.bf16.mxu0 0
        %2606 = vmatpush2.bf16.msra.mxu0 0
        %2607 = vmatprep.subr.bf16.mxu0 0
        %2608 = vmatpush2.bf16.msra.mxu0 0
        %2609 = vmatprep.subr.bf16.mxu0 0
        %2610 = vmatpush2.bf16.msra.mxu0 0
        %2611 = vmatprep.subr.bf16.mxu0 0
        %2612 = vmatpush2.bf16.msra.mxu0 0
        %2613 = vmatprep.subr.bf16.mxu0 0
        %2614 = vmatpush2.bf16.msra.mxu0 0
        %2615 = vmatprep.subr.bf16.mxu0 0
        %2616 = vmatpush2.bf16.msra.mxu0 0
        %2617 = vmatprep.subr.bf16.mxu0 0
        %2618 = vmatpush2.bf16.msra.mxu0 0
        %2619 = vmatprep.mubr.bf16.mxu0 0
        %2620 = vmatmul.mubr.bf16.gmra.mxu0 %v2582
        %v2621 = vpop.f32.mrf.mxu0
        %v2622 = vadd.f32 0.0, %v2621
        %v2623 = vpop.f32.mrf.mxu0
        %v2624 = vpop.f32.mrf.mxu0
        %v2625 = vpop.f32.mrf.mxu0
        %2626 = vdwg.mxu0
        %v2628 = vsel %vm2317, %v2389, 0
        %v2631 = vsel %vm2399, %v2395, 0
        %2633 = vmatprep.subr.bf16.mxu0 0
        %2634 = vmatpush1.bf16.msra.mxu0 0
        %2635 = vmatprep.subr.bf16.mxu0 0
        %2636 = vmatpush1.bf16.msra.mxu0 0
        %2637 = vmatprep.subr.bf16.mxu0 0
        %2638 = vmatpush1.bf16.msra.mxu0 0
        %2639 = vmatprep.subr.bf16.mxu0 0
        %2640 = vmatpush1.bf16.msra.mxu0 0
        %2641 = vmatprep.subr.bf16.mxu0 0
        %2642 = vmatpush1.bf16.msra.mxu0 0
        %2643 = vmatprep.subr.bf16.mxu0 0
        %2644 = vmatpush1.bf16.msra.mxu0 0
        %2645 = vmatprep.subr.bf16.mxu0 0
        %2646 = vmatpush1.bf16.msra.mxu0 0
        %2647 = vmatprep.subr.bf16.mxu0 0
        %2648 = vmatpush1.bf16.msra.mxu0 %v2631
        %2649 = vmatprep.subr.bf16.mxu0 0
        %2650 = vmatpush2.bf16.msra.mxu0 0
        %2651 = vmatprep.subr.bf16.mxu0 0
        %2652 = vmatpush2.bf16.msra.mxu0 0
        %2653 = vmatprep.subr.bf16.mxu0 0
        %2654 = vmatpush2.bf16.msra.mxu0 0
        %2655 = vmatprep.subr.bf16.mxu0 0
        %2656 = vmatpush2.bf16.msra.mxu0 0
        %2657 = vmatprep.subr.bf16.mxu0 0
        %2658 = vmatpush2.bf16.msra.mxu0 0
        %2659 = vmatprep.subr.bf16.mxu0 0
        %2660 = vmatpush2.bf16.msra.mxu0 0
        %2661 = vmatprep.subr.bf16.mxu0 0
        %2662 = vmatpush2.bf16.msra.mxu0 0
        %2663 = vmatprep.subr.bf16.mxu0 0
        %2664 = vmatpush2.bf16.msra.mxu0 0
        %2665 = vmatprep.mubr.bf16.mxu0 0
        %2666 = vmatmul.mubr.bf16.gmra.mxu0 %v2628
        %v2667 = vpop.f32.mrf.mxu0
        %v2668 = vadd.f32 0.0, %v2667
        %v2669 = vpop.f32.mrf.mxu0
        %v2670 = vpop.f32.mrf.mxu0
        %v2671 = vpop.f32.mrf.mxu0
        %2672 = vdwg.mxu0
        %v2673 = vcombine.high %v2438, 0.0
        %v2675 = vunpack.c.l.s4 1983009808
        %v2676 = vunpack.c.0.s8 %v2675
        %v2677 = vlaneseq
        %v2678 = vshrl.u32 %v2677, 7
        %v2679 = vsub.s32 %v2676, %v2678
        %v2680 = vrot.slane %v2438, %v2679
        %v2682 = vunpack.c.l.s4 1983009808
        %v2683 = vunpack.c.0.s8 %v2682
        %v2684 = vlaneseq
        %v2685 = vshrl.u32 %v2684, 7
        %v2686 = vsub.s32 %v2683, %v2685
        %v2687 = vrot.slane %v2673, %v2686
        %v2688 = vcombine.high %v2484, 0.0
        %v2690 = vunpack.c.l.s4 1983009808
        %v2691 = vunpack.c.0.s8 %v2690
        %v2692 = vlaneseq
        %v2693 = vshrl.u32 %v2692, 7
        %v2694 = vsub.s32 %v2691, %v2693
        %v2695 = vrot.slane %v2484, %v2694
        %v2697 = vunpack.c.l.s4 1983009808
        %v2698 = vunpack.c.0.s8 %v2697
        %v2699 = vlaneseq
        %v2700 = vshrl.u32 %v2699, 7
        %v2701 = vsub.s32 %v2698, %v2700
        %v2702 = vrot.slane %v2688, %v2701
        %v2703 = vcombine.low %v2680, %v2695
        %v2704 = vcombine.high %v2680, %v2695
        %v2706 = vunpack.c.l.s4 1934713408
        %v2707 = vunpack.c.0.s8 %v2706
        %v2708 = vlaneseq
        %v2709 = vshrl.u32 %v2708, 7
        %v2710 = vsub.s32 %v2707, %v2709
        %v2711 = vrot.slane %v2703, %v2710
        %v2713 = vunpack.c.l.s4 1934713408
        %v2714 = vunpack.c.0.s8 %v2713
        %v2715 = vlaneseq
        %v2716 = vshrl.u32 %v2715, 7
        %v2717 = vsub.s32 %v2714, %v2716
        %v2718 = vrot.slane %v2704, %v2717
        %v2719 = vcombine.low %v2687, %v2702
        %v2720 = vcombine.high %v2687, %v2702
        %v2722 = vunpack.c.l.s4 1934713408
        %v2723 = vunpack.c.0.s8 %v2722
        %v2724 = vlaneseq
        %v2725 = vshrl.u32 %v2724, 7
        %v2726 = vsub.s32 %v2723, %v2725
        %v2727 = vrot.slane %v2719, %v2726
        %v2729 = vunpack.c.l.s4 1934713408
        %v2730 = vunpack.c.0.s8 %v2729
        %v2731 = vlaneseq
        %v2732 = vshrl.u32 %v2731, 7
        %v2733 = vsub.s32 %v2730, %v2732
        %v2734 = vrot.slane %v2720, %v2733
        %v2735 = vcombine.high %v2711, 0.0
        %v2736 = vcombine.high %v2718, 0.0
        %v2737 = vcombine.high %v2727, 0.0
        %v2738 = vcombine.high %v2734, 0.0
        %v2739 = vcombine.high %v2530, 0.0
        %v2741 = vunpack.c.l.s4 1983009808
        %v2742 = vunpack.c.0.s8 %v2741
        %v2743 = vlaneseq
        %v2744 = vshrl.u32 %v2743, 7
        %v2745 = vsub.s32 %v2742, %v2744
        %v2746 = vrot.slane %v2530, %v2745
        %v2748 = vunpack.c.l.s4 1983009808
        %v2749 = vunpack.c.0.s8 %v2748
        %v2750 = vlaneseq
        %v2751 = vshrl.u32 %v2750, 7
        %v2752 = vsub.s32 %v2749, %v2751
        %v2753 = vrot.slane %v2739, %v2752
        %v2754 = vcombine.high %v2576, 0.0
        %v2756 = vunpack.c.l.s4 1983009808
        %v2757 = vunpack.c.0.s8 %v2756
        %v2758 = vlaneseq
        %v2759 = vshrl.u32 %v2758, 7
        %v2760 = vsub.s32 %v2757, %v2759
        %v2761 = vrot.slane %v2576, %v2760
        %v2763 = vunpack.c.l.s4 1983009808
        %v2764 = vunpack.c.0.s8 %v2763
        %v2765 = vlaneseq
        %v2766 = vshrl.u32 %v2765, 7
        %v2767 = vsub.s32 %v2764, %v2766
        %v2768 = vrot.slane %v2754, %v2767
        %v2769 = vcombine.low %v2746, %v2761
        %v2770 = vcombine.high %v2746, %v2761
        %v2772 = vunpack.c.l.s4 1934713408
        %v2773 = vunpack.c.0.s8 %v2772
        %v2774 = vlaneseq
        %v2775 = vshrl.u32 %v2774, 7
        %v2776 = vsub.s32 %v2773, %v2775
        %v2777 = vrot.slane %v2769, %v2776
        %v2779 = vunpack.c.l.s4 1934713408
        %v2780 = vunpack.c.0.s8 %v2779
        %v2781 = vlaneseq
        %v2782 = vshrl.u32 %v2781, 7
        %v2783 = vsub.s32 %v2780, %v2782
        %v2784 = vrot.slane %v2770, %v2783
        %v2785 = vcombine.low %v2753, %v2768
        %v2786 = vcombine.high %v2753, %v2768
        %v2788 = vunpack.c.l.s4 1934713408
        %v2789 = vunpack.c.0.s8 %v2788
        %v2790 = vlaneseq
        %v2791 = vshrl.u32 %v2790, 7
        %v2792 = vsub.s32 %v2789, %v2791
        %v2793 = vrot.slane %v2785, %v2792
        %v2795 = vunpack.c.l.s4 1934713408
        %v2796 = vunpack.c.0.s8 %v2795
        %v2797 = vlaneseq
        %v2798 = vshrl.u32 %v2797, 7
        %v2799 = vsub.s32 %v2796, %v2798
        %v2800 = vrot.slane %v2786, %v2799
        %v2801 = vcombine.high %v2777, 0.0
        %v2802 = vcombine.high %v2784, 0.0
        %v2803 = vcombine.high %v2793, 0.0
        %v2804 = vcombine.high %v2800, 0.0
        %v2805 = vcombine.high %v2622, 0.0
        %v2807 = vunpack.c.l.s4 1983009808
        %v2808 = vunpack.c.0.s8 %v2807
        %v2809 = vlaneseq
        %v2810 = vshrl.u32 %v2809, 7
        %v2811 = vsub.s32 %v2808, %v2810
        %v2812 = vrot.slane %v2622, %v2811
        %v2814 = vunpack.c.l.s4 1983009808
        %v2815 = vunpack.c.0.s8 %v2814
        %v2816 = vlaneseq
        %v2817 = vshrl.u32 %v2816, 7
        %v2818 = vsub.s32 %v2815, %v2817
        %v2819 = vrot.slane %v2805, %v2818
        %v2820 = vcombine.high %v2668, 0.0
        %v2822 = vunpack.c.l.s4 1983009808
        %v2823 = vunpack.c.0.s8 %v2822
        %v2824 = vlaneseq
        %v2825 = vshrl.u32 %v2824, 7
        %v2826 = vsub.s32 %v2823, %v2825
        %v2827 = vrot.slane %v2668, %v2826
        %v2829 = vunpack.c.l.s4 1983009808
        %v2830 = vunpack.c.0.s8 %v2829
        %v2831 = vlaneseq
        %v2832 = vshrl.u32 %v2831, 7
        %v2833 = vsub.s32 %v2830, %v2832
        %v2834 = vrot.slane %v2820, %v2833
        %v2835 = vcombine.low %v2812, %v2827
        %v2836 = vcombine.high %v2812, %v2827
        %v2838 = vunpack.c.l.s4 1934713408
        %v2839 = vunpack.c.0.s8 %v2838
        %v2840 = vlaneseq
        %v2841 = vshrl.u32 %v2840, 7
        %v2842 = vsub.s32 %v2839, %v2841
        %v2843 = vrot.slane %v2835, %v2842
        %v2845 = vunpack.c.l.s4 1934713408
        %v2846 = vunpack.c.0.s8 %v2845
        %v2847 = vlaneseq
        %v2848 = vshrl.u32 %v2847, 7
        %v2849 = vsub.s32 %v2846, %v2848
        %v2850 = vrot.slane %v2836, %v2849
        %v2851 = vcombine.low %v2819, %v2834
        %v2852 = vcombine.high %v2819, %v2834
        %v2854 = vunpack.c.l.s4 1934713408
        %v2855 = vunpack.c.0.s8 %v2854
        %v2856 = vlaneseq
        %v2857 = vshrl.u32 %v2856, 7
        %v2858 = vsub.s32 %v2855, %v2857
        %v2859 = vrot.slane %v2851, %v2858
        %v2861 = vunpack.c.l.s4 1934713408
        %v2862 = vunpack.c.0.s8 %v2861
        %v2863 = vlaneseq
        %v2864 = vshrl.u32 %v2863, 7
        %v2865 = vsub.s32 %v2862, %v2864
        %v2866 = vrot.slane %v2852, %v2865
        %v2867 = vcombine.high %v2843, 0.0
        %v2868 = vcombine.high %v2850, 0.0
        %v2869 = vcombine.high %v2859, 0.0
        %v2870 = vcombine.high %v2866, 0.0
        %v2871 = vcombine.low %v2711, %v2718
        %v2873 = vunpack.c.l.s4 1983009808
        %v2874 = vunpack.c.0.s8 %v2873
        %v2875 = vlaneseq
        %v2876 = vshrl.u32 %v2875, 7
        %v2877 = vsub.s32 %v2874, %v2876
        %v2878 = vrot.slane %v2871, %v2877
        %v2879 = vcombine.low %v2735, %v2736
        %v2881 = vunpack.c.l.s4 1983009808
        %v2882 = vunpack.c.0.s8 %v2881
        %v2883 = vlaneseq
        %v2884 = vshrl.u32 %v2883, 7
        %v2885 = vsub.s32 %v2882, %v2884
        %v2886 = vrot.slane %v2879, %v2885
        %v2887 = vcombine.low %v2727, %v2734
        %v2889 = vunpack.c.l.s4 1983009808
        %v2890 = vunpack.c.0.s8 %v2889
        %v2891 = vlaneseq
        %v2892 = vshrl.u32 %v2891, 7
        %v2893 = vsub.s32 %v2890, %v2892
        %v2894 = vrot.slane %v2887, %v2893
        %v2895 = vcombine.low %v2737, %v2738
        %v2897 = vunpack.c.l.s4 1983009808
        %v2898 = vunpack.c.0.s8 %v2897
        %v2899 = vlaneseq
        %v2900 = vshrl.u32 %v2899, 7
        %v2901 = vsub.s32 %v2898, %v2900
        %v2902 = vrot.slane %v2895, %v2901
        %v2903 = vcombine.low %v2878, %v2886
        %v2905 = vunpack.c.l.s4 1934713408
        %v2906 = vunpack.c.0.s8 %v2905
        %v2907 = vlaneseq
        %v2908 = vshrl.u32 %v2907, 7
        %v2909 = vsub.s32 %v2906, %v2908
        %v2910 = vrot.slane %v2903, %v2909
        %v2911 = vcombine.low %v2894, %v2902
        %v2913 = vunpack.c.l.s4 1934713408
        %v2914 = vunpack.c.0.s8 %v2913
        %v2915 = vlaneseq
        %v2916 = vshrl.u32 %v2915, 7
        %v2917 = vsub.s32 %v2914, %v2916
        %v2918 = vrot.slane %v2911, %v2917
        %v2919 = vcombine.low %v2910, %v2918
        %v2920 = vcombine.high %v2910, %v2918
        %v2921 = vcombine.low %v2777, %v2784
        %v2923 = vunpack.c.l.s4 1983009808
        %v2924 = vunpack.c.0.s8 %v2923
        %v2925 = vlaneseq
        %v2926 = vshrl.u32 %v2925, 7
        %v2927 = vsub.s32 %v2924, %v2926
        %v2928 = vrot.slane %v2921, %v2927
        %v2929 = vcombine.low %v2801, %v2802
        %v2931 = vunpack.c.l.s4 1983009808
        %v2932 = vunpack.c.0.s8 %v2931
        %v2933 = vlaneseq
        %v2934 = vshrl.u32 %v2933, 7
        %v2935 = vsub.s32 %v2932, %v2934
        %v2936 = vrot.slane %v2929, %v2935
        %v2937 = vcombine.low %v2793, %v2800
        %v2939 = vunpack.c.l.s4 1983009808
        %v2940 = vunpack.c.0.s8 %v2939
        %v2941 = vlaneseq
        %v2942 = vshrl.u32 %v2941, 7
        %v2943 = vsub.s32 %v2940, %v2942
        %v2944 = vrot.slane %v2937, %v2943
        %v2945 = vcombine.low %v2803, %v2804
        %v2947 = vunpack.c.l.s4 1983009808
        %v2948 = vunpack.c.0.s8 %v2947
        %v2949 = vlaneseq
        %v2950 = vshrl.u32 %v2949, 7
        %v2951 = vsub.s32 %v2948, %v2950
        %v2952 = vrot.slane %v2945, %v2951
        %v2953 = vcombine.low %v2928, %v2936
        %v2955 = vunpack.c.l.s4 1934713408
        %v2956 = vunpack.c.0.s8 %v2955
        %v2957 = vlaneseq
        %v2958 = vshrl.u32 %v2957, 7
        %v2959 = vsub.s32 %v2956, %v2958
        %v2960 = vrot.slane %v2953, %v2959
        %v2961 = vcombine.low %v2944, %v2952
        %v2963 = vunpack.c.l.s4 1934713408
        %v2964 = vunpack.c.0.s8 %v2963
        %v2965 = vlaneseq
        %v2966 = vshrl.u32 %v2965, 7
        %v2967 = vsub.s32 %v2964, %v2966
        %v2968 = vrot.slane %v2961, %v2967
        %v2969 = vcombine.low %v2960, %v2968
        %v2970 = vcombine.high %v2960, %v2968
        %v2971 = vcombine.low %v2843, %v2850
        %v2973 = vunpack.c.l.s4 1983009808
        %v2974 = vunpack.c.0.s8 %v2973
        %v2975 = vlaneseq
        %v2976 = vshrl.u32 %v2975, 7
        %v2977 = vsub.s32 %v2974, %v2976
        %v2978 = vrot.slane %v2971, %v2977
        %v2979 = vcombine.low %v2867, %v2868
        %v2981 = vunpack.c.l.s4 1983009808
        %v2982 = vunpack.c.0.s8 %v2981
        %v2983 = vlaneseq
        %v2984 = vshrl.u32 %v2983, 7
        %v2985 = vsub.s32 %v2982, %v2984
        %v2986 = vrot.slane %v2979, %v2985
        %v2987 = vcombine.low %v2859, %v2866
        %v2989 = vunpack.c.l.s4 1983009808
        %v2990 = vunpack.c.0.s8 %v2989
        %v2991 = vlaneseq
        %v2992 = vshrl.u32 %v2991, 7
        %v2993 = vsub.s32 %v2990, %v2992
        %v2994 = vrot.slane %v2987, %v2993
        %v2995 = vcombine.low %v2869, %v2870
        %v2997 = vunpack.c.l.s4 1983009808
        %v2998 = vunpack.c.0.s8 %v2997
        %v2999 = vlaneseq
        %v3000 = vshrl.u32 %v2999, 7
        %v3001 = vsub.s32 %v2998, %v3000
        %v3002 = vrot.slane %v2995, %v3001
        %v3003 = vcombine.low %v2978, %v2986
        %v3005 = vunpack.c.l.s4 1934713408
        %v3006 = vunpack.c.0.s8 %v3005
        %v3007 = vlaneseq
        %v3008 = vshrl.u32 %v3007, 7
        %v3009 = vsub.s32 %v3006, %v3008
        %v3010 = vrot.slane %v3003, %v3009
        %v3011 = vcombine.low %v2994, %v3002
        %v3013 = vunpack.c.l.s4 1934713408
        %v3014 = vunpack.c.0.s8 %v3013
        %v3015 = vlaneseq
        %v3016 = vshrl.u32 %v3015, 7
        %v3017 = vsub.s32 %v3014, %v3016
        %v3018 = vrot.slane %v3011, %v3017
        %v3019 = vcombine.low %v3010, %v3018
        %v3020 = vcombine.high %v3010, %v3018
        %3024 = vrot.lane.b32.xlu0 %v2920, 16
        %v3025 = vpop.permute.xlu0 %3024
        %3026 = vrot.lane.b32.xlu0 %v2970, 16
        %v3027 = vpop.permute.xlu0 %3026
        %3028 = vrot.lane.b32.xlu0 %v3020, 16
        %v3029 = vpop.permute.xlu0 %3028
        %v3033 = vsel %vm2028, %v2919, %v3025
        %v3034 = vsel %vm2028, %v2969, %v3027
        %v3035 = vsel %vm2028, %v3019, %v3029
        %v3036 = vpack.c.bf16 %v3034, %v3033
        %v3037 = vpack.c.bf16 %v3035, %v3035
        %v3038 = vld [vmem:[%s9] sm:$0xf]
        %v3039 = vld [vmem:[%s9 + $0x4] sm:$0xf]
        %v3040 = vld [vmem:[%s9 + $0x8] sm:$0xf]
        %v3041 = vld [vmem:[%s9 + $0xc] sm:$0xf]
        %v3042 = vld [vmem:[#allocation6] sm:$0x1]
        %v3044 = vlaneseq
        %v3045 = vshrl.u32 %v3044, 7
        %v3046 = vsub.s32 0, %v3045
        %v3047 = vrot.slane %v3042, %v3046
        %v3053 = vunpack.c.l.b16 %v3038
        %v3054 = vunpack.c.l.b16 %v3039
        %v3055 = vunpack.c.l.b16 %v3040
        %v3056 = vunpack.c.l.b16 %v3041
        %v3057 = vpack.c.b16 %v3054, %v3053
        %v3058 = vpack.c.b16 %v3056, %v3055
        %v3062 = vsel %vm674, %v3036, 0
        %v3065 = vsel %vm674, %v3037, 0
        %3067 = vmatprep.subr.bf16.mxu0 0
        %3068 = vmatpush1.bf16.msra.mxu0 0
        %3069 = vmatprep.subr.bf16.mxu0 0
        %3070 = vmatpush1.bf16.msra.mxu0 0
        %3071 = vmatprep.subr.bf16.mxu0 0
        %3072 = vmatpush1.bf16.msra.mxu0 0
        %3073 = vmatprep.subr.bf16.mxu0 0
        %3074 = vmatpush1.bf16.msra.mxu0 0
        %3075 = vmatprep.subr.bf16.mxu0 0
        %3076 = vmatpush1.bf16.msra.mxu0 0
        %3077 = vmatprep.subr.bf16.mxu0 0
        %3078 = vmatpush1.bf16.msra.mxu0 0
        %3079 = vmatprep.subr.bf16.mxu0 0
        %3080 = vmatpush1.bf16.msra.mxu0 %v3058
        %3081 = vmatprep.subr.bf16.mxu0 0
        %3082 = vmatpush1.bf16.msra.mxu0 %v3057
        %3083 = vmatprep.subr.bf16.mxu0 0
        %3084 = vmatpush2.bf16.msra.mxu0 0
        %3085 = vmatprep.subr.bf16.mxu0 0
        %3086 = vmatpush2.bf16.msra.mxu0 0
        %3087 = vmatprep.subr.bf16.mxu0 0
        %3088 = vmatpush2.bf16.msra.mxu0 0
        %3089 = vmatprep.subr.bf16.mxu0 0
        %3090 = vmatpush2.bf16.msra.mxu0 0
        %3091 = vmatprep.subr.bf16.mxu0 0
        %3092 = vmatpush2.bf16.msra.mxu0 0
        %3093 = vmatprep.subr.bf16.mxu0 0
        %3094 = vmatpush2.bf16.msra.mxu0 0
        %3095 = vmatprep.subr.bf16.mxu0 0
        %3096 = vmatpush2.bf16.msra.mxu0 0
        %3097 = vmatprep.subr.bf16.mxu0 0
        %3098 = vmatpush2.bf16.msra.mxu0 0
        %3099 = vmatprep.mubr.bf16.mxu0 0
        %3100 = vmatmul.mubr.bf16.gmra.mxu0 %v3062
        %v3101 = vpop.f32.mrf.mxu0
        %v3102 = vadd.f32 %v3047, %v3101
        %v3103 = vpop.f32.mrf.mxu0
        %v3104 = vpop.f32.mrf.mxu0
        %v3105 = vadd.f32 %v3047, %v3104
        %v3106 = vpop.f32.mrf.mxu0
        %3107 = vmatprep.mubr.bf16.mxu0 0
        %3108 = vmatmul.mubr.bf16.gmra.mxu0 %v3065
        %v3109 = vpop.f32.mrf.mxu0
        %v3110 = vadd.f32 %v3047, %v3109
        %v3111 = vpop.f32.mrf.mxu0
        %v3112 = vpop.f32.mrf.mxu0
        %v3113 = vpop.f32.mrf.mxu0
        %3114 = vdwg.mxu0
        %v3115 = vadd.f32 %v665, %v3102
        %v3116 = vadd.f32 %v666, %v3105
        %v3117 = vadd.f32 %v667, %v3110
        %v3118 = vsel %vm674, %v3115, 0.0
        %3119 = vadd.xlane.f32.xlu0 %v3118
        %v3120 = vpop.xlane.xlu0 %3119
        %v3121 = vsel %vm674, %v3116, 0.0
        %3122 = vadd.xlane.f32.xlu0 %v3121
        %v3123 = vpop.xlane.xlu0 %3122
        %v3124 = vsel %vm674, %v3117, 0.0
        %3125 = vadd.xlane.f32.xlu0 %v3124
        %v3126 = vpop.xlane.xlu0 %3125
        %v3127 = vmul.f32 %v3120, %v684
        %v3128 = vmul.f32 %v3123, %v684
        %v3129 = vmul.f32 %v3126, %v684
        %v3130 = vsub.f32 %v3115, %v3127
        %v3131 = vsub.f32 %v3116, %v3128
        %v3132 = vsub.f32 %v3117, %v3129
        %v3133 = vmul.f32 %v3130, %v3130
        %v3134 = vmul.f32 %v3131, %v3131
        %v3135 = vmul.f32 %v3132, %v3132
        %v3136 = vsel %vm674, %v3133, 0.0
        %3137 = vadd.xlane.f32.xlu0 %v3136
        %v3138 = vpop.xlane.xlu0 %3137
        %v3139 = vsel %vm674, %v3134, 0.0
        %3140 = vadd.xlane.f32.xlu0 %v3139
        %v3141 = vpop.xlane.xlu0 %3140
        %v3142 = vsel %vm674, %v3135, 0.0
        %3143 = vadd.xlane.f32.xlu0 %v3142
        %v3144 = vpop.xlane.xlu0 %3143
        %v3145 = vmul.f32 %v3138, %v684
        %v3146 = vmul.f32 %v3141, %v684
        %v3147 = vmul.f32 %v3144, %v684
        %v3148 = vadd.f32 %v3145, 1e-05
        %v3149 = vadd.f32 %v3146, 1e-05
        %v3150 = vadd.f32 %v3147, 1e-05
        %v3151 = vrsqrt.pop %v3148
        %v3152 = vrsqrt.pop %v3149
        %v3153 = vrsqrt.pop %v3150
        %v3154 = vmul.f32 %v3130, %v3151
        %v3155 = vmul.f32 %v3131, %v3152
        %v3156 = vmul.f32 %v3132, %v3153
        %v3157 = vpack.c.bf16 %v3155, %v3154
        %v3158 = vpack.c.bf16 %v3156, %v3156
        %v3159 = vld [vmem:[#allocation7] sm:$0xf]
        %v3160 = vld [vmem:[#allocation7 + $0x4] sm:$0xf]
        %v3161 = vld [vmem:[#allocation7 + $0x8] sm:$0xf]
        %v3162 = vld [vmem:[#allocation7 + $0xc] sm:$0xf]
        %v3163 = vld [vmem:[#allocation9] sm:$0x1]
        %v3165 = vlaneseq
        %v3166 = vshrl.u32 %v3165, 7
        %v3167 = vsub.s32 0, %v3166
        %v3168 = vrot.slane %v3163, %v3167
        %v3174 = vunpack.c.l.b16 %v3159
        %v3175 = vunpack.c.l.b16 %v3160
        %v3176 = vunpack.c.l.b16 %v3161
        %v3177 = vunpack.c.l.b16 %v3162
        %v3178 = vpack.c.b16 %v3175, %v3174
        %v3179 = vpack.c.b16 %v3177, %v3176
        %v3183 = vsel %vm674, %v3157, 0
        %v3186 = vsel %vm674, %v3158, 0
        %3188 = vmatprep.subr.bf16.mxu0 0
        %3189 = vmatpush1.bf16.msra.mxu0 0
        %3190 = vmatprep.subr.bf16.mxu0 0
        %3191 = vmatpush1.bf16.msra.mxu0 0
        %3192 = vmatprep.subr.bf16.mxu0 0
        %3193 = vmatpush1.bf16.msra.mxu0 0
        %3194 = vmatprep.subr.bf16.mxu0 0
        %3195 = vmatpush1.bf16.msra.mxu0 0
        %3196 = vmatprep.subr.bf16.mxu0 0
        %3197 = vmatpush1.bf16.msra.mxu0 0
        %3198 = vmatprep.subr.bf16.mxu0 0
        %3199 = vmatpush1.bf16.msra.mxu0 0
        %3200 = vmatprep.subr.bf16.mxu0 0
        %3201 = vmatpush1.bf16.msra.mxu0 %v3179
        %3202 = vmatprep.subr.bf16.mxu0 0
        %3203 = vmatpush1.bf16.msra.mxu0 %v3178
        %3204 = vmatprep.subr.bf16.mxu0 0
        %3205 = vmatpush2.bf16.msra.mxu0 0
        %3206 = vmatprep.subr.bf16.mxu0 0
        %3207 = vmatpush2.bf16.msra.mxu0 0
        %3208 = vmatprep.subr.bf16.mxu0 0
        %3209 = vmatpush2.bf16.msra.mxu0 0
        %3210 = vmatprep.subr.bf16.mxu0 0
        %3211 = vmatpush2.bf16.msra.mxu0 0
        %3212 = vmatprep.subr.bf16.mxu0 0
        %3213 = vmatpush2.bf16.msra.mxu0 0
        %3214 = vmatprep.subr.bf16.mxu0 0
        %3215 = vmatpush2.bf16.msra.mxu0 0
        %3216 = vmatprep.subr.bf16.mxu0 0
        %3217 = vmatpush2.bf16.msra.mxu0 0
        %3218 = vmatprep.subr.bf16.mxu0 0
        %3219 = vmatpush2.bf16.msra.mxu0 0
        %3220 = vmatprep.mubr.bf16.mxu0 0
        %3221 = vmatmul.mubr.bf16.gmra.mxu0 %v3183
        %v3222 = vpop.f32.mrf.mxu0
        %v3223 = vadd.f32 %v3168, %v3222
        %v3224 = vpop.f32.mrf.mxu0
        %v3225 = vpop.f32.mrf.mxu0
        %v3226 = vadd.f32 %v3168, %v3225
        %v3227 = vpop.f32.mrf.mxu0
        %3228 = vmatprep.mubr.bf16.mxu0 0
        %3229 = vmatmul.mubr.bf16.gmra.mxu0 %v3186
        %v3230 = vpop.f32.mrf.mxu0
        %v3231 = vadd.f32 %v3168, %v3230
        %v3232 = vpop.f32.mrf.mxu0
        %v3233 = vpop.f32.mrf.mxu0
        %v3234 = vpop.f32.mrf.mxu0
        %3235 = vdwg.mxu0
        %v3236 = vmul.f32 %v3223, 1.702
        %v3237 = vmul.f32 %v3226, 1.702
        %v3238 = vmul.f32 %v3231, 1.702
        %v3239 = vxor.u32 %v3236, 2147483648
        %v3240 = vxor.u32 %v3237, 2147483648
        %v3241 = vxor.u32 %v3238, 2147483648
        %v3242 = vmul.f32 %v3239, 1.442695
        %v3243 = vpow.pop %v3242
        %v3244 = vmul.f32 %v3240, 1.442695
        %v3245 = vpow.pop %v3244
        %v3246 = vmul.f32 %v3241, 1.442695
        %v3247 = vpow.pop %v3246
        %v3248 = vadd.f32 %v3243, 1.0
        %v3249 = vadd.f32 %v3245, 1.0
        %v3250 = vadd.f32 %v3247, 1.0
        %v3251 = vrcp.pop %v3248
        %v3252 = vmul.f32 1.0, %v3251
        %v3253 = vrcp.pop %v3249
        %v3254 = vmul.f32 1.0, %v3253
        %v3255 = vrcp.pop %v3250
        %v3256 = vmul.f32 1.0, %v3255
        %v3257 = vmul.f32 %v3223, %v3252
        %v3258 = vmul.f32 %v3226, %v3254
        %v3259 = vmul.f32 %v3231, %v3256
        %v3260 = vpack.c.bf16 %v3258, %v3257
        %v3261 = vpack.c.bf16 %v3259, %v3259
        %v3262 = vld [vmem:[%s13] sm:$0xf]
        %v3263 = vld [vmem:[%s13 + $0x4] sm:$0xf]
        %v3264 = vld [vmem:[%s13 + $0x8] sm:$0xf]
        %v3265 = vld [vmem:[%s13 + $0xc] sm:$0xf]
        %v3266 = vld [vmem:[%s13 + $0x10] sm:$0xf]
        %v3267 = vld [vmem:[%s13 + $0x14] sm:$0xf]
        %v3268 = vld [vmem:[%s13 + $0x18] sm:$0xf]
        %v3269 = vld [vmem:[%s13 + $0x1c] sm:$0xf]
        %v3270 = vld [vmem:[%s13 + $0x20] sm:$0xf]
        %v3271 = vld [vmem:[%s13 + $0x24] sm:$0xf]
        %v3272 = vld [vmem:[%s13 + $0x28] sm:$0xf]
        %v3273 = vld [vmem:[%s13 + $0x2c] sm:$0xf]
        %v3274 = vld [vmem:[%s13 + $0x30] sm:$0xf]
        %v3275 = vld [vmem:[%s13 + $0x34] sm:$0xf]
        %v3276 = vld [vmem:[%s13 + $0x38] sm:$0xf]
        %v3277 = vld [vmem:[%s13 + $0x3c] sm:$0xf]
        %v3294 = vunpack.c.l.b16 %v3262
        %v3295 = vunpack.c.l.b16 %v3263
        %v3296 = vunpack.c.l.b16 %v3264
        %v3297 = vunpack.c.l.b16 %v3265
        %v3298 = vunpack.c.l.b16 %v3266
        %v3299 = vunpack.c.l.b16 %v3267
        %v3300 = vunpack.c.l.b16 %v3268
        %v3301 = vunpack.c.l.b16 %v3269
        %v3302 = vunpack.c.l.b16 %v3270
        %v3303 = vunpack.c.l.b16 %v3271
        %v3304 = vunpack.c.l.b16 %v3272
        %v3305 = vunpack.c.l.b16 %v3273
        %v3306 = vunpack.c.l.b16 %v3274
        %v3307 = vunpack.c.l.b16 %v3275
        %v3308 = vunpack.c.l.b16 %v3276
        %v3309 = vunpack.c.l.b16 %v3277
        %v3310 = vpack.c.b16 %v3295, %v3294
        %v3311 = vpack.c.b16 %v3297, %v3296
        %v3312 = vpack.c.b16 %v3299, %v3298
        %v3313 = vpack.c.b16 %v3301, %v3300
        %v3314 = vpack.c.b16 %v3303, %v3302
        %v3315 = vpack.c.b16 %v3305, %v3304
        %v3316 = vpack.c.b16 %v3307, %v3306
        %v3317 = vpack.c.b16 %v3309, %v3308
        %3326 = vmatprep.subr.bf16.mxu0 0
        %3327 = vmatpush1.bf16.msra.mxu0 %v3317
        %3328 = vmatprep.subr.bf16.mxu0 0
        %3329 = vmatpush1.bf16.msra.mxu0 %v3316
        %3330 = vmatprep.subr.bf16.mxu0 0
        %3331 = vmatpush1.bf16.msra.mxu0 %v3315
        %3332 = vmatprep.subr.bf16.mxu0 0
        %3333 = vmatpush1.bf16.msra.mxu0 %v3314
        %3334 = vmatprep.subr.bf16.mxu0 0
        %3335 = vmatpush1.bf16.msra.mxu0 %v3313
        %3336 = vmatprep.subr.bf16.mxu0 0
        %3337 = vmatpush1.bf16.msra.mxu0 %v3312
        %3338 = vmatprep.subr.bf16.mxu0 0
        %3339 = vmatpush1.bf16.msra.mxu0 %v3311
        %3340 = vmatprep.subr.bf16.mxu0 0
        %3341 = vmatpush1.bf16.msra.mxu0 %v3310
        %3342 = vmatprep.subr.bf16.mxu0 0
        %3343 = vmatpush2.bf16.msra.mxu0 0
        %3344 = vmatprep.subr.bf16.mxu0 0
        %3345 = vmatpush2.bf16.msra.mxu0 0
        %3346 = vmatprep.subr.bf16.mxu0 0
        %3347 = vmatpush2.bf16.msra.mxu0 0
        %3348 = vmatprep.subr.bf16.mxu0 0
        %3349 = vmatpush2.bf16.msra.mxu0 0
        %3350 = vmatprep.subr.bf16.mxu0 0
        %3351 = vmatpush2.bf16.msra.mxu0 0
        %3352 = vmatprep.subr.bf16.mxu0 0
        %3353 = vmatpush2.bf16.msra.mxu0 0
        %3354 = vmatprep.subr.bf16.mxu0 0
        %3355 = vmatpush2.bf16.msra.mxu0 0
        %3356 = vmatprep.subr.bf16.mxu0 0
        %3357 = vmatpush2.bf16.msra.mxu0 0
        %3358 = vmatprep.mubr.bf16.mxu0 0
        %3359 = vmatmul.mubr.bf16.gmra.mxu0 %v3260
        %v3360 = vpop.f32.mrf.mxu0
        %v3361 = vadd.f32 0.0, %v3360
        %v3362 = vpop.f32.mrf.mxu0
        %v3363 = vpop.f32.mrf.mxu0
        %v3364 = vadd.f32 0.0, %v3363
        %v3365 = vpop.f32.mrf.mxu0
        %3366 = vmatprep.mubr.bf16.mxu0 0
        %3367 = vmatmul.mubr.bf16.gmra.mxu0 %v3261
        %v3368 = vpop.f32.mrf.mxu0
        %v3369 = vadd.f32 0.0, %v3368
        %v3370 = vpop.f32.mrf.mxu0
        %v3371 = vpop.f32.mrf.mxu0
        %v3372 = vpop.f32.mrf.mxu0
        %3373 = vdwg.mxu0
        %v3374 = vadd.f32 %v3115, %v3361
        %v3375 = vadd.f32 %v3116, %v3364
        %v3376 = vadd.f32 %v3117, %v3369
        %v3377 = vld [vmem:[#allocation10] sm:$0x1]
        %v3379 = vlaneseq
        %v3380 = vshrl.u32 %v3379, 7
        %v3381 = vsub.s32 0, %v3380
        %v3382 = vrot.slane %v3377, %v3381
        %v3384 = vadd.f32 %v3374, %v3382
        %v3385 = vadd.f32 %v3375, %v3382
        %v3386 = vadd.f32 %v3376, %v3382
        %v3387 = vsel %vm674, %v3384, 0.0
        %3388 = vadd.xlane.f32.xlu0 %v3387
        %v3389 = vpop.xlane.xlu0 %3388
        %v3390 = vsel %vm674, %v3385, 0.0
        %3391 = vadd.xlane.f32.xlu0 %v3390
        %v3392 = vpop.xlane.xlu0 %3391
        %v3393 = vsel %vm674, %v3386, 0.0
        %3394 = vadd.xlane.f32.xlu0 %v3393
        %v3395 = vpop.xlane.xlu0 %3394
        %v3396 = vmul.f32 %v3389, %v684
        %v3397 = vmul.f32 %v3392, %v684
        %v3398 = vmul.f32 %v3395, %v684
        %v3399 = vsub.f32 %v3384, %v3396
        %v3400 = vsub.f32 %v3385, %v3397
        %v3401 = vsub.f32 %v3386, %v3398
        %v3402 = vmul.f32 %v3399, %v3399
        %v3403 = vmul.f32 %v3400, %v3400
        %v3404 = vmul.f32 %v3401, %v3401
        %v3405 = vsel %vm674, %v3402, 0.0
        %3406 = vadd.xlane.f32.xlu0 %v3405
        %v3407 = vpop.xlane.xlu0 %3406
        %v3408 = vsel %vm674, %v3403, 0.0
        %3409 = vadd.xlane.f32.xlu0 %v3408
        %v3410 = vpop.xlane.xlu0 %3409
        %v3411 = vsel %vm674, %v3404, 0.0
        %3412 = vadd.xlane.f32.xlu0 %v3411
        %v3413 = vpop.xlane.xlu0 %3412
        %v3414 = vmul.f32 %v3407, %v684
        %v3415 = vmul.f32 %v3410, %v684
        %v3416 = vmul.f32 %v3413, %v684
        %v3417 = vadd.f32 %v3414, 1e-05
        %v3418 = vadd.f32 %v3415, 1e-05
        %v3419 = vadd.f32 %v3416, 1e-05
        %v3420 = vrsqrt.pop %v3417
        %v3421 = vrsqrt.pop %v3418
        %v3422 = vrsqrt.pop %v3419
        %v3423 = vmul.f32 %v3399, %v3420
        %v3424 = vmul.f32 %v3400, %v3421
        %v3425 = vmul.f32 %v3401, %v3422
        %v3426 = vpack.c.bf16 %v3424, %v3423
        %v3427 = vpack.c.bf16 %v3425, %v3425
        %s3428 = scalar_lea.vmem %s3, 16
        %v3429 = vld [vmem:[%s3428] sm:$0xf]
        %v3430 = vld [vmem:[%s3428 + $0x4] sm:$0xf]
        %v3431 = vld [vmem:[%s3428 + $0x8] sm:$0xf]
        %v3432 = vld [vmem:[%s3428 + $0xc] sm:$0xf]
        %s3433 = scalar_lea.vmem %s4, 1
        %v3434 = vld [vmem:[%s3433] sm:$0x1]
        %v3436 = vlaneseq
        %v3437 = vshrl.u32 %v3436, 7
        %v3438 = vsub.s32 0, %v3437
        %v3439 = vrot.slane %v3434, %v3438
        %v3445 = vunpack.c.l.b16 %v3429
        %v3446 = vunpack.c.l.b16 %v3430
        %v3447 = vunpack.c.l.b16 %v3431
        %v3448 = vunpack.c.l.b16 %v3432
        %v3449 = vpack.c.b16 %v3446, %v3445
        %v3450 = vpack.c.b16 %v3448, %v3447
        %v3454 = vsel %vm674, %v3426, 0
        %v3457 = vsel %vm674, %v3427, 0
        %3459 = vmatprep.subr.bf16.mxu0 0
        %3460 = vmatpush1.bf16.msra.mxu0 0
        %3461 = vmatprep.subr.bf16.mxu0 0
        %3462 = vmatpush1.bf16.msra.mxu0 0
        %3463 = vmatprep.subr.bf16.mxu0 0
        %3464 = vmatpush1.bf16.msra.mxu0 0
        %3465 = vmatprep.subr.bf16.mxu0 0
        %3466 = vmatpush1.bf16.msra.mxu0 0
        %3467 = vmatprep.subr.bf16.mxu0 0
        %3468 = vmatpush1.bf16.msra.mxu0 0
        %3469 = vmatprep.subr.bf16.mxu0 0
        %3470 = vmatpush1.bf16.msra.mxu0 0
        %3471 = vmatprep.subr.bf16.mxu0 0
        %3472 = vmatpush1.bf16.msra.mxu0 %v3450
        %3473 = vmatprep.subr.bf16.mxu0 0
        %3474 = vmatpush1.bf16.msra.mxu0 %v3449
        %3475 = vmatprep.subr.bf16.mxu0 0
        %3476 = vmatpush2.bf16.msra.mxu0 0
        %3477 = vmatprep.subr.bf16.mxu0 0
        %3478 = vmatpush2.bf16.msra.mxu0 0
        %3479 = vmatprep.subr.bf16.mxu0 0
        %3480 = vmatpush2.bf16.msra.mxu0 0
        %3481 = vmatprep.subr.bf16.mxu0 0
        %3482 = vmatpush2.bf16.msra.mxu0 0
        %3483 = vmatprep.subr.bf16.mxu0 0
        %3484 = vmatpush2.bf16.msra.mxu0 0
        %3485 = vmatprep.subr.bf16.mxu0 0
        %3486 = vmatpush2.bf16.msra.mxu0 0
        %3487 = vmatprep.subr.bf16.mxu0 0
        %3488 = vmatpush2.bf16.msra.mxu0 0
        %3489 = vmatprep.subr.bf16.mxu0 0
        %3490 = vmatpush2.bf16.msra.mxu0 0
        %3491 = vmatprep.mubr.bf16.mxu0 0
        %3492 = vmatmul.mubr.bf16.gmra.mxu0 %v3454
        %v3493 = vpop.f32.mrf.mxu0
        %v3494 = vadd.f32 %v3439, %v3493
        %v3495 = vpop.f32.mrf.mxu0
        %v3496 = vpop.f32.mrf.mxu0
        %v3497 = vadd.f32 %v3439, %v3496
        %v3498 = vpop.f32.mrf.mxu0
        %3499 = vmatprep.mubr.bf16.mxu0 0
        %3500 = vmatmul.mubr.bf16.gmra.mxu0 %v3457
        %v3501 = vpop.f32.mrf.mxu0
        %v3502 = vadd.f32 %v3439, %v3501
        %v3503 = vpop.f32.mrf.mxu0
        %v3504 = vpop.f32.mrf.mxu0
        %v3505 = vpop.f32.mrf.mxu0
        %3506 = vdwg.mxu0
        %s3507 = scalar_lea.vmem %s5, 16
        %v3508 = vld [vmem:[%s3507] sm:$0xf]
        %v3509 = vld [vmem:[%s3507 + $0x4] sm:$0xf]
        %v3510 = vld [vmem:[%s3507 + $0x8] sm:$0xf]
        %v3511 = vld [vmem:[%s3507 + $0xc] sm:$0xf]
        %s3512 = scalar_lea.vmem [#allocation2], 1
        %v3513 = vld [vmem:[%s3512] sm:$0x1]
        %v3515 = vlaneseq
        %v3516 = vshrl.u32 %v3515, 7
        %v3517 = vsub.s32 0, %v3516
        %v3518 = vrot.slane %v3513, %v3517
        %v3524 = vunpack.c.l.b16 %v3508
        %v3525 = vunpack.c.l.b16 %v3509
        %v3526 = vunpack.c.l.b16 %v3510
        %v3527 = vunpack.c.l.b16 %v3511
        %v3528 = vpack.c.b16 %v3525, %v3524
        %v3529 = vpack.c.b16 %v3527, %v3526
        %3532 = vmatprep.subr.bf16.mxu0 0
        %3533 = vmatpush1.bf16.msra.mxu0 0
        %3534 = vmatprep.subr.bf16.mxu0 0
        %3535 = vmatpush1.bf16.msra.mxu0 0
        %3536 = vmatprep.subr.bf16.mxu0 0
        %3537 = vmatpush1.bf16.msra.mxu0 0
        %3538 = vmatprep.subr.bf16.mxu0 0
        %3539 = vmatpush1.bf16.msra.mxu0 0
        %3540 = vmatprep.subr.bf16.mxu0 0
        %3541 = vmatpush1.bf16.msra.mxu0 0
        %3542 = vmatprep.subr.bf16.mxu0 0
        %3543 = vmatpush1.bf16.msra.mxu0 0
        %3544 = vmatprep.subr.bf16.mxu0 0
        %3545 = vmatpush1.bf16.msra.mxu0 %v3529
        %3546 = vmatprep.subr.bf16.mxu0 0
        %3547 = vmatpush1.bf16.msra.mxu0 %v3528
        %3548 = vmatprep.subr.bf16.mxu0 0
        %3549 = vmatpush2.bf16.msra.mxu0 0
        %3550 = vmatprep.subr.bf16.mxu0 0
        %3551 = vmatpush2.bf16.msra.mxu0 0
        %3552 = vmatprep.subr.bf16.mxu0 0
        %3553 = vmatpush2.bf16.msra.mxu0 0
        %3554 = vmatprep.subr.bf16.mxu0 0
        %3555 = vmatpush2.bf16.msra.mxu0 0
        %3556 = vmatprep.subr.bf16.mxu0 0
        %3557 = vmatpush2.bf16.msra.mxu0 0
        %3558 = vmatprep.subr.bf16.mxu0 0
        %3559 = vmatpush2.bf16.msra.mxu0 0
        %3560 = vmatprep.subr.bf16.mxu0 0
        %3561 = vmatpush2.bf16.msra.mxu0 0
        %3562 = vmatprep.subr.bf16.mxu0 0
        %3563 = vmatpush2.bf16.msra.mxu0 0
        %3564 = vmatprep.mubr.bf16.mxu0 0
        %3565 = vmatmul.mubr.bf16.gmra.mxu0 %v3454
        %v3566 = vpop.f32.mrf.mxu0
        %v3567 = vadd.f32 %v3518, %v3566
        %v3568 = vpop.f32.mrf.mxu0
        %v3569 = vpop.f32.mrf.mxu0
        %v3570 = vadd.f32 %v3518, %v3569
        %v3571 = vpop.f32.mrf.mxu0
        %3572 = vmatprep.mubr.bf16.mxu0 0
        %3573 = vmatmul.mubr.bf16.gmra.mxu0 %v3457
        %v3574 = vpop.f32.mrf.mxu0
        %v3575 = vadd.f32 %v3518, %v3574
        %v3576 = vpop.f32.mrf.mxu0
        %v3577 = vpop.f32.mrf.mxu0
        %v3578 = vpop.f32.mrf.mxu0
        %3579 = vdwg.mxu0
        %s3580 = scalar_lea.vmem %s7, 16
        %v3581 = vld [vmem:[%s3580] sm:$0xf]
        %v3582 = vld [vmem:[%s3580 + $0x4] sm:$0xf]
        %v3583 = vld [vmem:[%s3580 + $0x8] sm:$0xf]
        %v3584 = vld [vmem:[%s3580 + $0xc] sm:$0xf]
        %s3585 = scalar_lea.vmem [#allocation4], 1
        %v3586 = vld [vmem:[%s3585] sm:$0x1]
        %v3588 = vlaneseq
        %v3589 = vshrl.u32 %v3588, 7
        %v3590 = vsub.s32 0, %v3589
        %v3591 = vrot.slane %v3586, %v3590
        %v3597 = vunpack.c.l.b16 %v3581
        %v3598 = vunpack.c.l.b16 %v3582
        %v3599 = vunpack.c.l.b16 %v3583
        %v3600 = vunpack.c.l.b16 %v3584
        %v3601 = vpack.c.b16 %v3598, %v3597
        %v3602 = vpack.c.b16 %v3600, %v3599
        %3605 = vmatprep.subr.bf16.mxu0 0
        %3606 = vmatpush1.bf16.msra.mxu0 0
        %3607 = vmatprep.subr.bf16.mxu0 0
        %3608 = vmatpush1.bf16.msra.mxu0 0
        %3609 = vmatprep.subr.bf16.mxu0 0
        %3610 = vmatpush1.bf16.msra.mxu0 0
        %3611 = vmatprep.subr.bf16.mxu0 0
        %3612 = vmatpush1.bf16.msra.mxu0 0
        %3613 = vmatprep.subr.bf16.mxu0 0
        %3614 = vmatpush1.bf16.msra.mxu0 0
        %3615 = vmatprep.subr.bf16.mxu0 0
        %3616 = vmatpush1.bf16.msra.mxu0 0
        %3617 = vmatprep.subr.bf16.mxu0 0
        %3618 = vmatpush1.bf16.msra.mxu0 %v3602
        %3619 = vmatprep.subr.bf16.mxu0 0
        %3620 = vmatpush1.bf16.msra.mxu0 %v3601
        %3621 = vmatprep.subr.bf16.mxu0 0
        %3622 = vmatpush2.bf16.msra.mxu0 0
        %3623 = vmatprep.subr.bf16.mxu0 0
        %3624 = vmatpush2.bf16.msra.mxu0 0
        %3625 = vmatprep.subr.bf16.mxu0 0
        %3626 = vmatpush2.bf16.msra.mxu0 0
        %3627 = vmatprep.subr.bf16.mxu0 0
        %3628 = vmatpush2.bf16.msra.mxu0 0
        %3629 = vmatprep.subr.bf16.mxu0 0
        %3630 = vmatpush2.bf16.msra.mxu0 0
        %3631 = vmatprep.subr.bf16.mxu0 0
        %3632 = vmatpush2.bf16.msra.mxu0 0
        %3633 = vmatprep.subr.bf16.mxu0 0
        %3634 = vmatpush2.bf16.msra.mxu0 0
        %3635 = vmatprep.subr.bf16.mxu0 0
        %3636 = vmatpush2.bf16.msra.mxu0 0
        %3637 = vmatprep.mubr.bf16.mxu0 0
        %3638 = vmatmul.mubr.bf16.gmra.mxu0 %v3454
        %v3639 = vpop.f32.mrf.mxu0
        %v3640 = vadd.f32 %v3591, %v3639
        %v3641 = vpop.f32.mrf.mxu0
        %v3642 = vpop.f32.mrf.mxu0
        %v3643 = vadd.f32 %v3591, %v3642
        %v3644 = vpop.f32.mrf.mxu0
        %3645 = vmatprep.mubr.bf16.mxu0 0
        %3646 = vmatmul.mubr.bf16.gmra.mxu0 %v3457
        %v3647 = vpop.f32.mrf.mxu0
        %v3648 = vadd.f32 %v3591, %v3647
        %v3649 = vpop.f32.mrf.mxu0
        %v3650 = vpop.f32.mrf.mxu0
        %v3651 = vpop.f32.mrf.mxu0
        %3652 = vdwg.mxu0
        %3656 = vrot.lane.b32.xlu0 %v3494, 112
        %v3657 = vpop.permute.xlu0 %3656
        %3658 = vrot.lane.b32.xlu0 %v3497, 112
        %v3659 = vpop.permute.xlu0 %3658
        %3660 = vrot.lane.b32.xlu0 %v3502, 112
        %v3661 = vpop.permute.xlu0 %3660
        %v3665 = vcombine.high %v3494, 0.0
        %v3667 = vunpack.c.l.s4 1983009808
        %v3668 = vunpack.c.0.s8 %v3667
        %v3669 = vlaneseq
        %v3670 = vshrl.u32 %v3669, 7
        %v3671 = vsub.s32 %v3668, %v3670
        %v3672 = vrot.slane %v3494, %v3671
        %v3674 = vunpack.c.l.s4 1983009808
        %v3675 = vunpack.c.0.s8 %v3674
        %v3676 = vlaneseq
        %v3677 = vshrl.u32 %v3676, 7
        %v3678 = vsub.s32 %v3675, %v3677
        %v3679 = vrot.slane %v3665, %v3678
        %v3680 = vcombine.high %v3657, 0.0
        %v3682 = vunpack.c.l.s4 1983009808
        %v3683 = vunpack.c.0.s8 %v3682
        %v3684 = vlaneseq
        %v3685 = vshrl.u32 %v3684, 7
        %v3686 = vsub.s32 %v3683, %v3685
        %v3687 = vrot.slane %v3657, %v3686
        %v3689 = vunpack.c.l.s4 1983009808
        %v3690 = vunpack.c.0.s8 %v3689
        %v3691 = vlaneseq
        %v3692 = vshrl.u32 %v3691, 7
        %v3693 = vsub.s32 %v3690, %v3692
        %v3694 = vrot.slane %v3680, %v3693
        %v3695 = vcombine.low %v3672, %v3687
        %v3696 = vcombine.high %v3672, %v3687
        %v3698 = vunpack.c.l.s4 1934713408
        %v3699 = vunpack.c.0.s8 %v3698
        %v3700 = vlaneseq
        %v3701 = vshrl.u32 %v3700, 7
        %v3702 = vsub.s32 %v3699, %v3701
        %v3703 = vrot.slane %v3695, %v3702
        %v3705 = vunpack.c.l.s4 1934713408
        %v3706 = vunpack.c.0.s8 %v3705
        %v3707 = vlaneseq
        %v3708 = vshrl.u32 %v3707, 7
        %v3709 = vsub.s32 %v3706, %v3708
        %v3710 = vrot.slane %v3696, %v3709
        %v3711 = vcombine.low %v3679, %v3694
        %v3712 = vcombine.high %v3679, %v3694
        %v3714 = vunpack.c.l.s4 1934713408
        %v3715 = vunpack.c.0.s8 %v3714
        %v3716 = vlaneseq
        %v3717 = vshrl.u32 %v3716, 7
        %v3718 = vsub.s32 %v3715, %v3717
        %v3719 = vrot.slane %v3711, %v3718
        %v3721 = vunpack.c.l.s4 1934713408
        %v3722 = vunpack.c.0.s8 %v3721
        %v3723 = vlaneseq
        %v3724 = vshrl.u32 %v3723, 7
        %v3725 = vsub.s32 %v3722, %v3724
        %v3726 = vrot.slane %v3712, %v3725
        %v3727 = vcombine.high %v3703, 0.0
        %v3728 = vcombine.high %v3710, 0.0
        %v3729 = vcombine.high %v3719, 0.0
        %v3730 = vcombine.high %v3726, 0.0
        %v3731 = vcombine.high %v3497, 0.0
        %v3733 = vunpack.c.l.s4 1983009808
        %v3734 = vunpack.c.0.s8 %v3733
        %v3735 = vlaneseq
        %v3736 = vshrl.u32 %v3735, 7
        %v3737 = vsub.s32 %v3734, %v3736
        %v3738 = vrot.slane %v3497, %v3737
        %v3740 = vunpack.c.l.s4 1983009808
        %v3741 = vunpack.c.0.s8 %v3740
        %v3742 = vlaneseq
        %v3743 = vshrl.u32 %v3742, 7
        %v3744 = vsub.s32 %v3741, %v3743
        %v3745 = vrot.slane %v3731, %v3744
        %v3746 = vcombine.high %v3659, 0.0
        %v3748 = vunpack.c.l.s4 1983009808
        %v3749 = vunpack.c.0.s8 %v3748
        %v3750 = vlaneseq
        %v3751 = vshrl.u32 %v3750, 7
        %v3752 = vsub.s32 %v3749, %v3751
        %v3753 = vrot.slane %v3659, %v3752
        %v3755 = vunpack.c.l.s4 1983009808
        %v3756 = vunpack.c.0.s8 %v3755
        %v3757 = vlaneseq
        %v3758 = vshrl.u32 %v3757, 7
        %v3759 = vsub.s32 %v3756, %v3758
        %v3760 = vrot.slane %v3746, %v3759
        %v3761 = vcombine.low %v3738, %v3753
        %v3762 = vcombine.high %v3738, %v3753
        %v3764 = vunpack.c.l.s4 1934713408
        %v3765 = vunpack.c.0.s8 %v3764
        %v3766 = vlaneseq
        %v3767 = vshrl.u32 %v3766, 7
        %v3768 = vsub.s32 %v3765, %v3767
        %v3769 = vrot.slane %v3761, %v3768
        %v3771 = vunpack.c.l.s4 1934713408
        %v3772 = vunpack.c.0.s8 %v3771
        %v3773 = vlaneseq
        %v3774 = vshrl.u32 %v3773, 7
        %v3775 = vsub.s32 %v3772, %v3774
        %v3776 = vrot.slane %v3762, %v3775
        %v3777 = vcombine.low %v3745, %v3760
        %v3778 = vcombine.high %v3745, %v3760
        %v3780 = vunpack.c.l.s4 1934713408
        %v3781 = vunpack.c.0.s8 %v3780
        %v3782 = vlaneseq
        %v3783 = vshrl.u32 %v3782, 7
        %v3784 = vsub.s32 %v3781, %v3783
        %v3785 = vrot.slane %v3777, %v3784
        %v3787 = vunpack.c.l.s4 1934713408
        %v3788 = vunpack.c.0.s8 %v3787
        %v3789 = vlaneseq
        %v3790 = vshrl.u32 %v3789, 7
        %v3791 = vsub.s32 %v3788, %v3790
        %v3792 = vrot.slane %v3778, %v3791
        %v3793 = vcombine.high %v3769, 0.0
        %v3794 = vcombine.high %v3776, 0.0
        %v3795 = vcombine.high %v3785, 0.0
        %v3796 = vcombine.high %v3792, 0.0
        %v3797 = vcombine.high %v3502, 0.0
        %v3799 = vunpack.c.l.s4 1983009808
        %v3800 = vunpack.c.0.s8 %v3799
        %v3801 = vlaneseq
        %v3802 = vshrl.u32 %v3801, 7
        %v3803 = vsub.s32 %v3800, %v3802
        %v3804 = vrot.slane %v3502, %v3803
        %v3806 = vunpack.c.l.s4 1983009808
        %v3807 = vunpack.c.0.s8 %v3806
        %v3808 = vlaneseq
        %v3809 = vshrl.u32 %v3808, 7
        %v3810 = vsub.s32 %v3807, %v3809
        %v3811 = vrot.slane %v3797, %v3810
        %v3812 = vcombine.high %v3661, 0.0
        %v3814 = vunpack.c.l.s4 1983009808
        %v3815 = vunpack.c.0.s8 %v3814
        %v3816 = vlaneseq
        %v3817 = vshrl.u32 %v3816, 7
        %v3818 = vsub.s32 %v3815, %v3817
        %v3819 = vrot.slane %v3661, %v3818
        %v3821 = vunpack.c.l.s4 1983009808
        %v3822 = vunpack.c.0.s8 %v3821
        %v3823 = vlaneseq
        %v3824 = vshrl.u32 %v3823, 7
        %v3825 = vsub.s32 %v3822, %v3824
        %v3826 = vrot.slane %v3812, %v3825
        %v3827 = vcombine.low %v3804, %v3819
        %v3828 = vcombine.high %v3804, %v3819
        %v3830 = vunpack.c.l.s4 1934713408
        %v3831 = vunpack.c.0.s8 %v3830
        %v3832 = vlaneseq
        %v3833 = vshrl.u32 %v3832, 7
        %v3834 = vsub.s32 %v3831, %v3833
        %v3835 = vrot.slane %v3827, %v3834
        %v3837 = vunpack.c.l.s4 1934713408
        %v3838 = vunpack.c.0.s8 %v3837
        %v3839 = vlaneseq
        %v3840 = vshrl.u32 %v3839, 7
        %v3841 = vsub.s32 %v3838, %v3840
        %v3842 = vrot.slane %v3828, %v3841
        %v3843 = vcombine.low %v3811, %v3826
        %v3844 = vcombine.high %v3811, %v3826
        %v3846 = vunpack.c.l.s4 1934713408
        %v3847 = vunpack.c.0.s8 %v3846
        %v3848 = vlaneseq
        %v3849 = vshrl.u32 %v3848, 7
        %v3850 = vsub.s32 %v3847, %v3849
        %v3851 = vrot.slane %v3843, %v3850
        %v3853 = vunpack.c.l.s4 1934713408
        %v3854 = vunpack.c.0.s8 %v3853
        %v3855 = vlaneseq
        %v3856 = vshrl.u32 %v3855, 7
        %v3857 = vsub.s32 %v3854, %v3856
        %v3858 = vrot.slane %v3844, %v3857
        %v3859 = vcombine.high %v3835, 0.0
        %v3860 = vcombine.high %v3842, 0.0
        %v3861 = vcombine.high %v3851, 0.0
        %v3862 = vcombine.high %v3858, 0.0
        %v3863 = vcombine.low %v3703, %v3710
        %v3865 = vunpack.c.l.s4 1983009808
        %v3866 = vunpack.c.0.s8 %v3865
        %v3867 = vlaneseq
        %v3868 = vshrl.u32 %v3867, 7
        %v3869 = vsub.s32 %v3866, %v3868
        %v3870 = vrot.slane %v3863, %v3869
        %v3871 = vcombine.low %v3727, %v3728
        %v3873 = vunpack.c.l.s4 1983009808
        %v3874 = vunpack.c.0.s8 %v3873
        %v3875 = vlaneseq
        %v3876 = vshrl.u32 %v3875, 7
        %v3877 = vsub.s32 %v3874, %v3876
        %v3878 = vrot.slane %v3871, %v3877
        %v3879 = vcombine.low %v3719, %v3726
        %v3881 = vunpack.c.l.s4 1983009808
        %v3882 = vunpack.c.0.s8 %v3881
        %v3883 = vlaneseq
        %v3884 = vshrl.u32 %v3883, 7
        %v3885 = vsub.s32 %v3882, %v3884
        %v3886 = vrot.slane %v3879, %v3885
        %v3887 = vcombine.low %v3729, %v3730
        %v3889 = vunpack.c.l.s4 1983009808
        %v3890 = vunpack.c.0.s8 %v3889
        %v3891 = vlaneseq
        %v3892 = vshrl.u32 %v3891, 7
        %v3893 = vsub.s32 %v3890, %v3892
        %v3894 = vrot.slane %v3887, %v3893
        %v3895 = vcombine.low %v3870, %v3878
        %v3897 = vunpack.c.l.s4 1934713408
        %v3898 = vunpack.c.0.s8 %v3897
        %v3899 = vlaneseq
        %v3900 = vshrl.u32 %v3899, 7
        %v3901 = vsub.s32 %v3898, %v3900
        %v3902 = vrot.slane %v3895, %v3901
        %v3903 = vcombine.low %v3886, %v3894
        %v3905 = vunpack.c.l.s4 1934713408
        %v3906 = vunpack.c.0.s8 %v3905
        %v3907 = vlaneseq
        %v3908 = vshrl.u32 %v3907, 7
        %v3909 = vsub.s32 %v3906, %v3908
        %v3910 = vrot.slane %v3903, %v3909
        %v3911 = vcombine.low %v3902, %v3910
        %v3912 = vcombine.high %v3902, %v3910
        %v3913 = vcombine.low %v3769, %v3776
        %v3915 = vunpack.c.l.s4 1983009808
        %v3916 = vunpack.c.0.s8 %v3915
        %v3917 = vlaneseq
        %v3918 = vshrl.u32 %v3917, 7
        %v3919 = vsub.s32 %v3916, %v3918
        %v3920 = vrot.slane %v3913, %v3919
        %v3921 = vcombine.low %v3793, %v3794
        %v3923 = vunpack.c.l.s4 1983009808
        %v3924 = vunpack.c.0.s8 %v3923
        %v3925 = vlaneseq
        %v3926 = vshrl.u32 %v3925, 7
        %v3927 = vsub.s32 %v3924, %v3926
        %v3928 = vrot.slane %v3921, %v3927
        %v3929 = vcombine.low %v3785, %v3792
        %v3931 = vunpack.c.l.s4 1983009808
        %v3932 = vunpack.c.0.s8 %v3931
        %v3933 = vlaneseq
        %v3934 = vshrl.u32 %v3933, 7
        %v3935 = vsub.s32 %v3932, %v3934
        %v3936 = vrot.slane %v3929, %v3935
        %v3937 = vcombine.low %v3795, %v3796
        %v3939 = vunpack.c.l.s4 1983009808
        %v3940 = vunpack.c.0.s8 %v3939
        %v3941 = vlaneseq
        %v3942 = vshrl.u32 %v3941, 7
        %v3943 = vsub.s32 %v3940, %v3942
        %v3944 = vrot.slane %v3937, %v3943
        %v3945 = vcombine.low %v3920, %v3928
        %v3947 = vunpack.c.l.s4 1934713408
        %v3948 = vunpack.c.0.s8 %v3947
        %v3949 = vlaneseq
        %v3950 = vshrl.u32 %v3949, 7
        %v3951 = vsub.s32 %v3948, %v3950
        %v3952 = vrot.slane %v3945, %v3951
        %v3953 = vcombine.low %v3936, %v3944
        %v3955 = vunpack.c.l.s4 1934713408
        %v3956 = vunpack.c.0.s8 %v3955
        %v3957 = vlaneseq
        %v3958 = vshrl.u32 %v3957, 7
        %v3959 = vsub.s32 %v3956, %v3958
        %v3960 = vrot.slane %v3953, %v3959
        %v3961 = vcombine.low %v3952, %v3960
        %v3962 = vcombine.high %v3952, %v3960
        %v3963 = vcombine.low %v3835, %v3842
        %v3965 = vunpack.c.l.s4 1983009808
        %v3966 = vunpack.c.0.s8 %v3965
        %v3967 = vlaneseq
        %v3968 = vshrl.u32 %v3967, 7
        %v3969 = vsub.s32 %v3966, %v3968
        %v3970 = vrot.slane %v3963, %v3969
        %v3971 = vcombine.low %v3859, %v3860
        %v3973 = vunpack.c.l.s4 1983009808
        %v3974 = vunpack.c.0.s8 %v3973
        %v3975 = vlaneseq
        %v3976 = vshrl.u32 %v3975, 7
        %v3977 = vsub.s32 %v3974, %v3976
        %v3978 = vrot.slane %v3971, %v3977
        %v3979 = vcombine.low %v3851, %v3858
        %v3981 = vunpack.c.l.s4 1983009808
        %v3982 = vunpack.c.0.s8 %v3981
        %v3983 = vlaneseq
        %v3984 = vshrl.u32 %v3983, 7
        %v3985 = vsub.s32 %v3982, %v3984
        %v3986 = vrot.slane %v3979, %v3985
        %v3987 = vcombine.low %v3861, %v3862
        %v3989 = vunpack.c.l.s4 1983009808
        %v3990 = vunpack.c.0.s8 %v3989
        %v3991 = vlaneseq
        %v3992 = vshrl.u32 %v3991, 7
        %v3993 = vsub.s32 %v3990, %v3992
        %v3994 = vrot.slane %v3987, %v3993
        %v3995 = vcombine.low %v3970, %v3978
        %v3997 = vunpack.c.l.s4 1934713408
        %v3998 = vunpack.c.0.s8 %v3997
        %v3999 = vlaneseq
        %v4000 = vshrl.u32 %v3999, 7
        %v4001 = vsub.s32 %v3998, %v4000
        %v4002 = vrot.slane %v3995, %v4001
        %v4003 = vcombine.low %v3986, %v3994
        %v4005 = vunpack.c.l.s4 1934713408
        %v4006 = vunpack.c.0.s8 %v4005
        %v4007 = vlaneseq
        %v4008 = vshrl.u32 %v4007, 7
        %v4009 = vsub.s32 %v4006, %v4008
        %v4010 = vrot.slane %v4003, %v4009
        %v4011 = vcombine.low %v4002, %v4010
        %v4012 = vcombine.high %v4002, %v4010
        %4016 = vrot.lane.b32.xlu0 %v3567, 112
        %v4017 = vpop.permute.xlu0 %4016
        %4018 = vrot.lane.b32.xlu0 %v3570, 112
        %v4019 = vpop.permute.xlu0 %4018
        %4020 = vrot.lane.b32.xlu0 %v3575, 112
        %v4021 = vpop.permute.xlu0 %4020
        %v4025 = vcombine.high %v3567, 0.0
        %v4027 = vunpack.c.l.s4 1983009808
        %v4028 = vunpack.c.0.s8 %v4027
        %v4029 = vlaneseq
        %v4030 = vshrl.u32 %v4029, 7
        %v4031 = vsub.s32 %v4028, %v4030
        %v4032 = vrot.slane %v3567, %v4031
        %v4034 = vunpack.c.l.s4 1983009808
        %v4035 = vunpack.c.0.s8 %v4034
        %v4036 = vlaneseq
        %v4037 = vshrl.u32 %v4036, 7
        %v4038 = vsub.s32 %v4035, %v4037
        %v4039 = vrot.slane %v4025, %v4038
        %v4040 = vcombine.high %v4017, 0.0
        %v4042 = vunpack.c.l.s4 1983009808
        %v4043 = vunpack.c.0.s8 %v4042
        %v4044 = vlaneseq
        %v4045 = vshrl.u32 %v4044, 7
        %v4046 = vsub.s32 %v4043, %v4045
        %v4047 = vrot.slane %v4017, %v4046
        %v4049 = vunpack.c.l.s4 1983009808
        %v4050 = vunpack.c.0.s8 %v4049
        %v4051 = vlaneseq
        %v4052 = vshrl.u32 %v4051, 7
        %v4053 = vsub.s32 %v4050, %v4052
        %v4054 = vrot.slane %v4040, %v4053
        %v4055 = vcombine.low %v4032, %v4047
        %v4056 = vcombine.high %v4032, %v4047
        %v4058 = vunpack.c.l.s4 1934713408
        %v4059 = vunpack.c.0.s8 %v4058
        %v4060 = vlaneseq
        %v4061 = vshrl.u32 %v4060, 7
        %v4062 = vsub.s32 %v4059, %v4061
        %v4063 = vrot.slane %v4055, %v4062
        %v4065 = vunpack.c.l.s4 1934713408
        %v4066 = vunpack.c.0.s8 %v4065
        %v4067 = vlaneseq
        %v4068 = vshrl.u32 %v4067, 7
        %v4069 = vsub.s32 %v4066, %v4068
        %v4070 = vrot.slane %v4056, %v4069
        %v4071 = vcombine.low %v4039, %v4054
        %v4072 = vcombine.high %v4039, %v4054
        %v4074 = vunpack.c.l.s4 1934713408
        %v4075 = vunpack.c.0.s8 %v4074
        %v4076 = vlaneseq
        %v4077 = vshrl.u32 %v4076, 7
        %v4078 = vsub.s32 %v4075, %v4077
        %v4079 = vrot.slane %v4071, %v4078
        %v4081 = vunpack.c.l.s4 1934713408
        %v4082 = vunpack.c.0.s8 %v4081
        %v4083 = vlaneseq
        %v4084 = vshrl.u32 %v4083, 7
        %v4085 = vsub.s32 %v4082, %v4084
        %v4086 = vrot.slane %v4072, %v4085
        %v4087 = vcombine.high %v4063, 0.0
        %v4088 = vcombine.high %v4070, 0.0
        %v4089 = vcombine.high %v4079, 0.0
        %v4090 = vcombine.high %v4086, 0.0
        %v4091 = vcombine.high %v3570, 0.0
        %v4093 = vunpack.c.l.s4 1983009808
        %v4094 = vunpack.c.0.s8 %v4093
        %v4095 = vlaneseq
        %v4096 = vshrl.u32 %v4095, 7
        %v4097 = vsub.s32 %v4094, %v4096
        %v4098 = vrot.slane %v3570, %v4097
        %v4100 = vunpack.c.l.s4 1983009808
        %v4101 = vunpack.c.0.s8 %v4100
        %v4102 = vlaneseq
        %v4103 = vshrl.u32 %v4102, 7
        %v4104 = vsub.s32 %v4101, %v4103
        %v4105 = vrot.slane %v4091, %v4104
        %v4106 = vcombine.high %v4019, 0.0
        %v4108 = vunpack.c.l.s4 1983009808
        %v4109 = vunpack.c.0.s8 %v4108
        %v4110 = vlaneseq
        %v4111 = vshrl.u32 %v4110, 7
        %v4112 = vsub.s32 %v4109, %v4111
        %v4113 = vrot.slane %v4019, %v4112
        %v4115 = vunpack.c.l.s4 1983009808
        %v4116 = vunpack.c.0.s8 %v4115
        %v4117 = vlaneseq
        %v4118 = vshrl.u32 %v4117, 7
        %v4119 = vsub.s32 %v4116, %v4118
        %v4120 = vrot.slane %v4106, %v4119
        %v4121 = vcombine.low %v4098, %v4113
        %v4122 = vcombine.high %v4098, %v4113
        %v4124 = vunpack.c.l.s4 1934713408
        %v4125 = vunpack.c.0.s8 %v4124
        %v4126 = vlaneseq
        %v4127 = vshrl.u32 %v4126, 7
        %v4128 = vsub.s32 %v4125, %v4127
        %v4129 = vrot.slane %v4121, %v4128
        %v4131 = vunpack.c.l.s4 1934713408
        %v4132 = vunpack.c.0.s8 %v4131
        %v4133 = vlaneseq
        %v4134 = vshrl.u32 %v4133, 7
        %v4135 = vsub.s32 %v4132, %v4134
        %v4136 = vrot.slane %v4122, %v4135
        %v4137 = vcombine.low %v4105, %v4120
        %v4138 = vcombine.high %v4105, %v4120
        %v4140 = vunpack.c.l.s4 1934713408
        %v4141 = vunpack.c.0.s8 %v4140
        %v4142 = vlaneseq
        %v4143 = vshrl.u32 %v4142, 7
        %v4144 = vsub.s32 %v4141, %v4143
        %v4145 = vrot.slane %v4137, %v4144
        %v4147 = vunpack.c.l.s4 1934713408
        %v4148 = vunpack.c.0.s8 %v4147
        %v4149 = vlaneseq
        %v4150 = vshrl.u32 %v4149, 7
        %v4151 = vsub.s32 %v4148, %v4150
        %v4152 = vrot.slane %v4138, %v4151
        %v4153 = vcombine.high %v4129, 0.0
        %v4154 = vcombine.high %v4136, 0.0
        %v4155 = vcombine.high %v4145, 0.0
        %v4156 = vcombine.high %v4152, 0.0
        %v4157 = vcombine.high %v3575, 0.0
        %v4159 = vunpack.c.l.s4 1983009808
        %v4160 = vunpack.c.0.s8 %v4159
        %v4161 = vlaneseq
        %v4162 = vshrl.u32 %v4161, 7
        %v4163 = vsub.s32 %v4160, %v4162
        %v4164 = vrot.slane %v3575, %v4163
        %v4166 = vunpack.c.l.s4 1983009808
        %v4167 = vunpack.c.0.s8 %v4166
        %v4168 = vlaneseq
        %v4169 = vshrl.u32 %v4168, 7
        %v4170 = vsub.s32 %v4167, %v4169
        %v4171 = vrot.slane %v4157, %v4170
        %v4172 = vcombine.high %v4021, 0.0
        %v4174 = vunpack.c.l.s4 1983009808
        %v4175 = vunpack.c.0.s8 %v4174
        %v4176 = vlaneseq
        %v4177 = vshrl.u32 %v4176, 7
        %v4178 = vsub.s32 %v4175, %v4177
        %v4179 = vrot.slane %v4021, %v4178
        %v4181 = vunpack.c.l.s4 1983009808
        %v4182 = vunpack.c.0.s8 %v4181
        %v4183 = vlaneseq
        %v4184 = vshrl.u32 %v4183, 7
        %v4185 = vsub.s32 %v4182, %v4184
        %v4186 = vrot.slane %v4172, %v4185
        %v4187 = vcombine.low %v4164, %v4179
        %v4188 = vcombine.high %v4164, %v4179
        %v4190 = vunpack.c.l.s4 1934713408
        %v4191 = vunpack.c.0.s8 %v4190
        %v4192 = vlaneseq
        %v4193 = vshrl.u32 %v4192, 7
        %v4194 = vsub.s32 %v4191, %v4193
        %v4195 = vrot.slane %v4187, %v4194
        %v4197 = vunpack.c.l.s4 1934713408
        %v4198 = vunpack.c.0.s8 %v4197
        %v4199 = vlaneseq
        %v4200 = vshrl.u32 %v4199, 7
        %v4201 = vsub.s32 %v4198, %v4200
        %v4202 = vrot.slane %v4188, %v4201
        %v4203 = vcombine.low %v4171, %v4186
        %v4204 = vcombine.high %v4171, %v4186
        %v4206 = vunpack.c.l.s4 1934713408
        %v4207 = vunpack.c.0.s8 %v4206
        %v4208 = vlaneseq
        %v4209 = vshrl.u32 %v4208, 7
        %v4210 = vsub.s32 %v4207, %v4209
        %v4211 = vrot.slane %v4203, %v4210
        %v4213 = vunpack.c.l.s4 1934713408
        %v4214 = vunpack.c.0.s8 %v4213
        %v4215 = vlaneseq
        %v4216 = vshrl.u32 %v4215, 7
        %v4217 = vsub.s32 %v4214, %v4216
        %v4218 = vrot.slane %v4204, %v4217
        %v4219 = vcombine.high %v4195, 0.0
        %v4220 = vcombine.high %v4202, 0.0
        %v4221 = vcombine.high %v4211, 0.0
        %v4222 = vcombine.high %v4218, 0.0
        %v4223 = vcombine.low %v4063, %v4070
        %v4225 = vunpack.c.l.s4 1983009808
        %v4226 = vunpack.c.0.s8 %v4225
        %v4227 = vlaneseq
        %v4228 = vshrl.u32 %v4227, 7
        %v4229 = vsub.s32 %v4226, %v4228
        %v4230 = vrot.slane %v4223, %v4229
        %v4231 = vcombine.low %v4087, %v4088
        %v4233 = vunpack.c.l.s4 1983009808
        %v4234 = vunpack.c.0.s8 %v4233
        %v4235 = vlaneseq
        %v4236 = vshrl.u32 %v4235, 7
        %v4237 = vsub.s32 %v4234, %v4236
        %v4238 = vrot.slane %v4231, %v4237
        %v4239 = vcombine.low %v4079, %v4086
        %v4241 = vunpack.c.l.s4 1983009808
        %v4242 = vunpack.c.0.s8 %v4241
        %v4243 = vlaneseq
        %v4244 = vshrl.u32 %v4243, 7
        %v4245 = vsub.s32 %v4242, %v4244
        %v4246 = vrot.slane %v4239, %v4245
        %v4247 = vcombine.low %v4089, %v4090
        %v4249 = vunpack.c.l.s4 1983009808
        %v4250 = vunpack.c.0.s8 %v4249
        %v4251 = vlaneseq
        %v4252 = vshrl.u32 %v4251, 7
        %v4253 = vsub.s32 %v4250, %v4252
        %v4254 = vrot.slane %v4247, %v4253
        %v4255 = vcombine.low %v4230, %v4238
        %v4257 = vunpack.c.l.s4 1934713408
        %v4258 = vunpack.c.0.s8 %v4257
        %v4259 = vlaneseq
        %v4260 = vshrl.u32 %v4259, 7
        %v4261 = vsub.s32 %v4258, %v4260
        %v4262 = vrot.slane %v4255, %v4261
        %v4263 = vcombine.low %v4246, %v4254
        %v4265 = vunpack.c.l.s4 1934713408
        %v4266 = vunpack.c.0.s8 %v4265
        %v4267 = vlaneseq
        %v4268 = vshrl.u32 %v4267, 7
        %v4269 = vsub.s32 %v4266, %v4268
        %v4270 = vrot.slane %v4263, %v4269
        %v4271 = vcombine.low %v4262, %v4270
        %v4272 = vcombine.high %v4262, %v4270
        %v4273 = vcombine.low %v4129, %v4136
        %v4275 = vunpack.c.l.s4 1983009808
        %v4276 = vunpack.c.0.s8 %v4275
        %v4277 = vlaneseq
        %v4278 = vshrl.u32 %v4277, 7
        %v4279 = vsub.s32 %v4276, %v4278
        %v4280 = vrot.slane %v4273, %v4279
        %v4281 = vcombine.low %v4153, %v4154
        %v4283 = vunpack.c.l.s4 1983009808
        %v4284 = vunpack.c.0.s8 %v4283
        %v4285 = vlaneseq
        %v4286 = vshrl.u32 %v4285, 7
        %v4287 = vsub.s32 %v4284, %v4286
        %v4288 = vrot.slane %v4281, %v4287
        %v4289 = vcombine.low %v4145, %v4152
        %v4291 = vunpack.c.l.s4 1983009808
        %v4292 = vunpack.c.0.s8 %v4291
        %v4293 = vlaneseq
        %v4294 = vshrl.u32 %v4293, 7
        %v4295 = vsub.s32 %v4292, %v4294
        %v4296 = vrot.slane %v4289, %v4295
        %v4297 = vcombine.low %v4155, %v4156
        %v4299 = vunpack.c.l.s4 1983009808
        %v4300 = vunpack.c.0.s8 %v4299
        %v4301 = vlaneseq
        %v4302 = vshrl.u32 %v4301, 7
        %v4303 = vsub.s32 %v4300, %v4302
        %v4304 = vrot.slane %v4297, %v4303
        %v4305 = vcombine.low %v4280, %v4288
        %v4307 = vunpack.c.l.s4 1934713408
        %v4308 = vunpack.c.0.s8 %v4307
        %v4309 = vlaneseq
        %v4310 = vshrl.u32 %v4309, 7
        %v4311 = vsub.s32 %v4308, %v4310
        %v4312 = vrot.slane %v4305, %v4311
        %v4313 = vcombine.low %v4296, %v4304
        %v4315 = vunpack.c.l.s4 1934713408
        %v4316 = vunpack.c.0.s8 %v4315
        %v4317 = vlaneseq
        %v4318 = vshrl.u32 %v4317, 7
        %v4319 = vsub.s32 %v4316, %v4318
        %v4320 = vrot.slane %v4313, %v4319
        %v4321 = vcombine.low %v4312, %v4320
        %v4322 = vcombine.high %v4312, %v4320
        %v4323 = vcombine.low %v4195, %v4202
        %v4325 = vunpack.c.l.s4 1983009808
        %v4326 = vunpack.c.0.s8 %v4325
        %v4327 = vlaneseq
        %v4328 = vshrl.u32 %v4327, 7
        %v4329 = vsub.s32 %v4326, %v4328
        %v4330 = vrot.slane %v4323, %v4329
        %v4331 = vcombine.low %v4219, %v4220
        %v4333 = vunpack.c.l.s4 1983009808
        %v4334 = vunpack.c.0.s8 %v4333
        %v4335 = vlaneseq
        %v4336 = vshrl.u32 %v4335, 7
        %v4337 = vsub.s32 %v4334, %v4336
        %v4338 = vrot.slane %v4331, %v4337
        %v4339 = vcombine.low %v4211, %v4218
        %v4341 = vunpack.c.l.s4 1983009808
        %v4342 = vunpack.c.0.s8 %v4341
        %v4343 = vlaneseq
        %v4344 = vshrl.u32 %v4343, 7
        %v4345 = vsub.s32 %v4342, %v4344
        %v4346 = vrot.slane %v4339, %v4345
        %v4347 = vcombine.low %v4221, %v4222
        %v4349 = vunpack.c.l.s4 1983009808
        %v4350 = vunpack.c.0.s8 %v4349
        %v4351 = vlaneseq
        %v4352 = vshrl.u32 %v4351, 7
        %v4353 = vsub.s32 %v4350, %v4352
        %v4354 = vrot.slane %v4347, %v4353
        %v4355 = vcombine.low %v4330, %v4338
        %v4357 = vunpack.c.l.s4 1934713408
        %v4358 = vunpack.c.0.s8 %v4357
        %v4359 = vlaneseq
        %v4360 = vshrl.u32 %v4359, 7
        %v4361 = vsub.s32 %v4358, %v4360
        %v4362 = vrot.slane %v4355, %v4361
        %v4363 = vcombine.low %v4346, %v4354
        %v4365 = vunpack.c.l.s4 1934713408
        %v4366 = vunpack.c.0.s8 %v4365
        %v4367 = vlaneseq
        %v4368 = vshrl.u32 %v4367, 7
        %v4369 = vsub.s32 %v4366, %v4368
        %v4370 = vrot.slane %v4363, %v4369
        %v4371 = vcombine.low %v4362, %v4370
        %v4372 = vcombine.high %v4362, %v4370
        %4376 = vrot.lane.b32.xlu0 %v3640, 112
        %v4377 = vpop.permute.xlu0 %4376
        %4378 = vrot.lane.b32.xlu0 %v3643, 112
        %v4379 = vpop.permute.xlu0 %4378
        %4380 = vrot.lane.b32.xlu0 %v3648, 112
        %v4381 = vpop.permute.xlu0 %4380
        %v4385 = vcombine.high %v3640, 0.0
        %v4387 = vunpack.c.l.s4 1983009808
        %v4388 = vunpack.c.0.s8 %v4387
        %v4389 = vlaneseq
        %v4390 = vshrl.u32 %v4389, 7
        %v4391 = vsub.s32 %v4388, %v4390
        %v4392 = vrot.slane %v3640, %v4391
        %v4394 = vunpack.c.l.s4 1983009808
        %v4395 = vunpack.c.0.s8 %v4394
        %v4396 = vlaneseq
        %v4397 = vshrl.u32 %v4396, 7
        %v4398 = vsub.s32 %v4395, %v4397
        %v4399 = vrot.slane %v4385, %v4398
        %v4400 = vcombine.high %v4377, 0.0
        %v4402 = vunpack.c.l.s4 1983009808
        %v4403 = vunpack.c.0.s8 %v4402
        %v4404 = vlaneseq
        %v4405 = vshrl.u32 %v4404, 7
        %v4406 = vsub.s32 %v4403, %v4405
        %v4407 = vrot.slane %v4377, %v4406
        %v4409 = vunpack.c.l.s4 1983009808
        %v4410 = vunpack.c.0.s8 %v4409
        %v4411 = vlaneseq
        %v4412 = vshrl.u32 %v4411, 7
        %v4413 = vsub.s32 %v4410, %v4412
        %v4414 = vrot.slane %v4400, %v4413
        %v4415 = vcombine.low %v4392, %v4407
        %v4416 = vcombine.high %v4392, %v4407
        %v4418 = vunpack.c.l.s4 1934713408
        %v4419 = vunpack.c.0.s8 %v4418
        %v4420 = vlaneseq
        %v4421 = vshrl.u32 %v4420, 7
        %v4422 = vsub.s32 %v4419, %v4421
        %v4423 = vrot.slane %v4415, %v4422
        %v4425 = vunpack.c.l.s4 1934713408
        %v4426 = vunpack.c.0.s8 %v4425
        %v4427 = vlaneseq
        %v4428 = vshrl.u32 %v4427, 7
        %v4429 = vsub.s32 %v4426, %v4428
        %v4430 = vrot.slane %v4416, %v4429
        %v4431 = vcombine.low %v4399, %v4414
        %v4432 = vcombine.high %v4399, %v4414
        %v4434 = vunpack.c.l.s4 1934713408
        %v4435 = vunpack.c.0.s8 %v4434
        %v4436 = vlaneseq
        %v4437 = vshrl.u32 %v4436, 7
        %v4438 = vsub.s32 %v4435, %v4437
        %v4439 = vrot.slane %v4431, %v4438
        %v4441 = vunpack.c.l.s4 1934713408
        %v4442 = vunpack.c.0.s8 %v4441
        %v4443 = vlaneseq
        %v4444 = vshrl.u32 %v4443, 7
        %v4445 = vsub.s32 %v4442, %v4444
        %v4446 = vrot.slane %v4432, %v4445
        %v4447 = vcombine.high %v4423, 0.0
        %v4448 = vcombine.high %v4430, 0.0
        %v4449 = vcombine.high %v4439, 0.0
        %v4450 = vcombine.high %v4446, 0.0
        %v4451 = vcombine.high %v3643, 0.0
        %v4453 = vunpack.c.l.s4 1983009808
        %v4454 = vunpack.c.0.s8 %v4453
        %v4455 = vlaneseq
        %v4456 = vshrl.u32 %v4455, 7
        %v4457 = vsub.s32 %v4454, %v4456
        %v4458 = vrot.slane %v3643, %v4457
        %v4460 = vunpack.c.l.s4 1983009808
        %v4461 = vunpack.c.0.s8 %v4460
        %v4462 = vlaneseq
        %v4463 = vshrl.u32 %v4462, 7
        %v4464 = vsub.s32 %v4461, %v4463
        %v4465 = vrot.slane %v4451, %v4464
        %v4466 = vcombine.high %v4379, 0.0
        %v4468 = vunpack.c.l.s4 1983009808
        %v4469 = vunpack.c.0.s8 %v4468
        %v4470 = vlaneseq
        %v4471 = vshrl.u32 %v4470, 7
        %v4472 = vsub.s32 %v4469, %v4471
        %v4473 = vrot.slane %v4379, %v4472
        %v4475 = vunpack.c.l.s4 1983009808
        %v4476 = vunpack.c.0.s8 %v4475
        %v4477 = vlaneseq
        %v4478 = vshrl.u32 %v4477, 7
        %v4479 = vsub.s32 %v4476, %v4478
        %v4480 = vrot.slane %v4466, %v4479
        %v4481 = vcombine.low %v4458, %v4473
        %v4482 = vcombine.high %v4458, %v4473
        %v4484 = vunpack.c.l.s4 1934713408
        %v4485 = vunpack.c.0.s8 %v4484
        %v4486 = vlaneseq
        %v4487 = vshrl.u32 %v4486, 7
        %v4488 = vsub.s32 %v4485, %v4487
        %v4489 = vrot.slane %v4481, %v4488
        %v4491 = vunpack.c.l.s4 1934713408
        %v4492 = vunpack.c.0.s8 %v4491
        %v4493 = vlaneseq
        %v4494 = vshrl.u32 %v4493, 7
        %v4495 = vsub.s32 %v4492, %v4494
        %v4496 = vrot.slane %v4482, %v4495
        %v4497 = vcombine.low %v4465, %v4480
        %v4498 = vcombine.high %v4465, %v4480
        %v4500 = vunpack.c.l.s4 1934713408
        %v4501 = vunpack.c.0.s8 %v4500
        %v4502 = vlaneseq
        %v4503 = vshrl.u32 %v4502, 7
        %v4504 = vsub.s32 %v4501, %v4503
        %v4505 = vrot.slane %v4497, %v4504
        %v4507 = vunpack.c.l.s4 1934713408
        %v4508 = vunpack.c.0.s8 %v4507
        %v4509 = vlaneseq
        %v4510 = vshrl.u32 %v4509, 7
        %v4511 = vsub.s32 %v4508, %v4510
        %v4512 = vrot.slane %v4498, %v4511
        %v4513 = vcombine.high %v4489, 0.0
        %v4514 = vcombine.high %v4496, 0.0
        %v4515 = vcombine.high %v4505, 0.0
        %v4516 = vcombine.high %v4512, 0.0
        %v4517 = vcombine.high %v3648, 0.0
        %v4519 = vunpack.c.l.s4 1983009808
        %v4520 = vunpack.c.0.s8 %v4519
        %v4521 = vlaneseq
        %v4522 = vshrl.u32 %v4521, 7
        %v4523 = vsub.s32 %v4520, %v4522
        %v4524 = vrot.slane %v3648, %v4523
        %v4526 = vunpack.c.l.s4 1983009808
        %v4527 = vunpack.c.0.s8 %v4526
        %v4528 = vlaneseq
        %v4529 = vshrl.u32 %v4528, 7
        %v4530 = vsub.s32 %v4527, %v4529
        %v4531 = vrot.slane %v4517, %v4530
        %v4532 = vcombine.high %v4381, 0.0
        %v4534 = vunpack.c.l.s4 1983009808
        %v4535 = vunpack.c.0.s8 %v4534
        %v4536 = vlaneseq
        %v4537 = vshrl.u32 %v4536, 7
        %v4538 = vsub.s32 %v4535, %v4537
        %v4539 = vrot.slane %v4381, %v4538
        %v4541 = vunpack.c.l.s4 1983009808
        %v4542 = vunpack.c.0.s8 %v4541
        %v4543 = vlaneseq
        %v4544 = vshrl.u32 %v4543, 7
        %v4545 = vsub.s32 %v4542, %v4544
        %v4546 = vrot.slane %v4532, %v4545
        %v4547 = vcombine.low %v4524, %v4539
        %v4548 = vcombine.high %v4524, %v4539
        %v4550 = vunpack.c.l.s4 1934713408
        %v4551 = vunpack.c.0.s8 %v4550
        %v4552 = vlaneseq
        %v4553 = vshrl.u32 %v4552, 7
        %v4554 = vsub.s32 %v4551, %v4553
        %v4555 = vrot.slane %v4547, %v4554
        %v4557 = vunpack.c.l.s4 1934713408
        %v4558 = vunpack.c.0.s8 %v4557
        %v4559 = vlaneseq
        %v4560 = vshrl.u32 %v4559, 7
        %v4561 = vsub.s32 %v4558, %v4560
        %v4562 = vrot.slane %v4548, %v4561
        %v4563 = vcombine.low %v4531, %v4546
        %v4564 = vcombine.high %v4531, %v4546
        %v4566 = vunpack.c.l.s4 1934713408
        %v4567 = vunpack.c.0.s8 %v4566
        %v4568 = vlaneseq
        %v4569 = vshrl.u32 %v4568, 7
        %v4570 = vsub.s32 %v4567, %v4569
        %v4571 = vrot.slane %v4563, %v4570
        %v4573 = vunpack.c.l.s4 1934713408
        %v4574 = vunpack.c.0.s8 %v4573
        %v4575 = vlaneseq
        %v4576 = vshrl.u32 %v4575, 7
        %v4577 = vsub.s32 %v4574, %v4576
        %v4578 = vrot.slane %v4564, %v4577
        %v4579 = vcombine.high %v4555, 0.0
        %v4580 = vcombine.high %v4562, 0.0
        %v4581 = vcombine.high %v4571, 0.0
        %v4582 = vcombine.high %v4578, 0.0
        %v4583 = vcombine.low %v4423, %v4430
        %v4585 = vunpack.c.l.s4 1983009808
        %v4586 = vunpack.c.0.s8 %v4585
        %v4587 = vlaneseq
        %v4588 = vshrl.u32 %v4587, 7
        %v4589 = vsub.s32 %v4586, %v4588
        %v4590 = vrot.slane %v4583, %v4589
        %v4591 = vcombine.low %v4447, %v4448
        %v4593 = vunpack.c.l.s4 1983009808
        %v4594 = vunpack.c.0.s8 %v4593
        %v4595 = vlaneseq
        %v4596 = vshrl.u32 %v4595, 7
        %v4597 = vsub.s32 %v4594, %v4596
        %v4598 = vrot.slane %v4591, %v4597
        %v4599 = vcombine.low %v4439, %v4446
        %v4601 = vunpack.c.l.s4 1983009808
        %v4602 = vunpack.c.0.s8 %v4601
        %v4603 = vlaneseq
        %v4604 = vshrl.u32 %v4603, 7
        %v4605 = vsub.s32 %v4602, %v4604
        %v4606 = vrot.slane %v4599, %v4605
        %v4607 = vcombine.low %v4449, %v4450
        %v4609 = vunpack.c.l.s4 1983009808
        %v4610 = vunpack.c.0.s8 %v4609
        %v4611 = vlaneseq
        %v4612 = vshrl.u32 %v4611, 7
        %v4613 = vsub.s32 %v4610, %v4612
        %v4614 = vrot.slane %v4607, %v4613
        %v4615 = vcombine.low %v4590, %v4598
        %v4617 = vunpack.c.l.s4 1934713408
        %v4618 = vunpack.c.0.s8 %v4617
        %v4619 = vlaneseq
        %v4620 = vshrl.u32 %v4619, 7
        %v4621 = vsub.s32 %v4618, %v4620
        %v4622 = vrot.slane %v4615, %v4621
        %v4623 = vcombine.low %v4606, %v4614
        %v4625 = vunpack.c.l.s4 1934713408
        %v4626 = vunpack.c.0.s8 %v4625
        %v4627 = vlaneseq
        %v4628 = vshrl.u32 %v4627, 7
        %v4629 = vsub.s32 %v4626, %v4628
        %v4630 = vrot.slane %v4623, %v4629
        %v4631 = vcombine.low %v4622, %v4630
        %v4632 = vcombine.high %v4622, %v4630
        %v4633 = vcombine.low %v4489, %v4496
        %v4635 = vunpack.c.l.s4 1983009808
        %v4636 = vunpack.c.0.s8 %v4635
        %v4637 = vlaneseq
        %v4638 = vshrl.u32 %v4637, 7
        %v4639 = vsub.s32 %v4636, %v4638
        %v4640 = vrot.slane %v4633, %v4639
        %v4641 = vcombine.low %v4513, %v4514
        %v4643 = vunpack.c.l.s4 1983009808
        %v4644 = vunpack.c.0.s8 %v4643
        %v4645 = vlaneseq
        %v4646 = vshrl.u32 %v4645, 7
        %v4647 = vsub.s32 %v4644, %v4646
        %v4648 = vrot.slane %v4641, %v4647
        %v4649 = vcombine.low %v4505, %v4512
        %v4651 = vunpack.c.l.s4 1983009808
        %v4652 = vunpack.c.0.s8 %v4651
        %v4653 = vlaneseq
        %v4654 = vshrl.u32 %v4653, 7
        %v4655 = vsub.s32 %v4652, %v4654
        %v4656 = vrot.slane %v4649, %v4655
        %v4657 = vcombine.low %v4515, %v4516
        %v4659 = vunpack.c.l.s4 1983009808
        %v4660 = vunpack.c.0.s8 %v4659
        %v4661 = vlaneseq
        %v4662 = vshrl.u32 %v4661, 7
        %v4663 = vsub.s32 %v4660, %v4662
        %v4664 = vrot.slane %v4657, %v4663
        %v4665 = vcombine.low %v4640, %v4648
        %v4667 = vunpack.c.l.s4 1934713408
        %v4668 = vunpack.c.0.s8 %v4667
        %v4669 = vlaneseq
        %v4670 = vshrl.u32 %v4669, 7
        %v4671 = vsub.s32 %v4668, %v4670
        %v4672 = vrot.slane %v4665, %v4671
        %v4673 = vcombine.low %v4656, %v4664
        %v4675 = vunpack.c.l.s4 1934713408
        %v4676 = vunpack.c.0.s8 %v4675
        %v4677 = vlaneseq
        %v4678 = vshrl.u32 %v4677, 7
        %v4679 = vsub.s32 %v4676, %v4678
        %v4680 = vrot.slane %v4673, %v4679
        %v4681 = vcombine.low %v4672, %v4680
        %v4682 = vcombine.high %v4672, %v4680
        %v4683 = vcombine.low %v4555, %v4562
        %v4685 = vunpack.c.l.s4 1983009808
        %v4686 = vunpack.c.0.s8 %v4685
        %v4687 = vlaneseq
        %v4688 = vshrl.u32 %v4687, 7
        %v4689 = vsub.s32 %v4686, %v4688
        %v4690 = vrot.slane %v4683, %v4689
        %v4691 = vcombine.low %v4579, %v4580
        %v4693 = vunpack.c.l.s4 1983009808
        %v4694 = vunpack.c.0.s8 %v4693
        %v4695 = vlaneseq
        %v4696 = vshrl.u32 %v4695, 7
        %v4697 = vsub.s32 %v4694, %v4696
        %v4698 = vrot.slane %v4691, %v4697
        %v4699 = vcombine.low %v4571, %v4578
        %v4701 = vunpack.c.l.s4 1983009808
        %v4702 = vunpack.c.0.s8 %v4701
        %v4703 = vlaneseq
        %v4704 = vshrl.u32 %v4703, 7
        %v4705 = vsub.s32 %v4702, %v4704
        %v4706 = vrot.slane %v4699, %v4705
        %v4707 = vcombine.low %v4581, %v4582
        %v4709 = vunpack.c.l.s4 1983009808
        %v4710 = vunpack.c.0.s8 %v4709
        %v4711 = vlaneseq
        %v4712 = vshrl.u32 %v4711, 7
        %v4713 = vsub.s32 %v4710, %v4712
        %v4714 = vrot.slane %v4707, %v4713
        %v4715 = vcombine.low %v4690, %v4698
        %v4717 = vunpack.c.l.s4 1934713408
        %v4718 = vunpack.c.0.s8 %v4717
        %v4719 = vlaneseq
        %v4720 = vshrl.u32 %v4719, 7
        %v4721 = vsub.s32 %v4718, %v4720
        %v4722 = vrot.slane %v4715, %v4721
        %v4723 = vcombine.low %v4706, %v4714
        %v4725 = vunpack.c.l.s4 1934713408
        %v4726 = vunpack.c.0.s8 %v4725
        %v4727 = vlaneseq
        %v4728 = vshrl.u32 %v4727, 7
        %v4729 = vsub.s32 %v4726, %v4728
        %v4730 = vrot.slane %v4723, %v4729
        %v4731 = vcombine.low %v4722, %v4730
        %v4732 = vcombine.high %v4722, %v4730
        %v4733 = vpack.c.bf16 %v3911, %v3911
        %v4734 = vpack.c.bf16 %v3912, %v3912
        %v4735 = vpack.c.bf16 %v3961, %v3961
        %v4736 = vpack.c.bf16 %v3962, %v3962
        %v4737 = vpack.c.bf16 %v4011, %v4011
        %v4738 = vpack.c.bf16 %v4012, %v4012
        %v4739 = vpack.c.bf16 %v4271, %v4271
        %v4740 = vpack.c.bf16 %v4272, %v4272
        %v4741 = vpack.c.bf16 %v4321, %v4321
        %v4742 = vpack.c.bf16 %v4322, %v4322
        %v4743 = vpack.c.bf16 %v4371, %v4371
        %v4744 = vpack.c.bf16 %v4372, %v4372
        %v4746 = vsel %vm2028, %v4733, 0
        %v4749 = vsel %vm2028, %v4739, 0
        %4751 = vmatprep.subr.bf16.mxu0 0
        %4752 = vmatpush1.bf16.xpose.msra.mxu0 0
        %4753 = vmatprep.subr.bf16.mxu0 0
        %4754 = vmatpush1.bf16.xpose.msra.mxu0 0
        %4755 = vmatprep.subr.bf16.mxu0 0
        %4756 = vmatpush1.bf16.xpose.msra.mxu0 0
        %4757 = vmatprep.subr.bf16.mxu0 0
        %4758 = vmatpush1.bf16.xpose.msra.mxu0 0
        %4759 = vmatprep.subr.bf16.mxu0 0
        %4760 = vmatpush1.bf16.xpose.msra.mxu0 0
        %4761 = vmatprep.subr.bf16.mxu0 0
        %4762 = vmatpush1.bf16.xpose.msra.mxu0 0
        %4763 = vmatprep.subr.bf16.mxu0 0
        %4764 = vmatpush1.bf16.xpose.msra.mxu0 0
        %4765 = vmatprep.subr.bf16.mxu0 0
        %4766 = vmatpush1.bf16.xpose.msra.mxu0 %v4749
        %4767 = vmatprep.subr.bf16.mxu0 0
        %4768 = vmatpush2.bf16.xpose.msra.mxu0 0
        %4769 = vmatprep.subr.bf16.mxu0 0
        %4770 = vmatpush2.bf16.xpose.msra.mxu0 0
        %4771 = vmatprep.subr.bf16.mxu0 0
        %4772 = vmatpush2.bf16.xpose.msra.mxu0 0
        %4773 = vmatprep.subr.bf16.mxu0 0
        %4774 = vmatpush2.bf16.xpose.msra.mxu0 0
        %4775 = vmatprep.subr.bf16.mxu0 0
        %4776 = vmatpush2.bf16.xpose.msra.mxu0 0
        %4777 = vmatprep.subr.bf16.mxu0 0
        %4778 = vmatpush2.bf16.xpose.msra.mxu0 0
        %4779 = vmatprep.subr.bf16.mxu0 0
        %4780 = vmatpush2.bf16.xpose.msra.mxu0 0
        %4781 = vmatprep.subr.bf16.mxu0 0
        %4782 = vmatpush2.bf16.xpose.msra.mxu0 0
        %4783 = vmatprep.mubr.bf16.mxu0 0
        %4784 = vmatmul.mubr.bf16.gmra.mxu0 %v4746
        %v4785 = vpop.f32.mrf.mxu0
        %v4786 = vadd.f32 0.0, %v4785
        %v4787 = vpop.f32.mrf.mxu0
        %v4788 = vpop.f32.mrf.mxu0
        %v4789 = vpop.f32.mrf.mxu0
        %4790 = vdwg.mxu0
        %v4792 = vsel %vm2028, %v4734, 0
        %v4795 = vsel %vm2028, %v4740, 0
        %4797 = vmatprep.subr.bf16.mxu0 0
        %4798 = vmatpush1.bf16.xpose.msra.mxu0 0
        %4799 = vmatprep.subr.bf16.mxu0 0
        %4800 = vmatpush1.bf16.xpose.msra.mxu0 0
        %4801 = vmatprep.subr.bf16.mxu0 0
        %4802 = vmatpush1.bf16.xpose.msra.mxu0 0
        %4803 = vmatprep.subr.bf16.mxu0 0
        %4804 = vmatpush1.bf16.xpose.msra.mxu0 0
        %4805 = vmatprep.subr.bf16.mxu0 0
        %4806 = vmatpush1.bf16.xpose.msra.mxu0 0
        %4807 = vmatprep.subr.bf16.mxu0 0
        %4808 = vmatpush1.bf16.xpose.msra.mxu0 0
        %4809 = vmatprep.subr.bf16.mxu0 0
        %4810 = vmatpush1.bf16.xpose.msra.mxu0 0
        %4811 = vmatprep.subr.bf16.mxu0 0
        %4812 = vmatpush1.bf16.xpose.msra.mxu0 %v4795
        %4813 = vmatprep.subr.bf16.mxu0 0
        %4814 = vmatpush2.bf16.xpose.msra.mxu0 0
        %4815 = vmatprep.subr.bf16.mxu0 0
        %4816 = vmatpush2.bf16.xpose.msra.mxu0 0
        %4817 = vmatprep.subr.bf16.mxu0 0
        %4818 = vmatpush2.bf16.xpose.msra.mxu0 0
        %4819 = vmatprep.subr.bf16.mxu0 0
        %4820 = vmatpush2.bf16.xpose.msra.mxu0 0
        %4821 = vmatprep.subr.bf16.mxu0 0
        %4822 = vmatpush2.bf16.xpose.msra.mxu0 0
        %4823 = vmatprep.subr.bf16.mxu0 0
        %4824 = vmatpush2.bf16.xpose.msra.mxu0 0
        %4825 = vmatprep.subr.bf16.mxu0 0
        %4826 = vmatpush2.bf16.xpose.msra.mxu0 0
        %4827 = vmatprep.subr.bf16.mxu0 0
        %4828 = vmatpush2.bf16.xpose.msra.mxu0 0
        %4829 = vmatprep.mubr.bf16.mxu0 0
        %4830 = vmatmul.mubr.bf16.gmra.mxu0 %v4792
        %v4831 = vpop.f32.mrf.mxu0
        %v4832 = vadd.f32 0.0, %v4831
        %v4833 = vpop.f32.mrf.mxu0
        %v4834 = vpop.f32.mrf.mxu0
        %v4835 = vpop.f32.mrf.mxu0
        %4836 = vdwg.mxu0
        %v4838 = vsel %vm2028, %v4735, 0
        %v4841 = vsel %vm2028, %v4741, 0
        %4843 = vmatprep.subr.bf16.mxu0 0
        %4844 = vmatpush1.bf16.xpose.msra.mxu0 0
        %4845 = vmatprep.subr.bf16.mxu0 0
        %4846 = vmatpush1.bf16.xpose.msra.mxu0 0
        %4847 = vmatprep.subr.bf16.mxu0 0
        %4848 = vmatpush1.bf16.xpose.msra.mxu0 0
        %4849 = vmatprep.subr.bf16.mxu0 0
        %4850 = vmatpush1.bf16.xpose.msra.mxu0 0
        %4851 = vmatprep.subr.bf16.mxu0 0
        %4852 = vmatpush1.bf16.xpose.msra.mxu0 0
        %4853 = vmatprep.subr.bf16.mxu0 0
        %4854 = vmatpush1.bf16.xpose.msra.mxu0 0
        %4855 = vmatprep.subr.bf16.mxu0 0
        %4856 = vmatpush1.bf16.xpose.msra.mxu0 0
        %4857 = vmatprep.subr.bf16.mxu0 0
        %4858 = vmatpush1.bf16.xpose.msra.mxu0 %v4841
        %4859 = vmatprep.subr.bf16.mxu0 0
        %4860 = vmatpush2.bf16.xpose.msra.mxu0 0
        %4861 = vmatprep.subr.bf16.mxu0 0
        %4862 = vmatpush2.bf16.xpose.msra.mxu0 0
        %4863 = vmatprep.subr.bf16.mxu0 0
        %4864 = vmatpush2.bf16.xpose.msra.mxu0 0
        %4865 = vmatprep.subr.bf16.mxu0 0
        %4866 = vmatpush2.bf16.xpose.msra.mxu0 0
        %4867 = vmatprep.subr.bf16.mxu0 0
        %4868 = vmatpush2.bf16.xpose.msra.mxu0 0
        %4869 = vmatprep.subr.bf16.mxu0 0
        %4870 = vmatpush2.bf16.xpose.msra.mxu0 0
        %4871 = vmatprep.subr.bf16.mxu0 0
        %4872 = vmatpush2.bf16.xpose.msra.mxu0 0
        %4873 = vmatprep.subr.bf16.mxu0 0
        %4874 = vmatpush2.bf16.xpose.msra.mxu0 0
        %4875 = vmatprep.mubr.bf16.mxu0 0
        %4876 = vmatmul.mubr.bf16.gmra.mxu0 %v4838
        %v4877 = vpop.f32.mrf.mxu0
        %v4878 = vadd.f32 0.0, %v4877
        %v4879 = vpop.f32.mrf.mxu0
        %v4880 = vpop.f32.mrf.mxu0
        %v4881 = vpop.f32.mrf.mxu0
        %4882 = vdwg.mxu0
        %v4884 = vsel %vm2028, %v4736, 0
        %v4887 = vsel %vm2028, %v4742, 0
        %4889 = vmatprep.subr.bf16.mxu0 0
        %4890 = vmatpush1.bf16.xpose.msra.mxu0 0
        %4891 = vmatprep.subr.bf16.mxu0 0
        %4892 = vmatpush1.bf16.xpose.msra.mxu0 0
        %4893 = vmatprep.subr.bf16.mxu0 0
        %4894 = vmatpush1.bf16.xpose.msra.mxu0 0
        %4895 = vmatprep.subr.bf16.mxu0 0
        %4896 = vmatpush1.bf16.xpose.msra.mxu0 0
        %4897 = vmatprep.subr.bf16.mxu0 0
        %4898 = vmatpush1.bf16.xpose.msra.mxu0 0
        %4899 = vmatprep.subr.bf16.mxu0 0
        %4900 = vmatpush1.bf16.xpose.msra.mxu0 0
        %4901 = vmatprep.subr.bf16.mxu0 0
        %4902 = vmatpush1.bf16.xpose.msra.mxu0 0
        %4903 = vmatprep.subr.bf16.mxu0 0
        %4904 = vmatpush1.bf16.xpose.msra.mxu0 %v4887
        %4905 = vmatprep.subr.bf16.mxu0 0
        %4906 = vmatpush2.bf16.xpose.msra.mxu0 0
        %4907 = vmatprep.subr.bf16.mxu0 0
        %4908 = vmatpush2.bf16.xpose.msra.mxu0 0
        %4909 = vmatprep.subr.bf16.mxu0 0
        %4910 = vmatpush2.bf16.xpose.msra.mxu0 0
        %4911 = vmatprep.subr.bf16.mxu0 0
        %4912 = vmatpush2.bf16.xpose.msra.mxu0 0
        %4913 = vmatprep.subr.bf16.mxu0 0
        %4914 = vmatpush2.bf16.xpose.msra.mxu0 0
        %4915 = vmatprep.subr.bf16.mxu0 0
        %4916 = vmatpush2.bf16.xpose.msra.mxu0 0
        %4917 = vmatprep.subr.bf16.mxu0 0
        %4918 = vmatpush2.bf16.xpose.msra.mxu0 0
        %4919 = vmatprep.subr.bf16.mxu0 0
        %4920 = vmatpush2.bf16.xpose.msra.mxu0 0
        %4921 = vmatprep.mubr.bf16.mxu0 0
        %4922 = vmatmul.mubr.bf16.gmra.mxu0 %v4884
        %v4923 = vpop.f32.mrf.mxu0
        %v4924 = vadd.f32 0.0, %v4923
        %v4925 = vpop.f32.mrf.mxu0
        %v4926 = vpop.f32.mrf.mxu0
        %v4927 = vpop.f32.mrf.mxu0
        %4928 = vdwg.mxu0
        %v4930 = vsel %vm2028, %v4737, 0
        %v4933 = vsel %vm2028, %v4743, 0
        %4935 = vmatprep.subr.bf16.mxu0 0
        %4936 = vmatpush1.bf16.xpose.msra.mxu0 0
        %4937 = vmatprep.subr.bf16.mxu0 0
        %4938 = vmatpush1.bf16.xpose.msra.mxu0 0
        %4939 = vmatprep.subr.bf16.mxu0 0
        %4940 = vmatpush1.bf16.xpose.msra.mxu0 0
        %4941 = vmatprep.subr.bf16.mxu0 0
        %4942 = vmatpush1.bf16.xpose.msra.mxu0 0
        %4943 = vmatprep.subr.bf16.mxu0 0
        %4944 = vmatpush1.bf16.xpose.msra.mxu0 0
        %4945 = vmatprep.subr.bf16.mxu0 0
        %4946 = vmatpush1.bf16.xpose.msra.mxu0 0
        %4947 = vmatprep.subr.bf16.mxu0 0
        %4948 = vmatpush1.bf16.xpose.msra.mxu0 0
        %4949 = vmatprep.subr.bf16.mxu0 0
        %4950 = vmatpush1.bf16.xpose.msra.mxu0 %v4933
        %4951 = vmatprep.subr.bf16.mxu0 0
        %4952 = vmatpush2.bf16.xpose.msra.mxu0 0
        %4953 = vmatprep.subr.bf16.mxu0 0
        %4954 = vmatpush2.bf16.xpose.msra.mxu0 0
        %4955 = vmatprep.subr.bf16.mxu0 0
        %4956 = vmatpush2.bf16.xpose.msra.mxu0 0
        %4957 = vmatprep.subr.bf16.mxu0 0
        %4958 = vmatpush2.bf16.xpose.msra.mxu0 0
        %4959 = vmatprep.subr.bf16.mxu0 0
        %4960 = vmatpush2.bf16.xpose.msra.mxu0 0
        %4961 = vmatprep.subr.bf16.mxu0 0
        %4962 = vmatpush2.bf16.xpose.msra.mxu0 0
        %4963 = vmatprep.subr.bf16.mxu0 0
        %4964 = vmatpush2.bf16.xpose.msra.mxu0 0
        %4965 = vmatprep.subr.bf16.mxu0 0
        %4966 = vmatpush2.bf16.xpose.msra.mxu0 0
        %4967 = vmatprep.mubr.bf16.mxu0 0
        %4968 = vmatmul.mubr.bf16.gmra.mxu0 %v4930
        %v4969 = vpop.f32.mrf.mxu0
        %v4970 = vadd.f32 0.0, %v4969
        %v4971 = vpop.f32.mrf.mxu0
        %v4972 = vpop.f32.mrf.mxu0
        %v4973 = vpop.f32.mrf.mxu0
        %4974 = vdwg.mxu0
        %v4976 = vsel %vm2028, %v4738, 0
        %v4979 = vsel %vm2028, %v4744, 0
        %4981 = vmatprep.subr.bf16.mxu0 0
        %4982 = vmatpush1.bf16.xpose.msra.mxu0 0
        %4983 = vmatprep.subr.bf16.mxu0 0
        %4984 = vmatpush1.bf16.xpose.msra.mxu0 0
        %4985 = vmatprep.subr.bf16.mxu0 0
        %4986 = vmatpush1.bf16.xpose.msra.mxu0 0
        %4987 = vmatprep.subr.bf16.mxu0 0
        %4988 = vmatpush1.bf16.xpose.msra.mxu0 0
        %4989 = vmatprep.subr.bf16.mxu0 0
        %4990 = vmatpush1.bf16.xpose.msra.mxu0 0
        %4991 = vmatprep.subr.bf16.mxu0 0
        %4992 = vmatpush1.bf16.xpose.msra.mxu0 0
        %4993 = vmatprep.subr.bf16.mxu0 0
        %4994 = vmatpush1.bf16.xpose.msra.mxu0 0
        %4995 = vmatprep.subr.bf16.mxu0 0
        %4996 = vmatpush1.bf16.xpose.msra.mxu0 %v4979
        %4997 = vmatprep.subr.bf16.mxu0 0
        %4998 = vmatpush2.bf16.xpose.msra.mxu0 0
        %4999 = vmatprep.subr.bf16.mxu0 0
        %5000 = vmatpush2.bf16.xpose.msra.mxu0 0
        %5001 = vmatprep.subr.bf16.mxu0 0
        %5002 = vmatpush2.bf16.xpose.msra.mxu0 0
        %5003 = vmatprep.subr.bf16.mxu0 0
        %5004 = vmatpush2.bf16.xpose.msra.mxu0 0
        %5005 = vmatprep.subr.bf16.mxu0 0
        %5006 = vmatpush2.bf16.xpose.msra.mxu0 0
        %5007 = vmatprep.subr.bf16.mxu0 0
        %5008 = vmatpush2.bf16.xpose.msra.mxu0 0
        %5009 = vmatprep.subr.bf16.mxu0 0
        %5010 = vmatpush2.bf16.xpose.msra.mxu0 0
        %5011 = vmatprep.subr.bf16.mxu0 0
        %5012 = vmatpush2.bf16.xpose.msra.mxu0 0
        %5013 = vmatprep.mubr.bf16.mxu0 0
        %5014 = vmatmul.mubr.bf16.gmra.mxu0 %v4976
        %v5015 = vpop.f32.mrf.mxu0
        %v5016 = vadd.f32 0.0, %v5015
        %v5017 = vpop.f32.mrf.mxu0
        %v5018 = vpop.f32.mrf.mxu0
        %v5019 = vpop.f32.mrf.mxu0
        %5020 = vdwg.mxu0
        %v5021 = vmul.f32 %v4786, 0.25
        %v5022 = vmul.f32 %v4832, 0.25
        %v5023 = vmul.f32 %v4878, 0.25
        %v5024 = vmul.f32 %v4924, 0.25
        %v5025 = vmul.f32 %v4970, 0.25
        %v5026 = vmul.f32 %v5016, 0.25
        %v5027 = vadd.f32 %v5021, %v673
        %v5028 = vadd.f32 %v5022, %v673
        %v5029 = vadd.f32 %v5023, %v673
        %v5030 = vadd.f32 %v5024, %v673
        %v5031 = vadd.f32 %v5025, %v673
        %v5032 = vadd.f32 %v5026, %v673
        %v5033 = vsel %vm2317, %v5027, -inf
        %5034 = vmax.xlane.f32.xlu0 %v5033
        %v5035 = vpop.xlane.xlu0 %5034
        %v5036 = vsel %vm2317, %v5028, -inf
        %5037 = vmax.xlane.f32.xlu0 %v5036
        %v5038 = vpop.xlane.xlu0 %5037
        %v5039 = vsel %vm2317, %v5029, -inf
        %5040 = vmax.xlane.f32.xlu0 %v5039
        %v5041 = vpop.xlane.xlu0 %5040
        %v5042 = vsel %vm2317, %v5030, -inf
        %5043 = vmax.xlane.f32.xlu0 %v5042
        %v5044 = vpop.xlane.xlu0 %5043
        %v5045 = vsel %vm2317, %v5031, -inf
        %5046 = vmax.xlane.f32.xlu0 %v5045
        %v5047 = vpop.xlane.xlu0 %5046
        %v5048 = vsel %vm2317, %v5032, -inf
        %5049 = vmax.xlane.f32.xlu0 %v5048
        %v5050 = vpop.xlane.xlu0 %5049
        %v5051 = vsub.f32 %v5027, %v5035
        %v5052 = vsub.f32 %v5028, %v5038
        %v5053 = vsub.f32 %v5029, %v5041
        %v5054 = vsub.f32 %v5030, %v5044
        %v5055 = vsub.f32 %v5031, %v5047
        %v5056 = vsub.f32 %v5032, %v5050
        %v5057 = vmul.f32 %v5051, 1.442695
        %v5058 = vpow.pop %v5057
        %v5059 = vmul.f32 %v5052, 1.442695
        %v5060 = vpow.pop %v5059
        %v5061 = vmul.f32 %v5053, 1.442695
        %v5062 = vpow.pop %v5061
        %v5063 = vmul.f32 %v5054, 1.442695
        %v5064 = vpow.pop %v5063
        %v5065 = vmul.f32 %v5055, 1.442695
        %v5066 = vpow.pop %v5065
        %v5067 = vmul.f32 %v5056, 1.442695
        %v5068 = vpow.pop %v5067
        %v5069 = vsel %vm2317, %v5058, 0.0
        %5070 = vadd.xlane.f32.xlu0 %v5069
        %v5071 = vpop.xlane.xlu0 %5070
        %v5072 = vsel %vm2317, %v5060, 0.0
        %5073 = vadd.xlane.f32.xlu0 %v5072
        %v5074 = vpop.xlane.xlu0 %5073
        %v5075 = vsel %vm2317, %v5062, 0.0
        %5076 = vadd.xlane.f32.xlu0 %v5075
        %v5077 = vpop.xlane.xlu0 %5076
        %v5078 = vsel %vm2317, %v5064, 0.0
        %5079 = vadd.xlane.f32.xlu0 %v5078
        %v5080 = vpop.xlane.xlu0 %5079
        %v5081 = vsel %vm2317, %v5066, 0.0
        %5082 = vadd.xlane.f32.xlu0 %v5081
        %v5083 = vpop.xlane.xlu0 %5082
        %v5084 = vsel %vm2317, %v5068, 0.0
        %5085 = vadd.xlane.f32.xlu0 %v5084
        %v5086 = vpop.xlane.xlu0 %5085
        %v5087 = vrcp.pop %v5071
        %v5088 = vrcp.pop %v5074
        %v5089 = vrcp.pop %v5077
        %v5090 = vrcp.pop %v5080
        %v5091 = vrcp.pop %v5083
        %v5092 = vrcp.pop %v5086
        %v5093 = vmul.f32 %v5058, %v5087
        %v5094 = vmul.f32 %v5060, %v5088
        %v5095 = vmul.f32 %v5062, %v5089
        %v5096 = vmul.f32 %v5064, %v5090
        %v5097 = vmul.f32 %v5066, %v5091
        %v5098 = vmul.f32 %v5068, %v5092
        %v5099 = vpack.c.bf16 %v5093, %v5093
        %v5100 = vpack.c.bf16 %v5094, %v5094
        %v5101 = vpack.c.bf16 %v5095, %v5095
        %v5102 = vpack.c.bf16 %v5096, %v5096
        %v5103 = vpack.c.bf16 %v5097, %v5097
        %v5104 = vpack.c.bf16 %v5098, %v5098
        %v5105 = vpack.c.bf16 %v4631, %v4631
        %v5106 = vpack.c.bf16 %v4632, %v4632
        %v5107 = vpack.c.bf16 %v4681, %v4681
        %v5108 = vpack.c.bf16 %v4682, %v4682
        %v5109 = vpack.c.bf16 %v4731, %v4731
        %v5110 = vpack.c.bf16 %v4732, %v4732
        %v5112 = vsel %vm2317, %v5099, 0
        %v5115 = vsel %vm2399, %v5105, 0
        %5117 = vmatprep.subr.bf16.mxu0 0
        %5118 = vmatpush1.bf16.msra.mxu0 0
        %5119 = vmatprep.subr.bf16.mxu0 0
        %5120 = vmatpush1.bf16.msra.mxu0 0
        %5121 = vmatprep.subr.bf16.mxu0 0
        %5122 = vmatpush1.bf16.msra.mxu0 0
        %5123 = vmatprep.subr.bf16.mxu0 0
        %5124 = vmatpush1.bf16.msra.mxu0 0
        %5125 = vmatprep.subr.bf16.mxu0 0
        %5126 = vmatpush1.bf16.msra.mxu0 0
        %5127 = vmatprep.subr.bf16.mxu0 0
        %5128 = vmatpush1.bf16.msra.mxu0 0
        %5129 = vmatprep.subr.bf16.mxu0 0
        %5130 = vmatpush1.bf16.msra.mxu0 0
        %5131 = vmatprep.subr.bf16.mxu0 0
        %5132 = vmatpush1.bf16.msra.mxu0 %v5115
        %5133 = vmatprep.subr.bf16.mxu0 0
        %5134 = vmatpush2.bf16.msra.mxu0 0
        %5135 = vmatprep.subr.bf16.mxu0 0
        %5136 = vmatpush2.bf16.msra.mxu0 0
        %5137 = vmatprep.subr.bf16.mxu0 0
        %5138 = vmatpush2.bf16.msra.mxu0 0
        %5139 = vmatprep.subr.bf16.mxu0 0
        %5140 = vmatpush2.bf16.msra.mxu0 0
        %5141 = vmatprep.subr.bf16.mxu0 0
        %5142 = vmatpush2.bf16.msra.mxu0 0
        %5143 = vmatprep.subr.bf16.mxu0 0
        %5144 = vmatpush2.bf16.msra.mxu0 0
        %5145 = vmatprep.subr.bf16.mxu0 0
        %5146 = vmatpush2.bf16.msra.mxu0 0
        %5147 = vmatprep.subr.bf16.mxu0 0
        %5148 = vmatpush2.bf16.msra.mxu0 0
        %5149 = vmatprep.mubr.bf16.mxu0 0
        %5150 = vmatmul.mubr.bf16.gmra.mxu0 %v5112
        %v5151 = vpop.f32.mrf.mxu0
        %v5152 = vadd.f32 0.0, %v5151
        %v5153 = vpop.f32.mrf.mxu0
        %v5154 = vpop.f32.mrf.mxu0
        %v5155 = vpop.f32.mrf.mxu0
        %5156 = vdwg.mxu0
        %v5158 = vsel %vm2317, %v5100, 0
        %v5161 = vsel %vm2399, %v5106, 0
        %5163 = vmatprep.subr.bf16.mxu0 0
        %5164 = vmatpush1.bf16.msra.mxu0 0
        %5165 = vmatprep.subr.bf16.mxu0 0
        %5166 = vmatpush1.bf16.msra.mxu0 0
        %5167 = vmatprep.subr.bf16.mxu0 0
        %5168 = vmatpush1.bf16.msra.mxu0 0
        %5169 = vmatprep.subr.bf16.mxu0 0
        %5170 = vmatpush1.bf16.msra.mxu0 0
        %5171 = vmatprep.subr.bf16.mxu0 0
        %5172 = vmatpush1.bf16.msra.mxu0 0
        %5173 = vmatprep.subr.bf16.mxu0 0
        %5174 = vmatpush1.bf16.msra.mxu0 0
        %5175 = vmatprep.subr.bf16.mxu0 0
        %5176 = vmatpush1.bf16.msra.mxu0 0
        %5177 = vmatprep.subr.bf16.mxu0 0
        %5178 = vmatpush1.bf16.msra.mxu0 %v5161
        %5179 = vmatprep.subr.bf16.mxu0 0
        %5180 = vmatpush2.bf16.msra.mxu0 0
        %5181 = vmatprep.subr.bf16.mxu0 0
        %5182 = vmatpush2.bf16.msra.mxu0 0
        %5183 = vmatprep.subr.bf16.mxu0 0
        %5184 = vmatpush2.bf16.msra.mxu0 0
        %5185 = vmatprep.subr.bf16.mxu0 0
        %5186 = vmatpush2.bf16.msra.mxu0 0
        %5187 = vmatprep.subr.bf16.mxu0 0
        %5188 = vmatpush2.bf16.msra.mxu0 0
        %5189 = vmatprep.subr.bf16.mxu0 0
        %5190 = vmatpush2.bf16.msra.mxu0 0
        %5191 = vmatprep.subr.bf16.mxu0 0
        %5192 = vmatpush2.bf16.msra.mxu0 0
        %5193 = vmatprep.subr.bf16.mxu0 0
        %5194 = vmatpush2.bf16.msra.mxu0 0
        %5195 = vmatprep.mubr.bf16.mxu0 0
        %5196 = vmatmul.mubr.bf16.gmra.mxu0 %v5158
        %v5197 = vpop.f32.mrf.mxu0
        %v5198 = vadd.f32 0.0, %v5197
        %v5199 = vpop.f32.mrf.mxu0
        %v5200 = vpop.f32.mrf.mxu0
        %v5201 = vpop.f32.mrf.mxu0
        %5202 = vdwg.mxu0
        %v5204 = vsel %vm2317, %v5101, 0
        %v5207 = vsel %vm2399, %v5107, 0
        %5209 = vmatprep.subr.bf16.mxu0 0
        %5210 = vmatpush1.bf16.msra.mxu0 0
        %5211 = vmatprep.subr.bf16.mxu0 0
        %5212 = vmatpush1.bf16.msra.mxu0 0
        %5213 = vmatprep.subr.bf16.mxu0 0
        %5214 = vmatpush1.bf16.msra.mxu0 0
        %5215 = vmatprep.subr.bf16.mxu0 0
        %5216 = vmatpush1.bf16.msra.mxu0 0
        %5217 = vmatprep.subr.bf16.mxu0 0
        %5218 = vmatpush1.bf16.msra.mxu0 0
        %5219 = vmatprep.subr.bf16.mxu0 0
        %5220 = vmatpush1.bf16.msra.mxu0 0
        %5221 = vmatprep.subr.bf16.mxu0 0
        %5222 = vmatpush1.bf16.msra.mxu0 0
        %5223 = vmatprep.subr.bf16.mxu0 0
        %5224 = vmatpush1.bf16.msra.mxu0 %v5207
        %5225 = vmatprep.subr.bf16.mxu0 0
        %5226 = vmatpush2.bf16.msra.mxu0 0
        %5227 = vmatprep.subr.bf16.mxu0 0
        %5228 = vmatpush2.bf16.msra.mxu0 0
        %5229 = vmatprep.subr.bf16.mxu0 0
        %5230 = vmatpush2.bf16.msra.mxu0 0
        %5231 = vmatprep.subr.bf16.mxu0 0
        %5232 = vmatpush2.bf16.msra.mxu0 0
        %5233 = vmatprep.subr.bf16.mxu0 0
        %5234 = vmatpush2.bf16.msra.mxu0 0
        %5235 = vmatprep.subr.bf16.mxu0 0
        %5236 = vmatpush2.bf16.msra.mxu0 0
        %5237 = vmatprep.subr.bf16.mxu0 0
        %5238 = vmatpush2.bf16.msra.mxu0 0
        %5239 = vmatprep.subr.bf16.mxu0 0
        %5240 = vmatpush2.bf16.msra.mxu0 0
        %5241 = vmatprep.mubr.bf16.mxu0 0
        %5242 = vmatmul.mubr.bf16.gmra.mxu0 %v5204
        %v5243 = vpop.f32.mrf.mxu0
        %v5244 = vadd.f32 0.0, %v5243
        %v5245 = vpop.f32.mrf.mxu0
        %v5246 = vpop.f32.mrf.mxu0
        %v5247 = vpop.f32.mrf.mxu0
        %5248 = vdwg.mxu0
        %v5250 = vsel %vm2317, %v5102, 0
        %v5253 = vsel %vm2399, %v5108, 0
        %5255 = vmatprep.subr.bf16.mxu0 0
        %5256 = vmatpush1.bf16.msra.mxu0 0
        %5257 = vmatprep.subr.bf16.mxu0 0
        %5258 = vmatpush1.bf16.msra.mxu0 0
        %5259 = vmatprep.subr.bf16.mxu0 0
        %5260 = vmatpush1.bf16.msra.mxu0 0
        %5261 = vmatprep.subr.bf16.mxu0 0
        %5262 = vmatpush1.bf16.msra.mxu0 0
        %5263 = vmatprep.subr.bf16.mxu0 0
        %5264 = vmatpush1.bf16.msra.mxu0 0
        %5265 = vmatprep.subr.bf16.mxu0 0
        %5266 = vmatpush1.bf16.msra.mxu0 0
        %5267 = vmatprep.subr.bf16.mxu0 0
        %5268 = vmatpush1.bf16.msra.mxu0 0
        %5269 = vmatprep.subr.bf16.mxu0 0
        %5270 = vmatpush1.bf16.msra.mxu0 %v5253
        %5271 = vmatprep.subr.bf16.mxu0 0
        %5272 = vmatpush2.bf16.msra.mxu0 0
        %5273 = vmatprep.subr.bf16.mxu0 0
        %5274 = vmatpush2.bf16.msra.mxu0 0
        %5275 = vmatprep.subr.bf16.mxu0 0
        %5276 = vmatpush2.bf16.msra.mxu0 0
        %5277 = vmatprep.subr.bf16.mxu0 0
        %5278 = vmatpush2.bf16.msra.mxu0 0
        %5279 = vmatprep.subr.bf16.mxu0 0
        %5280 = vmatpush2.bf16.msra.mxu0 0
        %5281 = vmatprep.subr.bf16.mxu0 0
        %5282 = vmatpush2.bf16.msra.mxu0 0
        %5283 = vmatprep.subr.bf16.mxu0 0
        %5284 = vmatpush2.bf16.msra.mxu0 0
        %5285 = vmatprep.subr.bf16.mxu0 0
        %5286 = vmatpush2.bf16.msra.mxu0 0
        %5287 = vmatprep.mubr.bf16.mxu0 0
        %5288 = vmatmul.mubr.bf16.gmra.mxu0 %v5250
        %v5289 = vpop.f32.mrf.mxu0
        %v5290 = vadd.f32 0.0, %v5289
        %v5291 = vpop.f32.mrf.mxu0
        %v5292 = vpop.f32.mrf.mxu0
        %v5293 = vpop.f32.mrf.mxu0
        %5294 = vdwg.mxu0
        %v5296 = vsel %vm2317, %v5103, 0
        %v5299 = vsel %vm2399, %v5109, 0
        %5301 = vmatprep.subr.bf16.mxu0 0
        %5302 = vmatpush1.bf16.msra.mxu0 0
        %5303 = vmatprep.subr.bf16.mxu0 0
        %5304 = vmatpush1.bf16.msra.mxu0 0
        %5305 = vmatprep.subr.bf16.mxu0 0
        %5306 = vmatpush1.bf16.msra.mxu0 0
        %5307 = vmatprep.subr.bf16.mxu0 0
        %5308 = vmatpush1.bf16.msra.mxu0 0
        %5309 = vmatprep.subr.bf16.mxu0 0
        %5310 = vmatpush1.bf16.msra.mxu0 0
        %5311 = vmatprep.subr.bf16.mxu0 0
        %5312 = vmatpush1.bf16.msra.mxu0 0
        %5313 = vmatprep.subr.bf16.mxu0 0
        %5314 = vmatpush1.bf16.msra.mxu0 0
        %5315 = vmatprep.subr.bf16.mxu0 0
        %5316 = vmatpush1.bf16.msra.mxu0 %v5299
        %5317 = vmatprep.subr.bf16.mxu0 0
        %5318 = vmatpush2.bf16.msra.mxu0 0
        %5319 = vmatprep.subr.bf16.mxu0 0
        %5320 = vmatpush2.bf16.msra.mxu0 0
        %5321 = vmatprep.subr.bf16.mxu0 0
        %5322 = vmatpush2.bf16.msra.mxu0 0
        %5323 = vmatprep.subr.bf16.mxu0 0
        %5324 = vmatpush2.bf16.msra.mxu0 0
        %5325 = vmatprep.subr.bf16.mxu0 0
        %5326 = vmatpush2.bf16.msra.mxu0 0
        %5327 = vmatprep.subr.bf16.mxu0 0
        %5328 = vmatpush2.bf16.msra.mxu0 0
        %5329 = vmatprep.subr.bf16.mxu0 0
        %5330 = vmatpush2.bf16.msra.mxu0 0
        %5331 = vmatprep.subr.bf16.mxu0 0
        %5332 = vmatpush2.bf16.msra.mxu0 0
        %5333 = vmatprep.mubr.bf16.mxu0 0
        %5334 = vmatmul.mubr.bf16.gmra.mxu0 %v5296
        %v5335 = vpop.f32.mrf.mxu0
        %v5336 = vadd.f32 0.0, %v5335
        %v5337 = vpop.f32.mrf.mxu0
        %v5338 = vpop.f32.mrf.mxu0
        %v5339 = vpop.f32.mrf.mxu0
        %5340 = vdwg.mxu0
        %v5342 = vsel %vm2317, %v5104, 0
        %v5345 = vsel %vm2399, %v5110, 0
        %5347 = vmatprep.subr.bf16.mxu0 0
        %5348 = vmatpush1.bf16.msra.mxu0 0
        %5349 = vmatprep.subr.bf16.mxu0 0
        %5350 = vmatpush1.bf16.msra.mxu0 0
        %5351 = vmatprep.subr.bf16.mxu0 0
        %5352 = vmatpush1.bf16.msra.mxu0 0
        %5353 = vmatprep.subr.bf16.mxu0 0
        %5354 = vmatpush1.bf16.msra.mxu0 0
        %5355 = vmatprep.subr.bf16.mxu0 0
        %5356 = vmatpush1.bf16.msra.mxu0 0
        %5357 = vmatprep.subr.bf16.mxu0 0
        %5358 = vmatpush1.bf16.msra.mxu0 0
        %5359 = vmatprep.subr.bf16.mxu0 0
        %5360 = vmatpush1.bf16.msra.mxu0 0
        %5361 = vmatprep.subr.bf16.mxu0 0
        %5362 = vmatpush1.bf16.msra.mxu0 %v5345
        %5363 = vmatprep.subr.bf16.mxu0 0
        %5364 = vmatpush2.bf16.msra.mxu0 0
        %5365 = vmatprep.subr.bf16.mxu0 0
        %5366 = vmatpush2.bf16.msra.mxu0 0
        %5367 = vmatprep.subr.bf16.mxu0 0
        %5368 = vmatpush2.bf16.msra.mxu0 0
        %5369 = vmatprep.subr.bf16.mxu0 0
        %5370 = vmatpush2.bf16.msra.mxu0 0
        %5371 = vmatprep.subr.bf16.mxu0 0
        %5372 = vmatpush2.bf16.msra.mxu0 0
        %5373 = vmatprep.subr.bf16.mxu0 0
        %5374 = vmatpush2.bf16.msra.mxu0 0
        %5375 = vmatprep.subr.bf16.mxu0 0
        %5376 = vmatpush2.bf16.msra.mxu0 0
        %5377 = vmatprep.subr.bf16.mxu0 0
        %5378 = vmatpush2.bf16.msra.mxu0 0
        %5379 = vmatprep.mubr.bf16.mxu0 0
        %5380 = vmatmul.mubr.bf16.gmra.mxu0 %v5342
        %v5381 = vpop.f32.mrf.mxu0
        %v5382 = vadd.f32 0.0, %v5381
        %v5383 = vpop.f32.mrf.mxu0
        %v5384 = vpop.f32.mrf.mxu0
        %v5385 = vpop.f32.mrf.mxu0
        %5386 = vdwg.mxu0
        %v5387 = vcombine.high %v5152, 0.0
        %v5389 = vunpack.c.l.s4 1983009808
        %v5390 = vunpack.c.0.s8 %v5389
        %v5391 = vlaneseq
        %v5392 = vshrl.u32 %v5391, 7
        %v5393 = vsub.s32 %v5390, %v5392
        %v5394 = vrot.slane %v5152, %v5393
        %v5396 = vunpack.c.l.s4 1983009808
        %v5397 = vunpack.c.0.s8 %v5396
        %v5398 = vlaneseq
        %v5399 = vshrl.u32 %v5398, 7
        %v5400 = vsub.s32 %v5397, %v5399
        %v5401 = vrot.slane %v5387, %v5400
        %v5402 = vcombine.high %v5198, 0.0
        %v5404 = vunpack.c.l.s4 1983009808
        %v5405 = vunpack.c.0.s8 %v5404
        %v5406 = vlaneseq
        %v5407 = vshrl.u32 %v5406, 7
        %v5408 = vsub.s32 %v5405, %v5407
        %v5409 = vrot.slane %v5198, %v5408
        %v5411 = vunpack.c.l.s4 1983009808
        %v5412 = vunpack.c.0.s8 %v5411
        %v5413 = vlaneseq
        %v5414 = vshrl.u32 %v5413, 7
        %v5415 = vsub.s32 %v5412, %v5414
        %v5416 = vrot.slane %v5402, %v5415
        %v5417 = vcombine.low %v5394, %v5409
        %v5418 = vcombine.high %v5394, %v5409
        %v5420 = vunpack.c.l.s4 1934713408
        %v5421 = vunpack.c.0.s8 %v5420
        %v5422 = vlaneseq
        %v5423 = vshrl.u32 %v5422, 7
        %v5424 = vsub.s32 %v5421, %v5423
        %v5425 = vrot.slane %v5417, %v5424
        %v5427 = vunpack.c.l.s4 1934713408
        %v5428 = vunpack.c.0.s8 %v5427
        %v5429 = vlaneseq
        %v5430 = vshrl.u32 %v5429, 7
        %v5431 = vsub.s32 %v5428, %v5430
        %v5432 = vrot.slane %v5418, %v5431
        %v5433 = vcombine.low %v5401, %v5416
        %v5434 = vcombine.high %v5401, %v5416
        %v5436 = vunpack.c.l.s4 1934713408
        %v5437 = vunpack.c.0.s8 %v5436
        %v5438 = vlaneseq
        %v5439 = vshrl.u32 %v5438, 7
        %v5440 = vsub.s32 %v5437, %v5439
        %v5441 = vrot.slane %v5433, %v5440
        %v5443 = vunpack.c.l.s4 1934713408
        %v5444 = vunpack.c.0.s8 %v5443
        %v5445 = vlaneseq
        %v5446 = vshrl.u32 %v5445, 7
        %v5447 = vsub.s32 %v5444, %v5446
        %v5448 = vrot.slane %v5434, %v5447
        %v5449 = vcombine.high %v5425, 0.0
        %v5450 = vcombine.high %v5432, 0.0
        %v5451 = vcombine.high %v5441, 0.0
        %v5452 = vcombine.high %v5448, 0.0
        %v5453 = vcombine.high %v5244, 0.0
        %v5455 = vunpack.c.l.s4 1983009808
        %v5456 = vunpack.c.0.s8 %v5455
        %v5457 = vlaneseq
        %v5458 = vshrl.u32 %v5457, 7
        %v5459 = vsub.s32 %v5456, %v5458
        %v5460 = vrot.slane %v5244, %v5459
        %v5462 = vunpack.c.l.s4 1983009808
        %v5463 = vunpack.c.0.s8 %v5462
        %v5464 = vlaneseq
        %v5465 = vshrl.u32 %v5464, 7
        %v5466 = vsub.s32 %v5463, %v5465
        %v5467 = vrot.slane %v5453, %v5466
        %v5468 = vcombine.high %v5290, 0.0
        %v5470 = vunpack.c.l.s4 1983009808
        %v5471 = vunpack.c.0.s8 %v5470
        %v5472 = vlaneseq
        %v5473 = vshrl.u32 %v5472, 7
        %v5474 = vsub.s32 %v5471, %v5473
        %v5475 = vrot.slane %v5290, %v5474
        %v5477 = vunpack.c.l.s4 1983009808
        %v5478 = vunpack.c.0.s8 %v5477
        %v5479 = vlaneseq
        %v5480 = vshrl.u32 %v5479, 7
        %v5481 = vsub.s32 %v5478, %v5480
        %v5482 = vrot.slane %v5468, %v5481
        %v5483 = vcombine.low %v5460, %v5475
        %v5484 = vcombine.high %v5460, %v5475
        %v5486 = vunpack.c.l.s4 1934713408
        %v5487 = vunpack.c.0.s8 %v5486
        %v5488 = vlaneseq
        %v5489 = vshrl.u32 %v5488, 7
        %v5490 = vsub.s32 %v5487, %v5489
        %v5491 = vrot.slane %v5483, %v5490
        %v5493 = vunpack.c.l.s4 1934713408
        %v5494 = vunpack.c.0.s8 %v5493
        %v5495 = vlaneseq
        %v5496 = vshrl.u32 %v5495, 7
        %v5497 = vsub.s32 %v5494, %v5496
        %v5498 = vrot.slane %v5484, %v5497
        %v5499 = vcombine.low %v5467, %v5482
        %v5500 = vcombine.high %v5467, %v5482
        %v5502 = vunpack.c.l.s4 1934713408
        %v5503 = vunpack.c.0.s8 %v5502
        %v5504 = vlaneseq
        %v5505 = vshrl.u32 %v5504, 7
        %v5506 = vsub.s32 %v5503, %v5505
        %v5507 = vrot.slane %v5499, %v5506
        %v5509 = vunpack.c.l.s4 1934713408
        %v5510 = vunpack.c.0.s8 %v5509
        %v5511 = vlaneseq
        %v5512 = vshrl.u32 %v5511, 7
        %v5513 = vsub.s32 %v5510, %v5512
        %v5514 = vrot.slane %v5500, %v5513
        %v5515 = vcombine.high %v5491, 0.0
        %v5516 = vcombine.high %v5498, 0.0
        %v5517 = vcombine.high %v5507, 0.0
        %v5518 = vcombine.high %v5514, 0.0
        %v5519 = vcombine.high %v5336, 0.0
        %v5521 = vunpack.c.l.s4 1983009808
        %v5522 = vunpack.c.0.s8 %v5521
        %v5523 = vlaneseq
        %v5524 = vshrl.u32 %v5523, 7
        %v5525 = vsub.s32 %v5522, %v5524
        %v5526 = vrot.slane %v5336, %v5525
        %v5528 = vunpack.c.l.s4 1983009808
        %v5529 = vunpack.c.0.s8 %v5528
        %v5530 = vlaneseq
        %v5531 = vshrl.u32 %v5530, 7
        %v5532 = vsub.s32 %v5529, %v5531
        %v5533 = vrot.slane %v5519, %v5532
        %v5534 = vcombine.high %v5382, 0.0
        %v5536 = vunpack.c.l.s4 1983009808
        %v5537 = vunpack.c.0.s8 %v5536
        %v5538 = vlaneseq
        %v5539 = vshrl.u32 %v5538, 7
        %v5540 = vsub.s32 %v5537, %v5539
        %v5541 = vrot.slane %v5382, %v5540
        %v5543 = vunpack.c.l.s4 1983009808
        %v5544 = vunpack.c.0.s8 %v5543
        %v5545 = vlaneseq
        %v5546 = vshrl.u32 %v5545, 7
        %v5547 = vsub.s32 %v5544, %v5546
        %v5548 = vrot.slane %v5534, %v5547
        %v5549 = vcombine.low %v5526, %v5541
        %v5550 = vcombine.high %v5526, %v5541
        %v5552 = vunpack.c.l.s4 1934713408
        %v5553 = vunpack.c.0.s8 %v5552
        %v5554 = vlaneseq
        %v5555 = vshrl.u32 %v5554, 7
        %v5556 = vsub.s32 %v5553, %v5555
        %v5557 = vrot.slane %v5549, %v5556
        %v5559 = vunpack.c.l.s4 1934713408
        %v5560 = vunpack.c.0.s8 %v5559
        %v5561 = vlaneseq
        %v5562 = vshrl.u32 %v5561, 7
        %v5563 = vsub.s32 %v5560, %v5562
        %v5564 = vrot.slane %v5550, %v5563
        %v5565 = vcombine.low %v5533, %v5548
        %v5566 = vcombine.high %v5533, %v5548
        %v5568 = vunpack.c.l.s4 1934713408
        %v5569 = vunpack.c.0.s8 %v5568
        %v5570 = vlaneseq
        %v5571 = vshrl.u32 %v5570, 7
        %v5572 = vsub.s32 %v5569, %v5571
        %v5573 = vrot.slane %v5565, %v5572
        %v5575 = vunpack.c.l.s4 1934713408
        %v5576 = vunpack.c.0.s8 %v5575
        %v5577 = vlaneseq
        %v5578 = vshrl.u32 %v5577, 7
        %v5579 = vsub.s32 %v5576, %v5578
        %v5580 = vrot.slane %v5566, %v5579
        %v5581 = vcombine.high %v5557, 0.0
        %v5582 = vcombine.high %v5564, 0.0
        %v5583 = vcombine.high %v5573, 0.0
        %v5584 = vcombine.high %v5580, 0.0
        %v5585 = vcombine.low %v5425, %v5432
        %v5587 = vunpack.c.l.s4 1983009808
        %v5588 = vunpack.c.0.s8 %v5587
        %v5589 = vlaneseq
        %v5590 = vshrl.u32 %v5589, 7
        %v5591 = vsub.s32 %v5588, %v5590
        %v5592 = vrot.slane %v5585, %v5591
        %v5593 = vcombine.low %v5449, %v5450
        %v5595 = vunpack.c.l.s4 1983009808
        %v5596 = vunpack.c.0.s8 %v5595
        %v5597 = vlaneseq
        %v5598 = vshrl.u32 %v5597, 7
        %v5599 = vsub.s32 %v5596, %v5598
        %v5600 = vrot.slane %v5593, %v5599
        %v5601 = vcombine.low %v5441, %v5448
        %v5603 = vunpack.c.l.s4 1983009808
        %v5604 = vunpack.c.0.s8 %v5603
        %v5605 = vlaneseq
        %v5606 = vshrl.u32 %v5605, 7
        %v5607 = vsub.s32 %v5604, %v5606
        %v5608 = vrot.slane %v5601, %v5607
        %v5609 = vcombine.low %v5451, %v5452
        %v5611 = vunpack.c.l.s4 1983009808
        %v5612 = vunpack.c.0.s8 %v5611
        %v5613 = vlaneseq
        %v5614 = vshrl.u32 %v5613, 7
        %v5615 = vsub.s32 %v5612, %v5614
        %v5616 = vrot.slane %v5609, %v5615
        %v5617 = vcombine.low %v5592, %v5600
        %v5619 = vunpack.c.l.s4 1934713408
        %v5620 = vunpack.c.0.s8 %v5619
        %v5621 = vlaneseq
        %v5622 = vshrl.u32 %v5621, 7
        %v5623 = vsub.s32 %v5620, %v5622
        %v5624 = vrot.slane %v5617, %v5623
        %v5625 = vcombine.low %v5608, %v5616
        %v5627 = vunpack.c.l.s4 1934713408
        %v5628 = vunpack.c.0.s8 %v5627
        %v5629 = vlaneseq
        %v5630 = vshrl.u32 %v5629, 7
        %v5631 = vsub.s32 %v5628, %v5630
        %v5632 = vrot.slane %v5625, %v5631
        %v5633 = vcombine.low %v5624, %v5632
        %v5634 = vcombine.high %v5624, %v5632
        %v5635 = vcombine.low %v5491, %v5498
        %v5637 = vunpack.c.l.s4 1983009808
        %v5638 = vunpack.c.0.s8 %v5637
        %v5639 = vlaneseq
        %v5640 = vshrl.u32 %v5639, 7
        %v5641 = vsub.s32 %v5638, %v5640
        %v5642 = vrot.slane %v5635, %v5641
        %v5643 = vcombine.low %v5515, %v5516
        %v5645 = vunpack.c.l.s4 1983009808
        %v5646 = vunpack.c.0.s8 %v5645
        %v5647 = vlaneseq
        %v5648 = vshrl.u32 %v5647, 7
        %v5649 = vsub.s32 %v5646, %v5648
        %v5650 = vrot.slane %v5643, %v5649
        %v5651 = vcombine.low %v5507, %v5514
        %v5653 = vunpack.c.l.s4 1983009808
        %v5654 = vunpack.c.0.s8 %v5653
        %v5655 = vlaneseq
        %v5656 = vshrl.u32 %v5655, 7
        %v5657 = vsub.s32 %v5654, %v5656
        %v5658 = vrot.slane %v5651, %v5657
        %v5659 = vcombine.low %v5517, %v5518
        %v5661 = vunpack.c.l.s4 1983009808
        %v5662 = vunpack.c.0.s8 %v5661
        %v5663 = vlaneseq
        %v5664 = vshrl.u32 %v5663, 7
        %v5665 = vsub.s32 %v5662, %v5664
        %v5666 = vrot.slane %v5659, %v5665
        %v5667 = vcombine.low %v5642, %v5650
        %v5669 = vunpack.c.l.s4 1934713408
        %v5670 = vunpack.c.0.s8 %v5669
        %v5671 = vlaneseq
        %v5672 = vshrl.u32 %v5671, 7
        %v5673 = vsub.s32 %v5670, %v5672
        %v5674 = vrot.slane %v5667, %v5673
        %v5675 = vcombine.low %v5658, %v5666
        %v5677 = vunpack.c.l.s4 1934713408
        %v5678 = vunpack.c.0.s8 %v5677
        %v5679 = vlaneseq
        %v5680 = vshrl.u32 %v5679, 7
        %v5681 = vsub.s32 %v5678, %v5680
        %v5682 = vrot.slane %v5675, %v5681
        %v5683 = vcombine.low %v5674, %v5682
        %v5684 = vcombine.high %v5674, %v5682
        %v5685 = vcombine.low %v5557, %v5564
        %v5687 = vunpack.c.l.s4 1983009808
        %v5688 = vunpack.c.0.s8 %v5687
        %v5689 = vlaneseq
        %v5690 = vshrl.u32 %v5689, 7
        %v5691 = vsub.s32 %v5688, %v5690
        %v5692 = vrot.slane %v5685, %v5691
        %v5693 = vcombine.low %v5581, %v5582
        %v5695 = vunpack.c.l.s4 1983009808
        %v5696 = vunpack.c.0.s8 %v5695
        %v5697 = vlaneseq
        %v5698 = vshrl.u32 %v5697, 7
        %v5699 = vsub.s32 %v5696, %v5698
        %v5700 = vrot.slane %v5693, %v5699
        %v5701 = vcombine.low %v5573, %v5580
        %v5703 = vunpack.c.l.s4 1983009808
        %v5704 = vunpack.c.0.s8 %v5703
        %v5705 = vlaneseq
        %v5706 = vshrl.u32 %v5705, 7
        %v5707 = vsub.s32 %v5704, %v5706
        %v5708 = vrot.slane %v5701, %v5707
        %v5709 = vcombine.low %v5583, %v5584
        %v5711 = vunpack.c.l.s4 1983009808
        %v5712 = vunpack.c.0.s8 %v5711
        %v5713 = vlaneseq
        %v5714 = vshrl.u32 %v5713, 7
        %v5715 = vsub.s32 %v5712, %v5714
        %v5716 = vrot.slane %v5709, %v5715
        %v5717 = vcombine.low %v5692, %v5700
        %v5719 = vunpack.c.l.s4 1934713408
        %v5720 = vunpack.c.0.s8 %v5719
        %v5721 = vlaneseq
        %v5722 = vshrl.u32 %v5721, 7
        %v5723 = vsub.s32 %v5720, %v5722
        %v5724 = vrot.slane %v5717, %v5723
        %v5725 = vcombine.low %v5708, %v5716
        %v5727 = vunpack.c.l.s4 1934713408
        %v5728 = vunpack.c.0.s8 %v5727
        %v5729 = vlaneseq
        %v5730 = vshrl.u32 %v5729, 7
        %v5731 = vsub.s32 %v5728, %v5730
        %v5732 = vrot.slane %v5725, %v5731
        %v5733 = vcombine.low %v5724, %v5732
        %v5734 = vcombine.high %v5724, %v5732
        %5738 = vrot.lane.b32.xlu0 %v5634, 16
        %v5739 = vpop.permute.xlu0 %5738
        %5740 = vrot.lane.b32.xlu0 %v5684, 16
        %v5741 = vpop.permute.xlu0 %5740
        %5742 = vrot.lane.b32.xlu0 %v5734, 16
        %v5743 = vpop.permute.xlu0 %5742
        %v5747 = vsel %vm2028, %v5633, %v5739
        %v5748 = vsel %vm2028, %v5683, %v5741
        %v5749 = vsel %vm2028, %v5733, %v5743
        %v5750 = vpack.c.bf16 %v5748, %v5747
        %v5751 = vpack.c.bf16 %v5749, %v5749
        %s5752 = scalar_lea.vmem %s9, 16
        %v5753 = vld [vmem:[%s5752] sm:$0xf]
        %v5754 = vld [vmem:[%s5752 + $0x4] sm:$0xf]
        %v5755 = vld [vmem:[%s5752 + $0x8] sm:$0xf]
        %v5756 = vld [vmem:[%s5752 + $0xc] sm:$0xf]
        %s5757 = scalar_lea.vmem [#allocation6], 1
        %v5758 = vld [vmem:[%s5757] sm:$0x1]
        %v5760 = vlaneseq
        %v5761 = vshrl.u32 %v5760, 7
        %v5762 = vsub.s32 0, %v5761
        %v5763 = vrot.slane %v5758, %v5762
        %v5769 = vunpack.c.l.b16 %v5753
        %v5770 = vunpack.c.l.b16 %v5754
        %v5771 = vunpack.c.l.b16 %v5755
        %v5772 = vunpack.c.l.b16 %v5756
        %v5773 = vpack.c.b16 %v5770, %v5769
        %v5774 = vpack.c.b16 %v5772, %v5771
        %v5778 = vsel %vm674, %v5750, 0
        %v5781 = vsel %vm674, %v5751, 0
        %5783 = vmatprep.subr.bf16.mxu0 0
        %5784 = vmatpush1.bf16.msra.mxu0 0
        %5785 = vmatprep.subr.bf16.mxu0 0
        %5786 = vmatpush1.bf16.msra.mxu0 0
        %5787 = vmatprep.subr.bf16.mxu0 0
        %5788 = vmatpush1.bf16.msra.mxu0 0
        %5789 = vmatprep.subr.bf16.mxu0 0
        %5790 = vmatpush1.bf16.msra.mxu0 0
        %5791 = vmatprep.subr.bf16.mxu0 0
        %5792 = vmatpush1.bf16.msra.mxu0 0
        %5793 = vmatprep.subr.bf16.mxu0 0
        %5794 = vmatpush1.bf16.msra.mxu0 0
        %5795 = vmatprep.subr.bf16.mxu0 0
        %5796 = vmatpush1.bf16.msra.mxu0 %v5774
        %5797 = vmatprep.subr.bf16.mxu0 0
        %5798 = vmatpush1.bf16.msra.mxu0 %v5773
        %5799 = vmatprep.subr.bf16.mxu0 0
        %5800 = vmatpush2.bf16.msra.mxu0 0
        %5801 = vmatprep.subr.bf16.mxu0 0
        %5802 = vmatpush2.bf16.msra.mxu0 0
        %5803 = vmatprep.subr.bf16.mxu0 0
        %5804 = vmatpush2.bf16.msra.mxu0 0
        %5805 = vmatprep.subr.bf16.mxu0 0
        %5806 = vmatpush2.bf16.msra.mxu0 0
        %5807 = vmatprep.subr.bf16.mxu0 0
        %5808 = vmatpush2.bf16.msra.mxu0 0
        %5809 = vmatprep.subr.bf16.mxu0 0
        %5810 = vmatpush2.bf16.msra.mxu0 0
        %5811 = vmatprep.subr.bf16.mxu0 0
        %5812 = vmatpush2.bf16.msra.mxu0 0
        %5813 = vmatprep.subr.bf16.mxu0 0
        %5814 = vmatpush2.bf16.msra.mxu0 0
        %5815 = vmatprep.mubr.bf16.mxu0 0
        %5816 = vmatmul.mubr.bf16.gmra.mxu0 %v5778
        %v5817 = vpop.f32.mrf.mxu0
        %v5818 = vadd.f32 %v5763, %v5817
        %v5819 = vpop.f32.mrf.mxu0
        %v5820 = vpop.f32.mrf.mxu0
        %v5821 = vadd.f32 %v5763, %v5820
        %v5822 = vpop.f32.mrf.mxu0
        %5823 = vmatprep.mubr.bf16.mxu0 0
        %5824 = vmatmul.mubr.bf16.gmra.mxu0 %v5781
        %v5825 = vpop.f32.mrf.mxu0
        %v5826 = vadd.f32 %v5763, %v5825
        %v5827 = vpop.f32.mrf.mxu0
        %v5828 = vpop.f32.mrf.mxu0
        %v5829 = vpop.f32.mrf.mxu0
        %5830 = vdwg.mxu0
        %v5831 = vadd.f32 %v3384, %v5818
        %v5832 = vadd.f32 %v3385, %v5821
        %v5833 = vadd.f32 %v3386, %v5826
        %v5834 = vsel %vm674, %v5831, 0.0
        %5835 = vadd.xlane.f32.xlu0 %v5834
        %v5836 = vpop.xlane.xlu0 %5835
        %v5837 = vsel %vm674, %v5832, 0.0
        %5838 = vadd.xlane.f32.xlu0 %v5837
        %v5839 = vpop.xlane.xlu0 %5838
        %v5840 = vsel %vm674, %v5833, 0.0
        %5841 = vadd.xlane.f32.xlu0 %v5840
        %v5842 = vpop.xlane.xlu0 %5841
        %v5843 = vmul.f32 %v5836, %v684
        %v5844 = vmul.f32 %v5839, %v684
        %v5845 = vmul.f32 %v5842, %v684
        %v5846 = vsub.f32 %v5831, %v5843
        %v5847 = vsub.f32 %v5832, %v5844
        %v5848 = vsub.f32 %v5833, %v5845
        %v5849 = vmul.f32 %v5846, %v5846
        %v5850 = vmul.f32 %v5847, %v5847
        %v5851 = vmul.f32 %v5848, %v5848
        %v5852 = vsel %vm674, %v5849, 0.0
        %5853 = vadd.xlane.f32.xlu0 %v5852
        %v5854 = vpop.xlane.xlu0 %5853
        %v5855 = vsel %vm674, %v5850, 0.0
        %5856 = vadd.xlane.f32.xlu0 %v5855
        %v5857 = vpop.xlane.xlu0 %5856
        %v5858 = vsel %vm674, %v5851, 0.0
        %5859 = vadd.xlane.f32.xlu0 %v5858
        %v5860 = vpop.xlane.xlu0 %5859
        %v5861 = vmul.f32 %v5854, %v684
        %v5862 = vmul.f32 %v5857, %v684
        %v5863 = vmul.f32 %v5860, %v684
        %v5864 = vadd.f32 %v5861, 1e-05
        %v5865 = vadd.f32 %v5862, 1e-05
        %v5866 = vadd.f32 %v5863, 1e-05
        %v5867 = vrsqrt.pop %v5864
        %v5868 = vrsqrt.pop %v5865
        %v5869 = vrsqrt.pop %v5866
        %v5870 = vmul.f32 %v5846, %v5867
        %v5871 = vmul.f32 %v5847, %v5868
        %v5872 = vmul.f32 %v5848, %v5869
        %v5873 = vpack.c.bf16 %v5871, %v5870
        %v5874 = vpack.c.bf16 %v5872, %v5872
        %s5875 = scalar_lea.vmem [#allocation7], 16
        %v5876 = vld [vmem:[%s5875] sm:$0xf]
        %v5877 = vld [vmem:[%s5875 + $0x4] sm:$0xf]
        %v5878 = vld [vmem:[%s5875 + $0x8] sm:$0xf]
        %v5879 = vld [vmem:[%s5875 + $0xc] sm:$0xf]
        %s5880 = scalar_lea.vmem [#allocation9], 1
        %v5881 = vld [vmem:[%s5880] sm:$0x1]
        %v5883 = vlaneseq
        %v5884 = vshrl.u32 %v5883, 7
        %v5885 = vsub.s32 0, %v5884
        %v5886 = vrot.slane %v5881, %v5885
        %v5892 = vunpack.c.l.b16 %v5876
        %v5893 = vunpack.c.l.b16 %v5877
        %v5894 = vunpack.c.l.b16 %v5878
        %v5895 = vunpack.c.l.b16 %v5879
        %v5896 = vpack.c.b16 %v5893, %v5892
        %v5897 = vpack.c.b16 %v5895, %v5894
        %v5901 = vsel %vm674, %v5873, 0
        %v5904 = vsel %vm674, %v5874, 0
        %5906 = vmatprep.subr.bf16.mxu0 0
        %5907 = vmatpush1.bf16.msra.mxu0 0
        %5908 = vmatprep.subr.bf16.mxu0 0
        %5909 = vmatpush1.bf16.msra.mxu0 0
        %5910 = vmatprep.subr.bf16.mxu0 0
        %5911 = vmatpush1.bf16.msra.mxu0 0
        %5912 = vmatprep.subr.bf16.mxu0 0
        %5913 = vmatpush1.bf16.msra.mxu0 0
        %5914 = vmatprep.subr.bf16.mxu0 0
        %5915 = vmatpush1.bf16.msra.mxu0 0
        %5916 = vmatprep.subr.bf16.mxu0 0
        %5917 = vmatpush1.bf16.msra.mxu0 0
        %5918 = vmatprep.subr.bf16.mxu0 0
        %5919 = vmatpush1.bf16.msra.mxu0 %v5897
        %5920 = vmatprep.subr.bf16.mxu0 0
        %5921 = vmatpush1.bf16.msra.mxu0 %v5896
        %5922 = vmatprep.subr.bf16.mxu0 0
        %5923 = vmatpush2.bf16.msra.mxu0 0
        %5924 = vmatprep.subr.bf16.mxu0 0
        %5925 = vmatpush2.bf16.msra.mxu0 0
        %5926 = vmatprep.subr.bf16.mxu0 0
        %5927 = vmatpush2.bf16.msra.mxu0 0
        %5928 = vmatprep.subr.bf16.mxu0 0
        %5929 = vmatpush2.bf16.msra.mxu0 0
        %5930 = vmatprep.subr.bf16.mxu0 0
        %5931 = vmatpush2.bf16.msra.mxu0 0
        %5932 = vmatprep.subr.bf16.mxu0 0
        %5933 = vmatpush2.bf16.msra.mxu0 0
        %5934 = vmatprep.subr.bf16.mxu0 0
        %5935 = vmatpush2.bf16.msra.mxu0 0
        %5936 = vmatprep.subr.bf16.mxu0 0
        %5937 = vmatpush2.bf16.msra.mxu0 0
        %5938 = vmatprep.mubr.bf16.mxu0 0
        %5939 = vmatmul.mubr.bf16.gmra.mxu0 %v5901
        %v5940 = vpop.f32.mrf.mxu0
        %v5941 = vadd.f32 %v5886, %v5940
        %v5942 = vpop.f32.mrf.mxu0
        %v5943 = vpop.f32.mrf.mxu0
        %v5944 = vadd.f32 %v5886, %v5943
        %v5945 = vpop.f32.mrf.mxu0
        %5946 = vmatprep.mubr.bf16.mxu0 0
        %5947 = vmatmul.mubr.bf16.gmra.mxu0 %v5904
        %v5948 = vpop.f32.mrf.mxu0
        %v5949 = vadd.f32 %v5886, %v5948
        %v5950 = vpop.f32.mrf.mxu0
        %v5951 = vpop.f32.mrf.mxu0
        %v5952 = vpop.f32.mrf.mxu0
        %5953 = vdwg.mxu0
        %v5954 = vmul.f32 %v5941, 1.702
        %v5955 = vmul.f32 %v5944, 1.702
        %v5956 = vmul.f32 %v5949, 1.702
        %v5957 = vxor.u32 %v5954, 2147483648
        %v5958 = vxor.u32 %v5955, 2147483648
        %v5959 = vxor.u32 %v5956, 2147483648
        %v5960 = vmul.f32 %v5957, 1.442695
        %v5961 = vpow.pop %v5960
        %v5962 = vmul.f32 %v5958, 1.442695
        %v5963 = vpow.pop %v5962
        %v5964 = vmul.f32 %v5959, 1.442695
        %v5965 = vpow.pop %v5964
        %v5966 = vadd.f32 %v5961, 1.0
        %v5967 = vadd.f32 %v5963, 1.0
        %v5968 = vadd.f32 %v5965, 1.0
        %v5969 = vrcp.pop %v5966
        %v5970 = vmul.f32 1.0, %v5969
        %v5971 = vrcp.pop %v5967
        %v5972 = vmul.f32 1.0, %v5971
        %v5973 = vrcp.pop %v5968
        %v5974 = vmul.f32 1.0, %v5973
        %v5975 = vmul.f32 %v5941, %v5970
        %v5976 = vmul.f32 %v5944, %v5972
        %v5977 = vmul.f32 %v5949, %v5974
        %v5978 = vpack.c.bf16 %v5976, %v5975
        %v5979 = vpack.c.bf16 %v5977, %v5977
        %s5980 = scalar_lea.vmem %s13, 64
        %v5981 = vld [vmem:[%s5980] sm:$0xf]
        %v5982 = vld [vmem:[%s5980 + $0x4] sm:$0xf]
        %v5983 = vld [vmem:[%s5980 + $0x8] sm:$0xf]
        %v5984 = vld [vmem:[%s5980 + $0xc] sm:$0xf]
        %v5985 = vld [vmem:[%s5980 + $0x10] sm:$0xf]
        %v5986 = vld [vmem:[%s5980 + $0x14] sm:$0xf]
        %v5987 = vld [vmem:[%s5980 + $0x18] sm:$0xf]
        %v5988 = vld [vmem:[%s5980 + $0x1c] sm:$0xf]
        %v5989 = vld [vmem:[%s5980 + $0x20] sm:$0xf]
        %v5990 = vld [vmem:[%s5980 + $0x24] sm:$0xf]
        %v5991 = vld [vmem:[%s5980 + $0x28] sm:$0xf]
        %v5992 = vld [vmem:[%s5980 + $0x2c] sm:$0xf]
        %v5993 = vld [vmem:[%s5980 + $0x30] sm:$0xf]
        %v5994 = vld [vmem:[%s5980 + $0x34] sm:$0xf]
        %v5995 = vld [vmem:[%s5980 + $0x38] sm:$0xf]
        %v5996 = vld [vmem:[%s5980 + $0x3c] sm:$0xf]
        %v6013 = vunpack.c.l.b16 %v5981
        %v6014 = vunpack.c.l.b16 %v5982
        %v6015 = vunpack.c.l.b16 %v5983
        %v6016 = vunpack.c.l.b16 %v5984
        %v6017 = vunpack.c.l.b16 %v5985
        %v6018 = vunpack.c.l.b16 %v5986
        %v6019 = vunpack.c.l.b16 %v5987
        %v6020 = vunpack.c.l.b16 %v5988
        %v6021 = vunpack.c.l.b16 %v5989
        %v6022 = vunpack.c.l.b16 %v5990
        %v6023 = vunpack.c.l.b16 %v5991
        %v6024 = vunpack.c.l.b16 %v5992
        %v6025 = vunpack.c.l.b16 %v5993
        %v6026 = vunpack.c.l.b16 %v5994
        %v6027 = vunpack.c.l.b16 %v5995
        %v6028 = vunpack.c.l.b16 %v5996
        %v6029 = vpack.c.b16 %v6014, %v6013
        %v6030 = vpack.c.b16 %v6016, %v6015
        %v6031 = vpack.c.b16 %v6018, %v6017
        %v6032 = vpack.c.b16 %v6020, %v6019
        %v6033 = vpack.c.b16 %v6022, %v6021
        %v6034 = vpack.c.b16 %v6024, %v6023
        %v6035 = vpack.c.b16 %v6026, %v6025
        %v6036 = vpack.c.b16 %v6028, %v6027
        %6045 = vmatprep.subr.bf16.mxu0 0
        %6046 = vmatpush1.bf16.msra.mxu0 %v6036
        %6047 = vmatprep.subr.bf16.mxu0 0
        %6048 = vmatpush1.bf16.msra.mxu0 %v6035
        %6049 = vmatprep.subr.bf16.mxu0 0
        %6050 = vmatpush1.bf16.msra.mxu0 %v6034
        %6051 = vmatprep.subr.bf16.mxu0 0
        %6052 = vmatpush1.bf16.msra.mxu0 %v6033
        %6053 = vmatprep.subr.bf16.mxu0 0
        %6054 = vmatpush1.bf16.msra.mxu0 %v6032
        %6055 = vmatprep.subr.bf16.mxu0 0
        %6056 = vmatpush1.bf16.msra.mxu0 %v6031
        %6057 = vmatprep.subr.bf16.mxu0 0
        %6058 = vmatpush1.bf16.msra.mxu0 %v6030
        %6059 = vmatprep.subr.bf16.mxu0 0
        %6060 = vmatpush1.bf16.msra.mxu0 %v6029
        %6061 = vmatprep.subr.bf16.mxu0 0
        %6062 = vmatpush2.bf16.msra.mxu0 0
        %6063 = vmatprep.subr.bf16.mxu0 0
        %6064 = vmatpush2.bf16.msra.mxu0 0
        %6065 = vmatprep.subr.bf16.mxu0 0
        %6066 = vmatpush2.bf16.msra.mxu0 0
        %6067 = vmatprep.subr.bf16.mxu0 0
        %6068 = vmatpush2.bf16.msra.mxu0 0
        %6069 = vmatprep.subr.bf16.mxu0 0
        %6070 = vmatpush2.bf16.msra.mxu0 0
        %6071 = vmatprep.subr.bf16.mxu0 0
        %6072 = vmatpush2.bf16.msra.mxu0 0
        %6073 = vmatprep.subr.bf16.mxu0 0
        %6074 = vmatpush2.bf16.msra.mxu0 0
        %6075 = vmatprep.subr.bf16.mxu0 0
        %6076 = vmatpush2.bf16.msra.mxu0 0
        %6077 = vmatprep.mubr.bf16.mxu0 0
        %6078 = vmatmul.mubr.bf16.gmra.mxu0 %v5978
        %v6079 = vpop.f32.mrf.mxu0
        %v6080 = vadd.f32 0.0, %v6079
        %v6081 = vpop.f32.mrf.mxu0
        %v6082 = vpop.f32.mrf.mxu0
        %v6083 = vadd.f32 0.0, %v6082
        %v6084 = vpop.f32.mrf.mxu0
        %6085 = vmatprep.mubr.bf16.mxu0 0
        %6086 = vmatmul.mubr.bf16.gmra.mxu0 %v5979
        %v6087 = vpop.f32.mrf.mxu0
        %v6088 = vadd.f32 0.0, %v6087
        %v6089 = vpop.f32.mrf.mxu0
        %v6090 = vpop.f32.mrf.mxu0
        %v6091 = vpop.f32.mrf.mxu0
        %6092 = vdwg.mxu0
        %v6093 = vadd.f32 %v5831, %v6080
        %v6094 = vadd.f32 %v5832, %v6083
        %v6095 = vadd.f32 %v5833, %v6088
        %s6096 = scalar_lea.vmem [#allocation10], 1
        %v6097 = vld [vmem:[%s6096] sm:$0x1]
        %v6099 = vlaneseq
        %v6100 = vshrl.u32 %v6099, 7
        %v6101 = vsub.s32 0, %v6100
        %v6102 = vrot.slane %v6097, %v6101
        %v6104 = vadd.f32 %v6093, %v6102
        %v6105 = vadd.f32 %v6094, %v6102
        %v6106 = vadd.f32 %v6095, %v6102
        %v6107 = vld [vmem:[%s653] sm:$0xff]
        %v6108 = vld [vmem:[%s653 + $0x8] sm:$0xff]
        %v6109 = vld [vmem:[%s653 + $0x10] sm:$0xff]
        %6111 = vset.pattern.permute.xlu0 0
        %6112 = vperm.xlu0 %6111, %v6107
        %v6113 = vpop.permute.xlu0 %6112
        %6116 = vset.pattern.permute.xlu0 0
        %6117 = vperm.xlu0 %6116, %v6108
        %v6118 = vpop.permute.xlu0 %6117
        %6121 = vset.pattern.permute.xlu0 0
        %6122 = vperm.xlu0 %6121, %v6109
        %v6123 = vpop.permute.xlu0 %6122
        %v6125 = vmul.f32 %v6113, %v6104
        %v6126 = vmul.f32 %v6118, %v6105
        %v6127 = vmul.f32 %v6123, %v6106
        %v6128 = vsel %vm674, %v6125, 0.0
        %v6129 = vrot.slane %v6128, 4
        %v6130 = vadd.f32 %v6128, %v6129
        %v6131 = vrot.slane %v6130, 2
        %v6132 = vadd.f32 %v6130, %v6131
        %v6133 = vrot.slane %v6132, 1
        %v6134 = vadd.f32 %v6132, %v6133
        %v6135 = vsel %vm674, %v6126, 0.0
        %v6136 = vrot.slane %v6135, 4
        %v6137 = vadd.f32 %v6135, %v6136
        %v6138 = vrot.slane %v6137, 2
        %v6139 = vadd.f32 %v6137, %v6138
        %v6140 = vrot.slane %v6139, 1
        %v6141 = vadd.f32 %v6139, %v6140
        %v6142 = vsel %vm674, %v6127, 0.0
        %v6143 = vrot.slane %v6142, 4
        %v6144 = vadd.f32 %v6142, %v6143
        %v6145 = vrot.slane %v6144, 2
        %v6146 = vadd.f32 %v6144, %v6145
        %v6147 = vrot.slane %v6146, 1
        %v6148 = vadd.f32 %v6146, %v6147
        %vm6152 = vcmask 1041409
        %v6153 = vsel %vm6152, %v6141, %v6134
        %vm6154 = vcmask 1042434
        %v6155 = vsel %vm6154, %v6148, %v6153
        %vm6157 = vcmask 256000
        %v6158 = vsel %vm6157, %v6155, 0.0
        %6159 = vadd.xlane.f32.xlu0 %v6158
        %v6160 = vpop.xlane.xlu0 %6159
        %v6161 = vmul.f32 %v6160, %v684
        %v6163 = vrot.slane %v6161, 1
        %v6164 = vrot.slane %v6161, 2
        %v6168 = vsub.f32 %v6134, %v6161
        %v6169 = vsub.f32 %v6141, %v6163
        %v6170 = vsub.f32 %v6148, %v6164
        %v6171 = vmul.f32 %v6168, %v6168
        %v6172 = vmul.f32 %v6169, %v6169
        %v6173 = vmul.f32 %v6170, %v6170
        %v6177 = vrot.slane %v6172, 7
        %v6178 = vsel %vm6152, %v6177, %v6171
        %v6179 = vrot.slane %v6173, 6
        %v6180 = vsel %vm6154, %v6179, %v6178
        %v6182 = vsel %vm6157, %v6180, 0.0
        %6183 = vadd.xlane.f32.xlu0 %v6182
        %v6184 = vpop.xlane.xlu0 %6183
        %v6185 = vmul.f32 %v6184, %v684
        %v6186 = vadd.f32 %v6185, 1e-05
        %v6187 = vrsqrt.pop %v6186
        %v6189 = vrot.slane %v6187, 1
        %v6190 = vrot.slane %v6187, 2
        %v6194 = vmul.f32 %v6168, %v6187
        %v6195 = vmul.f32 %v6169, %v6189
        %v6196 = vmul.f32 %v6170, %v6190
        %v6197 = vpack.c.bf16 %v6194, %v6194
        %v6198 = vpack.c.bf16 %v6195, %v6195
        %v6199 = vpack.c.bf16 %v6196, %v6196
        %v6200 = vld [vmem:[%s15] sm:$0xf]
        %v6201 = vld [vmem:[%s15 + $0x4] sm:$0xf]
        %v6202 = vld [vmem:[%s15 + $0x8] sm:$0xf]
        %v6203 = vld [vmem:[%s15 + $0xc] sm:$0xf]
        %v6204 = vld [vmem:[%s16] sm:$0x1]
        %v6206 = vlaneseq
        %v6207 = vshrl.u32 %v6206, 7
        %v6208 = vsub.s32 0, %v6207
        %v6209 = vrot.slane %v6204, %v6208
        %v6214 = vunpack.c.l.b16 %v6197
        %v6215 = vunpack.c.l.b16 %v6198
        %v6216 = vunpack.c.l.b16 %v6199
        %v6217 = vrot.slane %v6215, 7
        %v6218 = vsel %vm6152, %v6217, %v6214
        %v6219 = vrot.slane %v6216, 6
        %v6220 = vsel %vm6154, %v6219, %v6218
        %v6221 = vpack.c.b16 %v6220, %v6220
        %v6226 = vunpack.c.l.b16 %v6200
        %v6227 = vunpack.c.l.b16 %v6201
        %v6228 = vunpack.c.l.b16 %v6202
        %v6229 = vunpack.c.l.b16 %v6203
        %v6230 = vpack.c.b16 %v6227, %v6226
        %v6231 = vpack.c.b16 %v6229, %v6228
        %v6235 = vsel %vm674, %v6221, 0
        %6237 = vmatprep.subr.bf16.mxu0 0
        %6238 = vmatpush1.bf16.msra.mxu0 0
        %6239 = vmatprep.subr.bf16.mxu0 0
        %6240 = vmatpush1.bf16.msra.mxu0 0
        %6241 = vmatprep.subr.bf16.mxu0 0
        %6242 = vmatpush1.bf16.msra.mxu0 0
        %6243 = vmatprep.subr.bf16.mxu0 0
        %6244 = vmatpush1.bf16.msra.mxu0 0
        %6245 = vmatprep.subr.bf16.mxu0 0
        %6246 = vmatpush1.bf16.msra.mxu0 0
        %6247 = vmatprep.subr.bf16.mxu0 0
        %6248 = vmatpush1.bf16.msra.mxu0 0
        %6249 = vmatprep.subr.bf16.mxu0 0
        %6250 = vmatpush1.bf16.msra.mxu0 %v6231
        %6251 = vmatprep.subr.bf16.mxu0 0
        %6252 = vmatpush1.bf16.msra.mxu0 %v6230
        %6253 = vmatprep.subr.bf16.mxu0 0
        %6254 = vmatpush2.bf16.msra.mxu0 0
        %6255 = vmatprep.subr.bf16.mxu0 0
        %6256 = vmatpush2.bf16.msra.mxu0 0
        %6257 = vmatprep.subr.bf16.mxu0 0
        %6258 = vmatpush2.bf16.msra.mxu0 0
        %6259 = vmatprep.subr.bf16.mxu0 0
        %6260 = vmatpush2.bf16.msra.mxu0 0
        %6261 = vmatprep.subr.bf16.mxu0 0
        %6262 = vmatpush2.bf16.msra.mxu0 0
        %6263 = vmatprep.subr.bf16.mxu0 0
        %6264 = vmatpush2.bf16.msra.mxu0 0
        %6265 = vmatprep.subr.bf16.mxu0 0
        %6266 = vmatpush2.bf16.msra.mxu0 0
        %6267 = vmatprep.subr.bf16.mxu0 0
        %6268 = vmatpush2.bf16.msra.mxu0 0
        %6269 = vmatprep.mubr.bf16.mxu0 0
        %6270 = vmatmul.mubr.bf16.gmra.mxu0 %v6235
        %v6271 = vpop.f32.mrf.mxu0
        %v6272 = vadd.f32 %v6209, %v6271
        %v6273 = vpop.f32.mrf.mxu0
        %v6274 = vpop.f32.mrf.mxu0
        %v6275 = vpop.f32.mrf.mxu0
        %6276 = vdwg.mxu0
        %v6279 = vunpack.c.l.s4 1966171168
        %v6280 = vunpack.c.0.s8 %v6279
        %v6281 = vlaneseq
        %v6282 = vshrl.u32 %v6281, 7
        %v6283 = vsub.s32 %v6280, %v6282
        %v6284 = vrot.slane %v6272, %v6283
        %v6285 = vcombine.high %v6284, %v6284
        %v6287 = vunpack.c.l.s4 1966171168
        %v6288 = vunpack.c.0.s8 %v6287
        %v6289 = vlaneseq
        %v6290 = vshrl.u32 %v6289, 7
        %v6291 = vsub.s32 %v6288, %v6290
        %v6292 = vrot.slane %v6284, %v6291
        %v6294 = vunpack.c.l.s4 1966171168
        %v6295 = vunpack.c.0.s8 %v6294
        %v6296 = vlaneseq
        %v6297 = vshrl.u32 %v6296, 7
        %v6298 = vsub.s32 %v6295, %v6297
        %v6299 = vrot.slane %v6285, %v6298
        %v6300 = vcombine.high %v6292, %v6292
        %vm6304 = vcmask 253952
        %6305 = vst.msk [vmem:[%s658] sm:$0x1] %vm6304, %v6292
        %6306 = vst.msk [vmem:[%s658 + $0x1] sm:$0x1] %vm6304, %v6299
        %6307 = vst.msk [vmem:[%s658 + $0x2] sm:$0x1] %vm6304, %v6300
        %s6308 = smul.u32 3, %s32
        %p6309 = scmp.lt.s32.totalorder %s6308, 5
        %s6310 = scalar_select %p6309, %s6308, 5
        %s6311 = scalar_lea.vmem %s17, %s6310
        // Predicated region
        $region113: #{text_encoder_forward.1} parent=87 // pred_check
          %p6312 = pneg %p417
        $region114: #{text_encoder_forward.1} parent=87 // pred_check_branch
          %6314 = sbr.rel (%p6312) target = $region116
        $region115: #{text_encoder_forward.1} parent=87 // pred_region
          %s6315 = smul.u32 3, %s32
        $region116: #{text_encoder_forward.1} parent=87 // pred_fallthru
          _
      $region88: #{text_encoder_forward.1} parent=5 // pred_fallthru
        _
      %p6316 = scmp.le.s32.totalorder 2, %s27
      // Predicated region
      $region117: #{text_encoder_forward.1} parent=5 // pred_check
        %p6317 = pneg %p6316
      $region118: #{text_encoder_forward.1} parent=5 // pred_check_branch
        %6319 = sbr.rel (%p6317) target = $region120
      $region119: #{text_encoder_forward.1} parent=5 // pred_region
        %s6320 = ssub.s32 %s27, 2
        // Predicated region
        $region121: #{text_encoder_forward.1} parent=119 // pred_check
          %p6321 = pneg %p423
        $region122: #{text_encoder_forward.1} parent=119 // pred_check_branch
          %6323 = sbr.rel (%p6321) target = $region124
        $region123: #{text_encoder_forward.1} parent=119 // pred_region
          %s6324 = smul.u32 3, %s33
          %p6325 = scmp.lt.s32.totalorder %s6324, 5
          %s6326 = scalar_select %p6325, %s6324, 5
          %s6327 = scalar_lea.vmem %s17, %s6326
        $region124: #{text_encoder_forward.1} parent=119 // pred_fallthru
          _
      $region120: #{text_encoder_forward.1} parent=5 // pred_fallthru
        _
    $region6: #{text_encoder_forward.1} parent=1 // loop_footer
      %s31 = sadd.s32 1, %s27
    $region7: #{text_encoder_forward.1} parent=1 // loop_footer_branch
      %26 = sbr.rel target = $region3
    $region8: #{text_encoder_forward.1} parent=1 // loop_exit
      _
    %6328 = vsyncpa [#allocation3], 1
    %s6329 = scalar_lea.sflag [#allocation3], 1
    %6330 = vsyncpa %s6329, 1
    %6331 = vsyncpa [#allocation5], 1
    %6332 = vsyncpa [#allocation8], 1
    %6333 = vsyncpa [#allocation11], 1

</llo_original>
